<compile_context>
chip_gen: v7x
topology: tpu7x:2x2x1
jax: 0.10.0
libtpu: 0.0.40
codegen_flags: <defaults>
</compile_context>

<pallas_src>
import jax
import jax.numpy as jnp
from jax.experimental import pallas as pl
from jax.experimental.pallas import tpu as pltpu


_CPAD = 128              # lane-dense channel padding for conv GEMM outputs
_TILE_N = 128            # output tile width (one lane-dense block)
_VMEM_LIMIT = 32 * 1024 * 1024


def _round_up(x, m):
    return (x + m - 1) // m * m


def _pick_tile_m(M, K):
    """tile_m targeting ~1 MiB bf16 input tile, clamped to [256, 2048]."""
    t = (1 << 20) // (K * 2)
    t = max(256, min(2048, t))
    t = (t // 256) * 256
    t = min(t, _round_up(M, 16))          # don't over-pad tiny M (16: bf16 sublanes)
    if M >= 512:
        # keep >=2 grid steps along M so both v7x TensorCores get work
        t = min(t, max(256, _round_up((M + 1) // 2, 256)))
    return t


# ---------------------------------------------------------------------------
# Pallas kernel: o = relu(x @ w + b); f32 accumulate, cast to o_ref.dtype
# ---------------------------------------------------------------------------
def _mm_bias_relu_kernel(x_ref, w_ref, b_ref, o_ref):
    acc = jnp.dot(x_ref[...], w_ref[...], preferred_element_type=jnp.float32)
    o_ref[...] = jnp.maximum(acc + b_ref[...], 0.0).astype(o_ref.dtype)


def matmul_bias_relu(x, w_bf16, b_row, out_dtype):
    """relu(x @ w + b).

    x:      (M, K) bf16 (already bf16 -- no extra cast pass here)
    w_bf16: (K, N) bf16, N multiple of 128, K multiple of 8 (untiled)
    b_row:  (1, N) f32
    """
    M, K = x.shape
    K2, N = w_bf16.shape
    assert K == K2 and K % 8 == 0 and N % _TILE_N == 0, (K, K2, N)
    assert x.dtype == jnp.bfloat16 and w_bf16.dtype == jnp.bfloat16

    tile_m = _pick_tile_m(M, K)
    Mp = _round_up(M, tile_m)
    xp = jnp.pad(x, ((0, Mp - M), (0, 0))) if Mp != M else x

    out_bytes = jnp.dtype(out_dtype).itemsize
    out = pl.pallas_call(
        _mm_bias_relu_kernel,
        out_shape=jax.ShapeDtypeStruct((Mp, N), out_dtype),
        grid=(Mp // tile_m, N // _TILE_N),
        in_specs=[
            pl.BlockSpec((tile_m, K), lambda i, j: (i, 0)),
            pl.BlockSpec((K, _TILE_N), lambda i, j: (0, j)),
            pl.BlockSpec((1, _TILE_N), lambda i, j: (0, j)),
        ],
        out_specs=pl.BlockSpec((tile_m, _TILE_N), lambda i, j: (i, j)),
        compiler_params=pltpu.CompilerParams(
            dimension_semantics=("parallel", "parallel"),
            vmem_limit_bytes=_VMEM_LIMIT),
        cost_estimate=pl.CostEstimate(
            flops=2 * Mp * K * N,
            transcendentals=0,
            bytes_accessed=Mp * K * 2 + K * N * 2 + Mp * N * out_bytes + N * 4),
    )(xp, w_bf16, b_row)
    return out[:M] if Mp != M else out


# ---------------------------------------------------------------------------
# im2col glue (pure JAX strided slices, real channels only) + conv wrapper
# ---------------------------------------------------------------------------
def _im2col(x, kh, kw, stride, real_c):
    """x: (B, H, W, C) NHWC -> (B, OH, OW, KH*KW*real_c), flat order (kh, kw, c)."""
    B, H, W, C = x.shape
    oh = (H - kh) // stride + 1
    ow = (W - kw) // stride + 1
    cols = [x[:, i:i + stride * oh:stride, j:j + stride * ow:stride, :real_c]
            for i in range(kh) for j in range(kw)]
    return jnp.concatenate(cols, axis=-1), oh, ow


def conv2d_relu(x_nhwc, w_mat, b_row, kh, kw, stride, real_c):
    """Valid conv + bias + ReLU via im2col + Pallas GEMM (bf16 in, bf16 out)."""
    B = x_nhwc.shape[0]
    patches, oh, ow = _im2col(x_nhwc, kh, kw, stride, real_c)
    out = matmul_bias_relu(patches.reshape(B * oh * ow, -1), w_mat, b_row,
                           out_dtype=jnp.bfloat16)
    return out.reshape(B, oh, ow, w_mat.shape[1])


# ---------------------------------------------------------------------------
# Deterministic orthogonal init (gain = sqrt(2), like calculate_gain('relu'))
# ---------------------------------------------------------------------------
def _orthogonal(key, out_dim, in_dim, gain):
    big, small = max(out_dim, in_dim), min(out_dim, in_dim)
    a = jax.random.normal(key, (big, small), dtype=jnp.float32)
    q, r = jnp.linalg.qr(a)
    q = q * jnp.sign(jnp.diagonal(r))
    if out_dim < in_dim:
        q = q.T
    return gain * q


def init_params(key):
    """Parameters in the PyTorch layout (OIHW conv weights, (out, in) linear)."""
    gain = 2.0 ** 0.5
    k1, k2, k3, k4 = jax.random.split(key, 4)
    return {
        "w1": _orthogonal(k1, 32, 4 * 8 * 8, gain).reshape(32, 4, 8, 8),
        "b1": jnp.zeros((32,), jnp.float32),
        "w2": _orthogonal(k2, 64, 32 * 4 * 4, gain).reshape(64, 32, 4, 4),
        "b2": jnp.zeros((64,), jnp.float32),
        "w3": _orthogonal(k3, 32, 64 * 3 * 3, gain).reshape(32, 64, 3, 3),
        "b3": jnp.zeros((32,), jnp.float32),
        "w4": _orthogonal(k4, 256, 32 * 7 * 7, gain),   # torch Linear: (out, in)
        "b4": jnp.zeros((256,), jnp.float32),
    }


def prepare_params(params):
    """One-time: torch-layout params -> bf16 matmul-ready matrices.

    Conv weights keep their *real* input channels (patches are built from real
    channels only) and pad only the output channels to 128 (lane-dense N).
    fc1 rows are reordered to the (h, w, c) activation flatten with cin=32.
    """
    def conv_w(w_oihw):
        cout, cin, kh, kw = w_oihw.shape
        wt = jnp.transpose(w_oihw, (2, 3, 1, 0))                    # (kh, kw, cin, cout)
        wt = jnp.pad(wt, ((0, 0), (0, 0), (0, 0), (0, _CPAD - cout)))
        return wt.reshape(kh * kw * cin, _CPAD).astype(jnp.bfloat16)

    def conv_b(b):
        return jnp.pad(b.astype(jnp.float32),
                       (0, _CPAD - b.shape[0])).reshape(1, _CPAD)

    w4 = params["w4"].reshape(256, 32, 7, 7)
    w4 = jnp.transpose(w4, (2, 3, 1, 0))                            # (7, 7, 32, 256)
    w4 = w4.reshape(7 * 7 * 32, 256).astype(jnp.bfloat16)

    return {
        "w1": conv_w(params["w1"]), "b1": conv_b(params["b1"]),
        "w2": conv_w(params["w2"]), "b2": conv_b(params["b2"]),
        "w3": conv_w(params["w3"]), "b3": conv_b(params["b3"]),
        "w4": w4,
        "b4": params["b4"].astype(jnp.float32).reshape(1, 256),
    }


# ---------------------------------------------------------------------------
# Full forward pass (bf16 activations end-to-end; only real channels feed K)
# ---------------------------------------------------------------------------
@jax.jit
def deepmind_forward(prepped, x_nchw):
    x = jnp.transpose(x_nchw, (0, 2, 3, 1)).astype(jnp.bfloat16)            # NHWC bf16, once
    x = conv2d_relu(x, prepped["w1"], prepped["b1"], 8, 8, 4, real_c=4)     # (B, 20, 20, 128)
    x = conv2d_relu(x, prepped["w2"], prepped["b2"], 4, 4, 2, real_c=32)    # (B,  9,  9, 128)
    x = conv2d_relu(x, prepped["w3"], prepped["b3"], 3, 3, 1, real_c=64)    # (B,  7,  7, 128)
    B = x.shape[0]
    x = x[..., :32].reshape(B, 7 * 7 * 32)       # real channels, (h, w, c) order = w4 rows
    return matmul_bias_relu(x, prepped["w4"], prepped["b4"],
                            out_dtype=jnp.float32)                          # (B, 256) f32


# ---------------------------------------------------------------------------
# Pure-JAX f32 reference (matches the PyTorch module semantics)
# ---------------------------------------------------------------------------
def reference_forward(params, x_nchw):
    x = x_nchw.astype(jnp.float32)

    def conv(x, w, b, s):
        y = jax.lax.conv_general_dilated(
            x, w, window_strides=(s, s), padding="VALID",
            dimension_numbers=("NCHW", "OIHW", "NCHW"))
        return jax.nn.relu(y + b[None, :, None, None])

    x = conv(x, params["w1"], params["b1"], 4)
    x = conv(x, params["w2"], params["b2"], 2)
    x = conv(x, params["w3"], params["b3"], 1)
    x = x.reshape(x.shape[0], -1)                    # NCHW flatten, like torch
    return jax.nn.relu(x @ params["w4"].T + params["b4"])


if __name__ == "__main__":
    key = jax.random.PRNGKey(0)
    pkey, xkey = jax.random.split(key)
    params = init_params(pkey)
    prepped = prepare_params(params)

    # The fc1 layer (32*7*7) fixes the spatial size the forward implies: 84x84.
    x = jax.random.normal(xkey, (2, 4, 84, 84), dtype=jnp.float32)

    out = jax.block_until_ready(deepmind_forward(prepped, x))

    assert out.shape == (2, 256), out.shape
    assert out.dtype == jnp.float32
    assert bool(jnp.all(out >= 0.0))      # ReLU output

    # bf16 activations / f32-accumulate path vs f32 reference: loose tolerance.
    ref = jax.block_until_ready(reference_forward(params, x))
    err = float(jnp.max(jnp.abs(out - ref)))
    assert err < 0.2, f"max abs err vs f32 reference: {err}"

    print("KERNEL_OK")
</pallas_src>

<mosaic_0001>
module attributes {stable_mosaic.version = 11 : i64} {
  func.func @_mm_bias_relu_kernel(%arg0: i32, %arg1: i32, %arg2: memref<512x256xbf16, #tpu.memory_space<vmem>>, %arg3: memref<256x128xbf16, #tpu.memory_space<vmem>>, %arg4: memref<1x128xf32, #tpu.memory_space<vmem>>, %arg5: memref<512x128xbf16, #tpu.memory_space<vmem>>) attributes {dimension_semantics = [#tpu.dimension_semantics<parallel>, #tpu.dimension_semantics<parallel>], iteration_bounds = array<i64: 2, 1>, scalar_prefetch = 0 : i64, scratch_operands = 0 : i64, tpu.core_type = #tpu.core_type<tc>, window_params = [{transform_indices = @transform_0, window_bounds = array<i64: 512, 256>}, {transform_indices = @transform_1, window_bounds = array<i64: 256, 128>}, {transform_indices = @transform_2, window_bounds = array<i64: 1, 128>}, {transform_indices = @transform_3, window_bounds = array<i64: 512, 128>}]} {
    %c0 = arith.constant 0 : index
    %c0_0 = arith.constant 0 : index
    %0 = vector.load %arg2[%c0, %c0_0] : memref<512x256xbf16, #tpu.memory_space<vmem>>, vector<512x256xbf16>
    %c0_1 = arith.constant 0 : index
    %c0_2 = arith.constant 0 : index
    %1 = vector.load %arg3[%c0_1, %c0_2] : memref<256x128xbf16, #tpu.memory_space<vmem>>, vector<256x128xbf16>
    %cst = arith.constant dense<0.000000e+00> : vector<512x128xf32>
    %2 = tpu.matmul %0, %1, %cst {dimension_numbers = #tpu.dot_dimension_numbers<[1], [0], [0], [1], [0, 0, 1, 1], [], []>} : vector<512x256xbf16>, vector<256x128xbf16>, vector<512x128xf32> -> vector<512x128xf32>
    %c0_3 = arith.constant 0 : index
    %c0_4 = arith.constant 0 : index
    %3 = vector.load %arg4[%c0_3, %c0_4] : memref<1x128xf32, #tpu.memory_space<vmem>>, vector<1x128xf32>
    %4 = vector.broadcast %3 : vector<1x128xf32> to vector<512x128xf32>
    %5 = arith.addf %2, %4 : vector<512x128xf32>
    %cst_5 = arith.constant 0.000000e+00 : f32
    %6 = vector.broadcast %cst_5 : f32 to vector<512x128xf32>
    %7 = arith.maximumf %5, %6 : vector<512x128xf32>
    %8 = arith.truncf %7 : vector<512x128xf32> to vector<512x128xbf16>
    %c0_6 = arith.constant 0 : index
    %c0_7 = arith.constant 0 : index
    %9 = vector.load %arg5[%c0_6, %c0_7] : memref<512x128xbf16, #tpu.memory_space<vmem>>, vector<512x128xbf16>
    tpu.vector_store %arg5[%c0_6, %c0_7], %8 {strides = array<i32>} : memref<512x128xbf16, #tpu.memory_space<vmem>>, vector<512x128xbf16>,
    return
  }
  func.func @transform_0(%arg0: i32, %arg1: i32) -> (i32, i32) {
    %c0_i32 = arith.constant 0 : i32
    %c0_i32_0 = arith.constant 0 : i32
    return %arg0, %c0_i32 : i32, i32
  }
  func.func @transform_1(%arg0: i32, %arg1: i32) -> (i32, i32) {
    %c0_i32 = arith.constant 0 : i32
    %c0_i32_0 = arith.constant 0 : i32
    return %c0_i32, %arg1 : i32, i32
  }
  func.func @transform_2(%arg0: i32, %arg1: i32) -> (i32, i32) {
    %c0_i32 = arith.constant 0 : i32
    %c0_i32_0 = arith.constant 0 : i32
    return %c0_i32, %arg1 : i32, i32
  }
  func.func @transform_3(%arg0: i32, %arg1: i32) -> (i32, i32) {
    %c0_i32 = arith.constant 0 : i32
    return %arg0, %arg1 : i32, i32
  }
}

module attributes {stable_mosaic.version = 11 : i64} {
  func.func @_mm_bias_relu_kernel(%arg0: i32, %arg1: i32, %arg2: memref<176x512xbf16, #tpu.memory_space<vmem>>, %arg3: memref<512x128xbf16, #tpu.memory_space<vmem>>, %arg4: memref<1x128xf32, #tpu.memory_space<vmem>>, %arg5: memref<176x128xbf16, #tpu.memory_space<vmem>>) attributes {dimension_semantics = [#tpu.dimension_semantics<parallel>, #tpu.dimension_semantics<parallel>], iteration_bounds = array<i64: 1, 1>, scalar_prefetch = 0 : i64, scratch_operands = 0 : i64, tpu.core_type = #tpu.core_type<tc>, window_params = [{transform_indices = @transform_0, window_bounds = array<i64: 176, 512>}, {transform_indices = @transform_1, window_bounds = array<i64: 512, 128>}, {transform_indices = @transform_2, window_bounds = array<i64: 1, 128>}, {transform_indices = @transform_3, window_bounds = array<i64: 176, 128>}]} {
    %c0 = arith.constant 0 : index
    %c0_0 = arith.constant 0 : index
    %0 = vector.load %arg2[%c0, %c0_0] : memref<176x512xbf16, #tpu.memory_space<vmem>>, vector<176x512xbf16>
    %c0_1 = arith.constant 0 : index
    %c0_2 = arith.constant 0 : index
    %1 = vector.load %arg3[%c0_1, %c0_2] : memref<512x128xbf16, #tpu.memory_space<vmem>>, vector<512x128xbf16>
    %cst = arith.constant dense<0.000000e+00> : vector<176x128xf32>
    %2 = tpu.matmul %0, %1, %cst {dimension_numbers = #tpu.dot_dimension_numbers<[1], [0], [0], [1], [0, 0, 1, 1], [], []>} : vector<176x512xbf16>, vector<512x128xbf16>, vector<176x128xf32> -> vector<176x128xf32>
    %c0_3 = arith.constant 0 : index
    %c0_4 = arith.constant 0 : index
    %3 = vector.load %arg4[%c0_3, %c0_4] : memref<1x128xf32, #tpu.memory_space<vmem>>, vector<1x128xf32>
    %4 = vector.broadcast %3 : vector<1x128xf32> to vector<176x128xf32>
    %5 = arith.addf %2, %4 : vector<176x128xf32>
    %cst_5 = arith.constant 0.000000e+00 : f32
    %6 = vector.broadcast %cst_5 : f32 to vector<176x128xf32>
    %7 = arith.maximumf %5, %6 : vector<176x128xf32>
    %8 = arith.truncf %7 : vector<176x128xf32> to vector<176x128xbf16>
    %c0_6 = arith.constant 0 : index
    %c0_7 = arith.constant 0 : index
    %9 = vector.load %arg5[%c0_6, %c0_7] : memref<176x128xbf16, #tpu.memory_space<vmem>>, vector<176x128xbf16>
    tpu.vector_store %arg5[%c0_6, %c0_7], %8 {strides = array<i32>} : memref<176x128xbf16, #tpu.memory_space<vmem>>, vector<176x128xbf16>,
    return
  }
  func.func @transform_0(%arg0: i32, %arg1: i32) -> (i32, i32) {
    %c0_i32 = arith.constant 0 : i32
    %c0_i32_0 = arith.constant 0 : i32
    return %arg0, %c0_i32 : i32, i32
  }
  func.func @transform_1(%arg0: i32, %arg1: i32) -> (i32, i32) {
    %c0_i32 = arith.constant 0 : i32
    %c0_i32_0 = arith.constant 0 : i32
    return %c0_i32, %arg1 : i32, i32
  }
  func.func @transform_2(%arg0: i32, %arg1: i32) -> (i32, i32) {
    %c0_i32 = arith.constant 0 : i32
    %c0_i32_0 = arith.constant 0 : i32
    return %c0_i32, %arg1 : i32, i32
  }
  func.func @transform_3(%arg0: i32, %arg1: i32) -> (i32, i32) {
    %c0_i32 = arith.constant 0 : i32
    return %arg0, %arg1 : i32, i32
  }
}

module attributes {stable_mosaic.version = 11 : i64} {
  func.func @_mm_bias_relu_kernel(%arg0: i32, %arg1: i32, %arg2: memref<16x1568xbf16, #tpu.memory_space<vmem>>, %arg3: memref<1568x128xbf16, #tpu.memory_space<vmem>>, %arg4: memref<1x128xf32, #tpu.memory_space<vmem>>, %arg5: memref<16x128xf32, #tpu.memory_space<vmem>>) attributes {dimension_semantics = [#tpu.dimension_semantics<parallel>, #tpu.dimension_semantics<parallel>], iteration_bounds = array<i64: 1, 2>, scalar_prefetch = 0 : i64, scratch_operands = 0 : i64, tpu.core_type = #tpu.core_type<tc>, window_params = [{transform_indices = @transform_0, window_bounds = array<i64: 16, 1568>}, {transform_indices = @transform_1, window_bounds = array<i64: 1568, 128>}, {transform_indices = @transform_2, window_bounds = array<i64: 1, 128>}, {transform_indices = @transform_3, window_bounds = array<i64: 16, 128>}]} {
    %c0 = arith.constant 0 : index
    %c0_0 = arith.constant 0 : index
    %0 = vector.load %arg2[%c0, %c0_0] : memref<16x1568xbf16, #tpu.memory_space<vmem>>, vector<16x1568xbf16>
    %c0_1 = arith.constant 0 : index
    %c0_2 = arith.constant 0 : index
    %1 = vector.load %arg3[%c0_1, %c0_2] : memref<1568x128xbf16, #tpu.memory_space<vmem>>, vector<1568x128xbf16>
    %cst = arith.constant dense<0.000000e+00> : vector<16x128xf32>
    %2 = tpu.matmul %0, %1, %cst {dimension_numbers = #tpu.dot_dimension_numbers<[1], [0], [0], [1], [0, 0, 1, 1], [], []>} : vector<16x1568xbf16>, vector<1568x128xbf16>, vector<16x128xf32> -> vector<16x128xf32>
    %c0_3 = arith.constant 0 : index
    %c0_4 = arith.constant 0 : index
    %3 = vector.load %arg4[%c0_3, %c0_4] : memref<1x128xf32, #tpu.memory_space<vmem>>, vector<1x128xf32>
    %4 = vector.broadcast %3 : vector<1x128xf32> to vector<16x128xf32>
    %5 = arith.addf %2, %4 : vector<16x128xf32>
    %cst_5 = arith.constant 0.000000e+00 : f32
    %6 = vector.broadcast %cst_5 : f32 to vector<16x128xf32>
    %7 = arith.maximumf %5, %6 : vector<16x128xf32>
    %c0_6 = arith.constant 0 : index
    %c0_7 = arith.constant 0 : index
    %8 = vector.load %arg5[%c0_6, %c0_7] : memref<16x128xf32, #tpu.memory_space<vmem>>, vector<16x128xf32>
    tpu.vector_store %arg5[%c0_6, %c0_7], %7 {strides = array<i32>} : memref<16x128xf32, #tpu.memory_space<vmem>>, vector<16x128xf32>,
    return
  }
  func.func @transform_0(%arg0: i32, %arg1: i32) -> (i32, i32) {
    %c0_i32 = arith.constant 0 : i32
    %c0_i32_0 = arith.constant 0 : i32
    return %arg0, %c0_i32 : i32, i32
  }
  func.func @transform_1(%arg0: i32, %arg1: i32) -> (i32, i32) {
    %c0_i32 = arith.constant 0 : i32
    %c0_i32_0 = arith.constant 0 : i32
    return %c0_i32, %arg1 : i32, i32
  }
  func.func @transform_2(%arg0: i32, %arg1: i32) -> (i32, i32) {
    %c0_i32 = arith.constant 0 : i32
    %c0_i32_0 = arith.constant 0 : i32
    return %c0_i32, %arg1 : i32, i32
  }
  func.func @transform_3(%arg0: i32, %arg1: i32) -> (i32, i32) {
    %c0_i32 = arith.constant 0 : i32
    return %arg0, %arg1 : i32, i32
  }
}

module attributes {stable_mosaic.version = 11 : i64} {
  func.func @_mm_bias_relu_kernel(%arg0: i32, %arg1: i32, %arg2: memref<112x576xbf16, #tpu.memory_space<vmem>>, %arg3: memref<576x128xbf16, #tpu.memory_space<vmem>>, %arg4: memref<1x128xf32, #tpu.memory_space<vmem>>, %arg5: memref<112x128xbf16, #tpu.memory_space<vmem>>) attributes {dimension_semantics = [#tpu.dimension_semantics<parallel>, #tpu.dimension_semantics<parallel>], iteration_bounds = array<i64: 1, 1>, scalar_prefetch = 0 : i64, scratch_operands = 0 : i64, tpu.core_type = #tpu.core_type<tc>, window_params = [{transform_indices = @transform_0, window_bounds = array<i64: 112, 576>}, {transform_indices = @transform_1, window_bounds = array<i64: 576, 128>}, {transform_indices = @transform_2, window_bounds = array<i64: 1, 128>}, {transform_indices = @transform_3, window_bounds = array<i64: 112, 128>}]} {
    %c0 = arith.constant 0 : index
    %c0_0 = arith.constant 0 : index
    %0 = vector.load %arg2[%c0, %c0_0] : memref<112x576xbf16, #tpu.memory_space<vmem>>, vector<112x576xbf16>
    %c0_1 = arith.constant 0 : index
    %c0_2 = arith.constant 0 : index
    %1 = vector.load %arg3[%c0_1, %c0_2] : memref<576x128xbf16, #tpu.memory_space<vmem>>, vector<576x128xbf16>
    %cst = arith.constant dense<0.000000e+00> : vector<112x128xf32>
    %2 = tpu.matmul %0, %1, %cst {dimension_numbers = #tpu.dot_dimension_numbers<[1], [0], [0], [1], [0, 0, 1, 1], [], []>} : vector<112x576xbf16>, vector<576x128xbf16>, vector<112x128xf32> -> vector<112x128xf32>
    %c0_3 = arith.constant 0 : index
    %c0_4 = arith.constant 0 : index
    %3 = vector.load %arg4[%c0_3, %c0_4] : memref<1x128xf32, #tpu.memory_space<vmem>>, vector<1x128xf32>
    %4 = vector.broadcast %3 : vector<1x128xf32> to vector<112x128xf32>
    %5 = arith.addf %2, %4 : vector<112x128xf32>
    %cst_5 = arith.constant 0.000000e+00 : f32
    %6 = vector.broadcast %cst_5 : f32 to vector<112x128xf32>
    %7 = arith.maximumf %5, %6 : vector<112x128xf32>
    %8 = arith.truncf %7 : vector<112x128xf32> to vector<112x128xbf16>
    %c0_6 = arith.constant 0 : index
    %c0_7 = arith.constant 0 : index
    %9 = vector.load %arg5[%c0_6, %c0_7] : memref<112x128xbf16, #tpu.memory_space<vmem>>, vector<112x128xbf16>
    tpu.vector_store %arg5[%c0_6, %c0_7], %8 {strides = array<i32>} : memref<112x128xbf16, #tpu.memory_space<vmem>>, vector<112x128xbf16>,
    return
  }
  func.func @transform_0(%arg0: i32, %arg1: i32) -> (i32, i32) {
    %c0_i32 = arith.constant 0 : i32
    %c0_i32_0 = arith.constant 0 : i32
    return %arg0, %c0_i32 : i32, i32
  }
  func.func @transform_1(%arg0: i32, %arg1: i32) -> (i32, i32) {
    %c0_i32 = arith.constant 0 : i32
    %c0_i32_0 = arith.constant 0 : i32
    return %c0_i32, %arg1 : i32, i32
  }
  func.func @transform_2(%arg0: i32, %arg1: i32) -> (i32, i32) {
    %c0_i32 = arith.constant 0 : i32
    %c0_i32_0 = arith.constant 0 : i32
    return %c0_i32, %arg1 : i32, i32
  }
  func.func @transform_3(%arg0: i32, %arg1: i32) -> (i32, i32) {
    %c0_i32 = arith.constant 0 : i32
    return %arg0, %arg1 : i32, i32
  }
}

</mosaic_0001>

<llo_original>
// kernel: deepmind_forward.4
$region0: #{deepmind_forward.4}
  #allocation0 [shape = 'u32[]', space=smem, size = 0x4, offset = 0x4, fixed_abs, tag = 'smem constant byte address 0x4 - core index']
  #allocation1 [shape = 'u32[144,128]{1,0:T(1,128)}', space=vmem, size = 0x12000, scoped, tag = 'internal scratch']
  %s0 = inlined_call_operand.vmem [shape: bf16[1024,256], index: 0, kind: input, shape index: {}]
  %s1 = inlined_call_operand.vmem [shape: bf16[256,128], index: 1, kind: input, shape index: {}]
  %s2 = inlined_call_operand.vmem [shape: f32[1,128], index: 2, kind: input, shape index: {}]
  %s3 = inlined_call_operand.vmem [shape: bf16[1024,128], index: 3, kind: output, shape index: {}]
  %s4 = sld [smem:[#allocation0]]
  $region45: #{deepmind_forward.4} parent=0
    _
  %s6 = ssub.s32 1, %s4
  %s7 = scalar_select 0, %s6, %s4
  loop: start=0, step=1, limit=4
  $region2: #{deepmind_forward.4} parent=0 // loop_pre_header
    _
  $region3: #{deepmind_forward.4} parent=0 // loop_header
    %s9 = sphi 0, %s13
    %p10 = scmp.ge.s32.totalorder %s9, 4
    %s16 = sphi 0, %s28
    %s17 = sphi 0, %s24
    %s18 = sphi 0, %s16
    %s19 = sphi 0, %s17
    %s20 = sphi 0, %s18
    %s21 = sphi 0, %s19
    %s31 = sphi 0, %s33
    %s34 = sphi 0, %s31
    %s35 = sphi 0, %s34
    %s51 = sphi 0, %s35
    %s57 = sphi 0, %s59
    %s60 = sphi 0, %s57
    %s61 = sphi 0, %s60
    %s77 = sphi 0, %s61
    %s83 = sphi 0, %s85
    %s86 = sphi 0, %s83
    %s87 = sphi 0, %s86
    %s103 = sphi 0, %s87
    %s111 = sphi 0, %s113
    %s114 = sphi 0, %s111
    %s115 = sphi 0, %s114
    %s131 = sphi 0, %s115
  $region4: #{deepmind_forward.4} parent=0 // loop_header_branch
    %12 = sbr.rel (%p10) target = $region8
  $region5: #{deepmind_forward.4} parent=0 // loop_body
    %s14 = ssub.s32 %s9, 1
    %s15 = ssub.s32 %s9, 2
    %s22 = sadd.s32 1, %s17
    %p23 = scmp.ge.s32.totalorder %s22, 1
    %s24 = scalar_select %p23, 0, %s22
    %s25 = sadd.s32 1, %s16
    %s26 = scalar_select %p23, %s25, %s16
    %p27 = scmp.ge.s32.totalorder %s26, 2
    %s28 = scalar_select %p27, 0, %s26
    %s29 = ssub.s32 %s16, %s28
    %p30 = scmp.eq.s32.totalorder %s29, 0
    %s32 = sadd.s32 %s31, 1
    %s33 = scalar_select %p30, %s31, %s32
    %p36 = pneg %p30
    %p37 = scmp.eq.s32.totalorder %s9, 1
    %p38 = por %p36, %p37
    %p39 = scmp.ne.s32.totalorder %s31, %s34
    %p40 = scmp.eq.s32.totalorder %s9, 0
    %p41 = por %p39, %p40
    %p42 = scmp.ne.s32.totalorder %s31, %s34
    %p43 = scmp.eq.s32.totalorder %s14, 1
    %p44 = por %p42, %p43
    %p45 = scmp.ne.s32.totalorder %s34, %s35
    %p46 = scmp.eq.s32.totalorder %s14, 0
    %p47 = por %p45, %p46
    %p48 = scmp.ne.s32.totalorder %s34, %s35
    %p49 = scmp.eq.s32.totalorder %s15, 1
    %p50 = por %p48, %p49
    %p52 = scmp.ne.s32.totalorder %s35, %s51
    %p53 = scmp.eq.s32.totalorder %s15, 0
    %p54 = por %p52, %p53
    %s55 = ssub.s32 %s17, %s24
    %p56 = scmp.eq.s32.totalorder %s55, 0
    %s58 = sadd.s32 %s57, 1
    %s59 = scalar_select %p56, %s57, %s58
    %p62 = pneg %p56
    %p63 = scmp.eq.s32.totalorder %s9, 1
    %p64 = por %p62, %p63
    %p65 = scmp.ne.s32.totalorder %s57, %s60
    %p66 = scmp.eq.s32.totalorder %s9, 0
    %p67 = por %p65, %p66
    %p68 = scmp.ne.s32.totalorder %s57, %s60
    %p69 = scmp.eq.s32.totalorder %s14, 1
    %p70 = por %p68, %p69
    %p71 = scmp.ne.s32.totalorder %s60, %s61
    %p72 = scmp.eq.s32.totalorder %s14, 0
    %p73 = por %p71, %p72
    %p74 = scmp.ne.s32.totalorder %s60, %s61
    %p75 = scmp.eq.s32.totalorder %s15, 1
    %p76 = por %p74, %p75
    %p78 = scmp.ne.s32.totalorder %s61, %s77
    %p79 = scmp.eq.s32.totalorder %s15, 0
    %p80 = por %p78, %p79
    %s81 = ssub.s32 %s17, %s24
    %p82 = scmp.eq.s32.totalorder %s81, 0
    %s84 = sadd.s32 %s83, 1
    %s85 = scalar_select %p82, %s83, %s84
    %p88 = pneg %p82
    %p89 = scmp.eq.s32.totalorder %s9, 1
    %p90 = por %p88, %p89
    %p91 = scmp.ne.s32.totalorder %s83, %s86
    %p92 = scmp.eq.s32.totalorder %s9, 0
    %p93 = por %p91, %p92
    %p94 = scmp.ne.s32.totalorder %s83, %s86
    %p95 = scmp.eq.s32.totalorder %s14, 1
    %p96 = por %p94, %p95
    %p97 = scmp.ne.s32.totalorder %s86, %s87
    %p98 = scmp.eq.s32.totalorder %s14, 0
    %p99 = por %p97, %p98
    %p100 = scmp.ne.s32.totalorder %s86, %s87
    %p101 = scmp.eq.s32.totalorder %s15, 1
    %p102 = por %p100, %p101
    %p104 = scmp.ne.s32.totalorder %s87, %s103
    %p105 = scmp.eq.s32.totalorder %s15, 0
    %p106 = por %p104, %p105
    %s107 = ssub.s32 %s16, %s28
    %s108 = ssub.s32 %s17, %s24
    %s109 = sor.u32 %s107, %s108
    %p110 = scmp.eq.s32.totalorder %s109, 0
    %s112 = sadd.s32 %s111, 1
    %s113 = scalar_select %p110, %s111, %s112
    %p116 = pneg %p110
    %p117 = scmp.eq.s32.totalorder %s9, 1
    %p118 = por %p116, %p117
    %p119 = scmp.ne.s32.totalorder %s111, %s114
    %p120 = scmp.eq.s32.totalorder %s9, 0
    %p121 = por %p119, %p120
    %p122 = scmp.ne.s32.totalorder %s111, %s114
    %p123 = scmp.eq.s32.totalorder %s14, 1
    %p124 = por %p122, %p123
    %p125 = scmp.ne.s32.totalorder %s114, %s115
    %p126 = scmp.eq.s32.totalorder %s14, 0
    %p127 = por %p125, %p126
    %p128 = scmp.ne.s32.totalorder %s114, %s115
    %p129 = scmp.eq.s32.totalorder %s15, 1
    %p130 = por %p128, %p129
    %p132 = scmp.ne.s32.totalorder %s115, %s131
    %p133 = scmp.eq.s32.totalorder %s15, 0
    %p134 = por %p132, %p133
    %p135 = scmp.le.s32.totalorder 1, %s9
    %p136 = scmp.lt.s32.totalorder %s9, 3
    %p137 = pnand %p135, %p136
    %p138 = pneg %p137
    // Predicated region
    $region9: #{deepmind_forward.4} parent=5 // pred_check
      _
    $region10: #{deepmind_forward.4} parent=5 // pred_check_branch
      %140 = sbr.rel (%p137) target = $region12
    $region11: #{deepmind_forward.4} parent=5 // pred_region
      %s141 = ssub.s32 %s9, 1
      // Predicated region
      $region13: #{deepmind_forward.4} parent=11 // pred_check
        %p142 = pneg %p73
      $region14: #{deepmind_forward.4} parent=11 // pred_check_branch
        %144 = sbr.rel (%p142) target = $region16
      $region15: #{deepmind_forward.4} parent=11 // pred_region
        %p145 = scmp.lt.s32.totalorder %s19, 0
        %s146 = scalar_select %p145, %s19, 0
        %s147 = smul.addr %s146, 4
        %s148 = scalar_lea.vmem %s1, %s147
      $region16: #{deepmind_forward.4} parent=11 // pred_fallthru
        _
      // Predicated region
      $region17: #{deepmind_forward.4} parent=11 // pred_check
        %p149 = pneg %p99
      $region18: #{deepmind_forward.4} parent=11 // pred_check_branch
        %151 = sbr.rel (%p149) target = $region20
      $region19: #{deepmind_forward.4} parent=11 // pred_region
        %p152 = scmp.lt.s32.totalorder %s19, 0
        %s153 = scalar_select %p152, %s19, 0
        %s154 = scalar_lea.vmem %s2, %s153
      $region20: #{deepmind_forward.4} parent=11 // pred_fallthru
        _
    $region12: #{deepmind_forward.4} parent=5 // pred_fallthru
      _
    %p155 = scmp.lt.s32.totalorder %s9, 2
    // Predicated region
    $region21: #{deepmind_forward.4} parent=5 // pred_check
      %p156 = pneg %p155
    $region22: #{deepmind_forward.4} parent=5 // pred_check_branch
      %158 = sbr.rel (%p156) target = $region24
    $region23: #{deepmind_forward.4} parent=5 // pred_region
      // Predicated region
      $region25: #{deepmind_forward.4} parent=23 // pred_check
        %p159 = pneg %p41
      $region26: #{deepmind_forward.4} parent=23 // pred_check_branch
        %161 = sbr.rel (%p159) target = $region28
      $region27: #{deepmind_forward.4} parent=23 // pred_region
        %s162 = smul.u32 64, %s16
        %p163 = scmp.lt.s32.totalorder %s162, 127
        %s164 = scalar_select %p163, %s162, 127
        %s165 = smul.addr %s164, 2
        %s166 = smul.addr %s165, 4
        %s167 = scalar_lea.vmem %s0, %s166
        %s168 = smul.u32 64, %s16
      $region28: #{deepmind_forward.4} parent=23 // pred_fallthru
        _
    $region24: #{deepmind_forward.4} parent=5 // pred_fallthru
      _
    %p169 = scmp.le.s32.totalorder 1, %s9
    %p170 = scmp.lt.s32.totalorder %s9, 3
    %p171 = pnand %p169, %p170
    %p172 = pneg %p171
    // Predicated region
    $region29: #{deepmind_forward.4} parent=5 // pred_check
      _
    $region30: #{deepmind_forward.4} parent=5 // pred_check_branch
      %174 = sbr.rel (%p171) target = $region32
    $region31: #{deepmind_forward.4} parent=5 // pred_region
      %s175 = ssub.s32 %s9, 1
      %s176 = smul.u32 64, %s18
      %p177 = scmp.lt.s32.totalorder %s176, 127
      %s178 = scalar_select %p177, %s176, 127
      %s179 = smul.addr %s178, 2
      %s180 = smul.addr %s179, 4
      %s181 = scalar_lea.vmem %s0, %s180
      %p182 = pneg %p47
      %p183 = pneg %p44
      %p184 = scmp.lt.s32.totalorder %s19, 0
      %s185 = scalar_select %p184, %s19, 0
      %s186 = smul.addr %s185, 4
      %s187 = scalar_lea.vmem %s1, %s186
      %p188 = pneg %p73
      %p189 = pneg %p70
      %p190 = scmp.lt.s32.totalorder %s19, 0
      %s191 = scalar_select %p190, %s19, 0
      %s192 = scalar_lea.vmem %s2, %s191
      %p193 = pneg %p99
      %p194 = pneg %p96
      %p195 = pneg %p127
      %p196 = pneg %p124
      %s197 = smul.u32 64, %s18
      %p198 = scmp.lt.s32.totalorder %s197, 127
      %s199 = scalar_select %p198, %s197, 127
      %p200 = scmp.lt.s32.totalorder %s19, 0
      %s201 = scalar_select %p200, %s19, 0
      %s202 = sadd.s32 %s201, %s199
      %s203 = smul.addr %s202, 4
      %s204 = scalar_lea.vmem %s3, %s203
      %s205 = smul.u32 64, %s18
      %p206 = scmp.lt.s32.totalorder %s205, 127
      %s207 = scalar_select %p206, %s205, 127
      %s208 = smul.addr %s207, 2
      %s209 = smul.addr %s208, 4
      %s210 = scalar_lea.vmem %s0, %s209
      %s211 = smul.u32 64, %s18
      %p212 = scmp.lt.s32.totalorder %s19, 0
      %s213 = scalar_select %p212, %s19, 0
      %s214 = smul.addr %s213, 4
      %s215 = scalar_lea.vmem %s1, %s214
      %p216 = scmp.lt.s32.totalorder %s19, 0
      %s217 = scalar_select %p216, %s19, 0
      %s218 = scalar_lea.vmem %s2, %s217
      %s219 = smul.u32 64, %s18
      %p220 = scmp.lt.s32.totalorder %s219, 127
      %s221 = scalar_select %p220, %s219, 127
      %p222 = scmp.lt.s32.totalorder %s19, 0
      %s223 = scalar_select %p222, %s19, 0
      %s224 = sadd.s32 %s223, %s221
      %s225 = smul.addr %s224, 4
      %s226 = scalar_lea.vmem %s3, %s225
      %s227 = smul.u32 64, %s18
      %v229 = vld [vmem:[%s210] sm:$0xff]
      %v230 = vld [vmem:[%s210 + $0x8] sm:$0xff]
      %v231 = vld [vmem:[%s210 + $0x10] sm:$0xff]
      %v232 = vld [vmem:[%s210 + $0x18] sm:$0xff]
      %v233 = vld [vmem:[%s210 + $0x20] sm:$0xff]
      %v234 = vld [vmem:[%s210 + $0x28] sm:$0xff]
      %v235 = vld [vmem:[%s210 + $0x30] sm:$0xff]
      %v236 = vld [vmem:[%s210 + $0x38] sm:$0xff]
      %v237 = vld [vmem:[%s210 + $0x40] sm:$0xff]
      %v238 = vld [vmem:[%s210 + $0x48] sm:$0xff]
      %v239 = vld [vmem:[%s210 + $0x50] sm:$0xff]
      %v240 = vld [vmem:[%s210 + $0x58] sm:$0xff]
      %v241 = vld [vmem:[%s210 + $0x60] sm:$0xff]
      %v242 = vld [vmem:[%s210 + $0x68] sm:$0xff]
      %v243 = vld [vmem:[%s210 + $0x70] sm:$0xff]
      %v244 = vld [vmem:[%s210 + $0x78] sm:$0xff]
      %v245 = vld [vmem:[%s210 + $0x80] sm:$0xff]
      %v246 = vld [vmem:[%s210 + $0x88] sm:$0xff]
      %v247 = vld [vmem:[%s210 + $0x90] sm:$0xff]
      %v248 = vld [vmem:[%s210 + $0x98] sm:$0xff]
      %v249 = vld [vmem:[%s210 + $0xa0] sm:$0xff]
      %v250 = vld [vmem:[%s210 + $0xa8] sm:$0xff]
      %v251 = vld [vmem:[%s210 + $0xb0] sm:$0xff]
      %v252 = vld [vmem:[%s210 + $0xb8] sm:$0xff]
      %v253 = vld [vmem:[%s210 + $0xc0] sm:$0xff]
      %v254 = vld [vmem:[%s210 + $0xc8] sm:$0xff]
      %v255 = vld [vmem:[%s210 + $0xd0] sm:$0xff]
      %v256 = vld [vmem:[%s210 + $0xd8] sm:$0xff]
      %v257 = vld [vmem:[%s210 + $0xe0] sm:$0xff]
      %v258 = vld [vmem:[%s210 + $0xe8] sm:$0xff]
      %v259 = vld [vmem:[%s210 + $0xf0] sm:$0xff]
      %v260 = vld [vmem:[%s210 + $0xf8] sm:$0xff]
      %v261 = vld [vmem:[%s210 + $0x100] sm:$0xff]
      %v262 = vld [vmem:[%s210 + $0x108] sm:$0xff]
      %v263 = vld [vmem:[%s210 + $0x110] sm:$0xff]
      %v264 = vld [vmem:[%s210 + $0x118] sm:$0xff]
      %v265 = vld [vmem:[%s210 + $0x120] sm:$0xff]
      %v266 = vld [vmem:[%s210 + $0x128] sm:$0xff]
      %v267 = vld [vmem:[%s210 + $0x130] sm:$0xff]
      %v268 = vld [vmem:[%s210 + $0x138] sm:$0xff]
      %v269 = vld [vmem:[%s210 + $0x140] sm:$0xff]
      %v270 = vld [vmem:[%s210 + $0x148] sm:$0xff]
      %v271 = vld [vmem:[%s210 + $0x150] sm:$0xff]
      %v272 = vld [vmem:[%s210 + $0x158] sm:$0xff]
      %v273 = vld [vmem:[%s210 + $0x160] sm:$0xff]
      %v274 = vld [vmem:[%s210 + $0x168] sm:$0xff]
      %v275 = vld [vmem:[%s210 + $0x170] sm:$0xff]
      %v276 = vld [vmem:[%s210 + $0x178] sm:$0xff]
      %v277 = vld [vmem:[%s210 + $0x180] sm:$0xff]
      %v278 = vld [vmem:[%s210 + $0x188] sm:$0xff]
      %v279 = vld [vmem:[%s210 + $0x190] sm:$0xff]
      %v280 = vld [vmem:[%s210 + $0x198] sm:$0xff]
      %v281 = vld [vmem:[%s210 + $0x1a0] sm:$0xff]
      %v282 = vld [vmem:[%s210 + $0x1a8] sm:$0xff]
      %v283 = vld [vmem:[%s210 + $0x1b0] sm:$0xff]
      %v284 = vld [vmem:[%s210 + $0x1b8] sm:$0xff]
      %v285 = vld [vmem:[%s210 + $0x1c0] sm:$0xff]
      %v286 = vld [vmem:[%s210 + $0x1c8] sm:$0xff]
      %v287 = vld [vmem:[%s210 + $0x1d0] sm:$0xff]
      %v288 = vld [vmem:[%s210 + $0x1d8] sm:$0xff]
      %v289 = vld [vmem:[%s210 + $0x1e0] sm:$0xff]
      %v290 = vld [vmem:[%s210 + $0x1e8] sm:$0xff]
      %v291 = vld [vmem:[%s210 + $0x1f0] sm:$0xff]
      %v292 = vld [vmem:[%s210 + $0x1f8] sm:$0xff]
      %v293 = vld [vmem:[%s215] sm:$0xf]
      %v294 = vld [vmem:[%s215 + $0x4] sm:$0xf]
      %v295 = vld [vmem:[%s215 + $0x8] sm:$0xf]
      %v296 = vld [vmem:[%s215 + $0xc] sm:$0xf]
      %v297 = vld [vmem:[%s215 + $0x10] sm:$0xf]
      %v298 = vld [vmem:[%s215 + $0x14] sm:$0xf]
      %v299 = vld [vmem:[%s215 + $0x18] sm:$0xf]
      %v300 = vld [vmem:[%s215 + $0x1c] sm:$0xf]
      %v301 = vld [vmem:[%s215 + $0x20] sm:$0xf]
      %v302 = vld [vmem:[%s215 + $0x24] sm:$0xf]
      %v303 = vld [vmem:[%s215 + $0x28] sm:$0xf]
      %v304 = vld [vmem:[%s215 + $0x2c] sm:$0xf]
      %v305 = vld [vmem:[%s215 + $0x30] sm:$0xf]
      %v306 = vld [vmem:[%s215 + $0x34] sm:$0xf]
      %v307 = vld [vmem:[%s215 + $0x38] sm:$0xf]
      %v308 = vld [vmem:[%s215 + $0x3c] sm:$0xf]
      %v309 = vld [vmem:[%s215 + $0x40] sm:$0xf]
      %v310 = vld [vmem:[%s215 + $0x44] sm:$0xf]
      %v311 = vld [vmem:[%s215 + $0x48] sm:$0xf]
      %v312 = vld [vmem:[%s215 + $0x4c] sm:$0xf]
      %v313 = vld [vmem:[%s215 + $0x50] sm:$0xf]
      %v314 = vld [vmem:[%s215 + $0x54] sm:$0xf]
      %v315 = vld [vmem:[%s215 + $0x58] sm:$0xf]
      %v316 = vld [vmem:[%s215 + $0x5c] sm:$0xf]
      %v317 = vld [vmem:[%s215 + $0x60] sm:$0xf]
      %v318 = vld [vmem:[%s215 + $0x64] sm:$0xf]
      %v319 = vld [vmem:[%s215 + $0x68] sm:$0xf]
      %v320 = vld [vmem:[%s215 + $0x6c] sm:$0xf]
      %v321 = vld [vmem:[%s215 + $0x70] sm:$0xf]
      %v322 = vld [vmem:[%s215 + $0x74] sm:$0xf]
      %v323 = vld [vmem:[%s215 + $0x78] sm:$0xf]
      %v324 = vld [vmem:[%s215 + $0x7c] sm:$0xf]
      %v325 = vld [vmem:[%s218] sm:$0x1]
      %v327 = vlaneseq
      %v328 = vshrl.u32 %v327, 7
      %v329 = vsub.s32 0, %v328
      %v330 = vrot.slane %v325, %v329
      %v396 = vunpack.c.l.b16 %v229
      %v397 = vunpack.c.h.b16 %v229
      %v398 = vunpack.c.l.b16 %v230
      %v399 = vunpack.c.h.b16 %v230
      %v400 = vunpack.c.l.b16 %v231
      %v401 = vunpack.c.h.b16 %v231
      %v402 = vunpack.c.l.b16 %v232
      %v403 = vunpack.c.h.b16 %v232
      %v404 = vunpack.c.l.b16 %v233
      %v405 = vunpack.c.h.b16 %v233
      %v406 = vunpack.c.l.b16 %v234
      %v407 = vunpack.c.h.b16 %v234
      %v408 = vunpack.c.l.b16 %v235
      %v409 = vunpack.c.h.b16 %v235
      %v410 = vunpack.c.l.b16 %v236
      %v411 = vunpack.c.h.b16 %v236
      %v412 = vunpack.c.l.b16 %v237
      %v413 = vunpack.c.h.b16 %v237
      %v414 = vunpack.c.l.b16 %v238
      %v415 = vunpack.c.h.b16 %v238
      %v416 = vunpack.c.l.b16 %v239
      %v417 = vunpack.c.h.b16 %v239
      %v418 = vunpack.c.l.b16 %v240
      %v419 = vunpack.c.h.b16 %v240
      %v420 = vunpack.c.l.b16 %v241
      %v421 = vunpack.c.h.b16 %v241
      %v422 = vunpack.c.l.b16 %v242
      %v423 = vunpack.c.h.b16 %v242
      %v424 = vunpack.c.l.b16 %v243
      %v425 = vunpack.c.h.b16 %v243
      %v426 = vunpack.c.l.b16 %v244
      %v427 = vunpack.c.h.b16 %v244
      %v428 = vunpack.c.l.b16 %v245
      %v429 = vunpack.c.h.b16 %v245
      %v430 = vunpack.c.l.b16 %v246
      %v431 = vunpack.c.h.b16 %v246
      %v432 = vunpack.c.l.b16 %v247
      %v433 = vunpack.c.h.b16 %v247
      %v434 = vunpack.c.l.b16 %v248
      %v435 = vunpack.c.h.b16 %v248
      %v436 = vunpack.c.l.b16 %v249
      %v437 = vunpack.c.h.b16 %v249
      %v438 = vunpack.c.l.b16 %v250
      %v439 = vunpack.c.h.b16 %v250
      %v440 = vunpack.c.l.b16 %v251
      %v441 = vunpack.c.h.b16 %v251
      %v442 = vunpack.c.l.b16 %v252
      %v443 = vunpack.c.h.b16 %v252
      %v444 = vunpack.c.l.b16 %v253
      %v445 = vunpack.c.h.b16 %v253
      %v446 = vunpack.c.l.b16 %v254
      %v447 = vunpack.c.h.b16 %v254
      %v448 = vunpack.c.l.b16 %v255
      %v449 = vunpack.c.h.b16 %v255
      %v450 = vunpack.c.l.b16 %v256
      %v451 = vunpack.c.h.b16 %v256
      %v452 = vunpack.c.l.b16 %v257
      %v453 = vunpack.c.h.b16 %v257
      %v454 = vunpack.c.l.b16 %v258
      %v455 = vunpack.c.h.b16 %v258
      %v456 = vunpack.c.l.b16 %v259
      %v457 = vunpack.c.h.b16 %v259
      %v458 = vunpack.c.l.b16 %v260
      %v459 = vunpack.c.h.b16 %v260
      %v460 = vunpack.c.l.b16 %v261
      %v461 = vunpack.c.h.b16 %v261
      %v462 = vunpack.c.l.b16 %v262
      %v463 = vunpack.c.h.b16 %v262
      %v464 = vunpack.c.l.b16 %v263
      %v465 = vunpack.c.h.b16 %v263
      %v466 = vunpack.c.l.b16 %v264
      %v467 = vunpack.c.h.b16 %v264
      %v468 = vunpack.c.l.b16 %v265
      %v469 = vunpack.c.h.b16 %v265
      %v470 = vunpack.c.l.b16 %v266
      %v471 = vunpack.c.h.b16 %v266
      %v472 = vunpack.c.l.b16 %v267
      %v473 = vunpack.c.h.b16 %v267
      %v474 = vunpack.c.l.b16 %v268
      %v475 = vunpack.c.h.b16 %v268
      %v476 = vunpack.c.l.b16 %v269
      %v477 = vunpack.c.h.b16 %v269
      %v478 = vunpack.c.l.b16 %v270
      %v479 = vunpack.c.h.b16 %v270
      %v480 = vunpack.c.l.b16 %v271
      %v481 = vunpack.c.h.b16 %v271
      %v482 = vunpack.c.l.b16 %v272
      %v483 = vunpack.c.h.b16 %v272
      %v484 = vunpack.c.l.b16 %v273
      %v485 = vunpack.c.h.b16 %v273
      %v486 = vunpack.c.l.b16 %v274
      %v487 = vunpack.c.h.b16 %v274
      %v488 = vunpack.c.l.b16 %v275
      %v489 = vunpack.c.h.b16 %v275
      %v490 = vunpack.c.l.b16 %v276
      %v491 = vunpack.c.h.b16 %v276
      %v492 = vunpack.c.l.b16 %v277
      %v493 = vunpack.c.h.b16 %v277
      %v494 = vunpack.c.l.b16 %v278
      %v495 = vunpack.c.h.b16 %v278
      %v496 = vunpack.c.l.b16 %v279
      %v497 = vunpack.c.h.b16 %v279
      %v498 = vunpack.c.l.b16 %v280
      %v499 = vunpack.c.h.b16 %v280
      %v500 = vunpack.c.l.b16 %v281
      %v501 = vunpack.c.h.b16 %v281
      %v502 = vunpack.c.l.b16 %v282
      %v503 = vunpack.c.h.b16 %v282
      %v504 = vunpack.c.l.b16 %v283
      %v505 = vunpack.c.h.b16 %v283
      %v506 = vunpack.c.l.b16 %v284
      %v507 = vunpack.c.h.b16 %v284
      %v508 = vunpack.c.l.b16 %v285
      %v509 = vunpack.c.h.b16 %v285
      %v510 = vunpack.c.l.b16 %v286
      %v511 = vunpack.c.h.b16 %v286
      %v512 = vunpack.c.l.b16 %v287
      %v513 = vunpack.c.h.b16 %v287
      %v514 = vunpack.c.l.b16 %v288
      %v515 = vunpack.c.h.b16 %v288
      %v516 = vunpack.c.l.b16 %v289
      %v517 = vunpack.c.h.b16 %v289
      %v518 = vunpack.c.l.b16 %v290
      %v519 = vunpack.c.h.b16 %v290
      %v520 = vunpack.c.l.b16 %v291
      %v521 = vunpack.c.h.b16 %v291
      %v522 = vunpack.c.l.b16 %v292
      %v523 = vunpack.c.h.b16 %v292
      %v524 = vpack.c.b16 %v398, %v396
      %v525 = vpack.c.b16 %v399, %v397
      %v526 = vpack.c.b16 %v402, %v400
      %v527 = vpack.c.b16 %v403, %v401
      %v528 = vpack.c.b16 %v406, %v404
      %v529 = vpack.c.b16 %v407, %v405
      %v530 = vpack.c.b16 %v410, %v408
      %v531 = vpack.c.b16 %v411, %v409
      %v532 = vpack.c.b16 %v414, %v412
      %v533 = vpack.c.b16 %v415, %v413
      %v534 = vpack.c.b16 %v418, %v416
      %v535 = vpack.c.b16 %v419, %v417
      %v536 = vpack.c.b16 %v422, %v420
      %v537 = vpack.c.b16 %v423, %v421
      %v538 = vpack.c.b16 %v426, %v424
      %v539 = vpack.c.b16 %v427, %v425
      %v540 = vpack.c.b16 %v430, %v428
      %v541 = vpack.c.b16 %v431, %v429
      %v542 = vpack.c.b16 %v434, %v432
      %v543 = vpack.c.b16 %v435, %v433
      %v544 = vpack.c.b16 %v438, %v436
      %v545 = vpack.c.b16 %v439, %v437
      %v546 = vpack.c.b16 %v442, %v440
      %v547 = vpack.c.b16 %v443, %v441
      %v548 = vpack.c.b16 %v446, %v444
      %v549 = vpack.c.b16 %v447, %v445
      %v550 = vpack.c.b16 %v450, %v448
      %v551 = vpack.c.b16 %v451, %v449
      %v552 = vpack.c.b16 %v454, %v452
      %v553 = vpack.c.b16 %v455, %v453
      %v554 = vpack.c.b16 %v458, %v456
      %v555 = vpack.c.b16 %v459, %v457
      %v556 = vpack.c.b16 %v462, %v460
      %v557 = vpack.c.b16 %v463, %v461
      %v558 = vpack.c.b16 %v466, %v464
      %v559 = vpack.c.b16 %v467, %v465
      %v560 = vpack.c.b16 %v470, %v468
      %v561 = vpack.c.b16 %v471, %v469
      %v562 = vpack.c.b16 %v474, %v472
      %v563 = vpack.c.b16 %v475, %v473
      %v564 = vpack.c.b16 %v478, %v476
      %v565 = vpack.c.b16 %v479, %v477
      %v566 = vpack.c.b16 %v482, %v480
      %v567 = vpack.c.b16 %v483, %v481
      %v568 = vpack.c.b16 %v486, %v484
      %v569 = vpack.c.b16 %v487, %v485
      %v570 = vpack.c.b16 %v490, %v488
      %v571 = vpack.c.b16 %v491, %v489
      %v572 = vpack.c.b16 %v494, %v492
      %v573 = vpack.c.b16 %v495, %v493
      %v574 = vpack.c.b16 %v498, %v496
      %v575 = vpack.c.b16 %v499, %v497
      %v576 = vpack.c.b16 %v502, %v500
      %v577 = vpack.c.b16 %v503, %v501
      %v578 = vpack.c.b16 %v506, %v504
      %v579 = vpack.c.b16 %v507, %v505
      %v580 = vpack.c.b16 %v510, %v508
      %v581 = vpack.c.b16 %v511, %v509
      %v582 = vpack.c.b16 %v514, %v512
      %v583 = vpack.c.b16 %v515, %v513
      %v584 = vpack.c.b16 %v518, %v516
      %v585 = vpack.c.b16 %v519, %v517
      %v586 = vpack.c.b16 %v522, %v520
      %v587 = vpack.c.b16 %v523, %v521
      %v684 = vunpack.c.l.b16 %v293
      %v685 = vunpack.c.l.b16 %v294
      %v686 = vunpack.c.l.b16 %v295
      %v687 = vunpack.c.l.b16 %v296
      %v688 = vunpack.c.l.b16 %v297
      %v689 = vunpack.c.l.b16 %v298
      %v690 = vunpack.c.l.b16 %v299
      %v691 = vunpack.c.l.b16 %v300
      %v692 = vunpack.c.l.b16 %v301
      %v693 = vunpack.c.l.b16 %v302
      %v694 = vunpack.c.l.b16 %v303
      %v695 = vunpack.c.l.b16 %v304
      %v696 = vunpack.c.l.b16 %v305
      %v697 = vunpack.c.l.b16 %v306
      %v698 = vunpack.c.l.b16 %v307
      %v699 = vunpack.c.l.b16 %v308
      %v700 = vunpack.c.l.b16 %v309
      %v701 = vunpack.c.l.b16 %v310
      %v702 = vunpack.c.l.b16 %v311
      %v703 = vunpack.c.l.b16 %v312
      %v704 = vunpack.c.l.b16 %v313
      %v705 = vunpack.c.l.b16 %v314
      %v706 = vunpack.c.l.b16 %v315
      %v707 = vunpack.c.l.b16 %v316
      %v708 = vunpack.c.l.b16 %v317
      %v709 = vunpack.c.l.b16 %v318
      %v710 = vunpack.c.l.b16 %v319
      %v711 = vunpack.c.l.b16 %v320
      %v712 = vunpack.c.l.b16 %v321
      %v713 = vunpack.c.l.b16 %v322
      %v714 = vunpack.c.l.b16 %v323
      %v715 = vunpack.c.l.b16 %v324
      %v716 = vpack.c.b16 %v685, %v684
      %v717 = vpack.c.b16 %v687, %v686
      %v718 = vpack.c.b16 %v689, %v688
      %v719 = vpack.c.b16 %v691, %v690
      %v720 = vpack.c.b16 %v693, %v692
      %v721 = vpack.c.b16 %v695, %v694
      %v722 = vpack.c.b16 %v697, %v696
      %v723 = vpack.c.b16 %v699, %v698
      %v724 = vpack.c.b16 %v701, %v700
      %v725 = vpack.c.b16 %v703, %v702
      %v726 = vpack.c.b16 %v705, %v704
      %v727 = vpack.c.b16 %v707, %v706
      %v728 = vpack.c.b16 %v709, %v708
      %v729 = vpack.c.b16 %v711, %v710
      %v730 = vpack.c.b16 %v713, %v712
      %v731 = vpack.c.b16 %v715, %v714
      %748 = vmatprep.subr.bf16.mxu0 0
      %749 = vmatpush1.bf16.msra.mxu0 %v716
      %750 = vmatprep.subr.bf16.mxu0 0
      %751 = vmatpush1.bf16.msra.mxu0 %v717
      %752 = vmatprep.subr.bf16.mxu0 0
      %753 = vmatpush1.bf16.msra.mxu0 %v718
      %754 = vmatprep.subr.bf16.mxu0 0
      %755 = vmatpush1.bf16.msra.mxu0 %v719
      %756 = vmatprep.subr.bf16.mxu0 0
      %757 = vmatpush1.bf16.msra.mxu0 %v720
      %758 = vmatprep.subr.bf16.mxu0 0
      %759 = vmatpush1.bf16.msra.mxu0 %v721
      %760 = vmatprep.subr.bf16.mxu0 0
      %761 = vmatpush1.bf16.msra.mxu0 %v722
      %762 = vmatprep.subr.bf16.mxu0 0
      %763 = vmatpush1.bf16.msra.mxu0 %v723
      %764 = vmatprep.subr.bf16.mxu0 0
      %765 = vmatpush1.bf16.msra.mxu0 %v724
      %766 = vmatprep.subr.bf16.mxu0 0
      %767 = vmatpush1.bf16.msra.mxu0 %v725
      %768 = vmatprep.subr.bf16.mxu0 0
      %769 = vmatpush1.bf16.msra.mxu0 %v726
      %770 = vmatprep.subr.bf16.mxu0 0
      %771 = vmatpush1.bf16.msra.mxu0 %v727
      %772 = vmatprep.subr.bf16.mxu0 0
      %773 = vmatpush1.bf16.msra.mxu0 %v728
      %774 = vmatprep.subr.bf16.mxu0 0
      %775 = vmatpush1.bf16.msra.mxu0 %v729
      %776 = vmatprep.subr.bf16.mxu0 0
      %777 = vmatpush1.bf16.msra.mxu0 %v730
      %778 = vmatprep.subr.bf16.mxu0 0
      %779 = vmatpush1.bf16.msra.mxu0 %v731
      %780 = vmatprep.mubr.bf16.mxu0 %v525
      %781 = vmatmul.mubr.bf16.gmra.mrb[0].mxu0 %v524
      %v782 = vpop.f32.mrb[0].mxu0
      %v783 = vadd.f32 %v330, %v782
      %v784 = vpop.f32.mrb[0].mxu0
      %v785 = vpop.f32.mrb[0].mxu0
      %v786 = vadd.f32 %v330, %v785
      %v787 = vpop.f32.mrb[0].mxu0
      %788 = vmatprep.mubr.bf16.mxu0 %v527
      %789 = vmatmul.mubr.bf16.gmra.mrb[0].mxu0 %v526
      %v790 = vpop.f32.mrb[0].mxu0
      %v791 = vadd.f32 %v330, %v790
      %v792 = vpop.f32.mrb[0].mxu0
      %v793 = vpop.f32.mrb[0].mxu0
      %v794 = vadd.f32 %v330, %v793
      %v795 = vpop.f32.mrb[0].mxu0
      %796 = vmatprep.mubr.bf16.mxu0 %v529
      %797 = vmatmul.mubr.bf16.gmra.mrb[0].mxu0 %v528
      %v798 = vpop.f32.mrb[0].mxu0
      %v799 = vadd.f32 %v330, %v798
      %v800 = vpop.f32.mrb[0].mxu0
      %v801 = vpop.f32.mrb[0].mxu0
      %v802 = vadd.f32 %v330, %v801
      %v803 = vpop.f32.mrb[0].mxu0
      %804 = vmatprep.mubr.bf16.mxu0 %v531
      %805 = vmatmul.mubr.bf16.gmra.mrb[0].mxu0 %v530
      %v806 = vpop.f32.mrb[0].mxu0
      %v807 = vadd.f32 %v330, %v806
      %v808 = vpop.f32.mrb[0].mxu0
      %v809 = vpop.f32.mrb[0].mxu0
      %v810 = vadd.f32 %v330, %v809
      %v811 = vpop.f32.mrb[0].mxu0
      %812 = vmatprep.mubr.bf16.mxu0 %v533
      %813 = vmatmul.mubr.bf16.gmra.mrb[0].mxu0 %v532
      %v814 = vpop.f32.mrb[0].mxu0
      %v815 = vadd.f32 %v330, %v814
      %v816 = vpop.f32.mrb[0].mxu0
      %v817 = vpop.f32.mrb[0].mxu0
      %v818 = vadd.f32 %v330, %v817
      %v819 = vpop.f32.mrb[0].mxu0
      %820 = vmatprep.mubr.bf16.mxu0 %v535
      %821 = vmatmul.mubr.bf16.gmra.mrb[0].mxu0 %v534
      %v822 = vpop.f32.mrb[0].mxu0
      %v823 = vadd.f32 %v330, %v822
      %v824 = vpop.f32.mrb[0].mxu0
      %v825 = vpop.f32.mrb[0].mxu0
      %v826 = vadd.f32 %v330, %v825
      %v827 = vpop.f32.mrb[0].mxu0
      %828 = vmatprep.mubr.bf16.mxu0 %v537
      %829 = vmatmul.mubr.bf16.gmra.mrb[0].mxu0 %v536
      %v830 = vpop.f32.mrb[0].mxu0
      %v831 = vadd.f32 %v330, %v830
      %v832 = vpop.f32.mrb[0].mxu0
      %v833 = vpop.f32.mrb[0].mxu0
      %v834 = vadd.f32 %v330, %v833
      %v835 = vpop.f32.mrb[0].mxu0
      %836 = vmatprep.mubr.bf16.mxu0 %v539
      %837 = vmatmul.mubr.bf16.gmra.mrb[0].mxu0 %v538
      %v838 = vpop.f32.mrb[0].mxu0
      %v839 = vadd.f32 %v330, %v838
      %v840 = vpop.f32.mrb[0].mxu0
      %v841 = vpop.f32.mrb[0].mxu0
      %v842 = vadd.f32 %v330, %v841
      %v843 = vpop.f32.mrb[0].mxu0
      %844 = vmatprep.mubr.bf16.mxu0 %v541
      %845 = vmatmul.mubr.bf16.gmra.mrb[0].mxu0 %v540
      %v846 = vpop.f32.mrb[0].mxu0
      %v847 = vadd.f32 %v330, %v846
      %v848 = vpop.f32.mrb[0].mxu0
      %v849 = vpop.f32.mrb[0].mxu0
      %v850 = vadd.f32 %v330, %v849
      %v851 = vpop.f32.mrb[0].mxu0
      %852 = vmatprep.mubr.bf16.mxu0 %v543
      %853 = vmatmul.mubr.bf16.gmra.mrb[0].mxu0 %v542
      %v854 = vpop.f32.mrb[0].mxu0
      %v855 = vadd.f32 %v330, %v854
      %v856 = vpop.f32.mrb[0].mxu0
      %v857 = vpop.f32.mrb[0].mxu0
      %v858 = vadd.f32 %v330, %v857
      %v859 = vpop.f32.mrb[0].mxu0
      %860 = vmatprep.mubr.bf16.mxu0 %v545
      %861 = vmatmul.mubr.bf16.gmra.mrb[0].mxu0 %v544
      %v862 = vpop.f32.mrb[0].mxu0
      %v863 = vadd.f32 %v330, %v862
      %v864 = vpop.f32.mrb[0].mxu0
      %v865 = vpop.f32.mrb[0].mxu0
      %v866 = vadd.f32 %v330, %v865
      %v867 = vpop.f32.mrb[0].mxu0
      %868 = vmatprep.mubr.bf16.mxu0 %v547
      %869 = vmatmul.mubr.bf16.gmra.mrb[0].mxu0 %v546
      %v870 = vpop.f32.mrb[0].mxu0
      %v871 = vadd.f32 %v330, %v870
      %v872 = vpop.f32.mrb[0].mxu0
      %v873 = vpop.f32.mrb[0].mxu0
      %v874 = vadd.f32 %v330, %v873
      %v875 = vpop.f32.mrb[0].mxu0
      %876 = vmatprep.mubr.bf16.mxu0 %v549
      %877 = vmatmul.mubr.bf16.gmra.mrb[0].mxu0 %v548
      %v878 = vpop.f32.mrb[0].mxu0
      %v879 = vadd.f32 %v330, %v878
      %v880 = vpop.f32.mrb[0].mxu0
      %v881 = vpop.f32.mrb[0].mxu0
      %v882 = vadd.f32 %v330, %v881
      %v883 = vpop.f32.mrb[0].mxu0
      %884 = vmatprep.mubr.bf16.mxu0 %v551
      %885 = vmatmul.mubr.bf16.gmra.mrb[0].mxu0 %v550
      %v886 = vpop.f32.mrb[0].mxu0
      %v887 = vadd.f32 %v330, %v886
      %v888 = vpop.f32.mrb[0].mxu0
      %v889 = vpop.f32.mrb[0].mxu0
      %v890 = vadd.f32 %v330, %v889
      %v891 = vpop.f32.mrb[0].mxu0
      %892 = vmatprep.mubr.bf16.mxu0 %v553
      %893 = vmatmul.mubr.bf16.gmra.mrb[0].mxu0 %v552
      %v894 = vpop.f32.mrb[0].mxu0
      %v895 = vadd.f32 %v330, %v894
      %v896 = vpop.f32.mrb[0].mxu0
      %v897 = vpop.f32.mrb[0].mxu0
      %v898 = vadd.f32 %v330, %v897
      %v899 = vpop.f32.mrb[0].mxu0
      %900 = vmatprep.mubr.bf16.mxu0 %v555
      %901 = vmatmul.mubr.bf16.gmra.mrb[0].mxu0 %v554
      %v902 = vpop.f32.mrb[0].mxu0
      %v903 = vadd.f32 %v330, %v902
      %v904 = vpop.f32.mrb[0].mxu0
      %v905 = vpop.f32.mrb[0].mxu0
      %v906 = vadd.f32 %v330, %v905
      %v907 = vpop.f32.mrb[0].mxu0
      %908 = vmatprep.mubr.bf16.mxu0 %v557
      %909 = vmatmul.mubr.bf16.gmra.mrb[0].mxu0 %v556
      %v910 = vpop.f32.mrb[0].mxu0
      %v911 = vadd.f32 %v330, %v910
      %v912 = vpop.f32.mrb[0].mxu0
      %v913 = vpop.f32.mrb[0].mxu0
      %v914 = vadd.f32 %v330, %v913
      %v915 = vpop.f32.mrb[0].mxu0
      %916 = vmatprep.mubr.bf16.mxu0 %v559
      %917 = vmatmul.mubr.bf16.gmra.mrb[0].mxu0 %v558
      %v918 = vpop.f32.mrb[0].mxu0
      %v919 = vadd.f32 %v330, %v918
      %v920 = vpop.f32.mrb[0].mxu0
      %v921 = vpop.f32.mrb[0].mxu0
      %v922 = vadd.f32 %v330, %v921
      %v923 = vpop.f32.mrb[0].mxu0
      %924 = vmatprep.mubr.bf16.mxu0 %v561
      %925 = vmatmul.mubr.bf16.gmra.mrb[0].mxu0 %v560
      %v926 = vpop.f32.mrb[0].mxu0
      %v927 = vadd.f32 %v330, %v926
      %v928 = vpop.f32.mrb[0].mxu0
      %v929 = vpop.f32.mrb[0].mxu0
      %v930 = vadd.f32 %v330, %v929
      %v931 = vpop.f32.mrb[0].mxu0
      %932 = vmatprep.mubr.bf16.mxu0 %v563
      %933 = vmatmul.mubr.bf16.gmra.mrb[0].mxu0 %v562
      %v934 = vpop.f32.mrb[0].mxu0
      %v935 = vadd.f32 %v330, %v934
      %v936 = vpop.f32.mrb[0].mxu0
      %v937 = vpop.f32.mrb[0].mxu0
      %v938 = vadd.f32 %v330, %v937
      %v939 = vpop.f32.mrb[0].mxu0
      %940 = vmatprep.mubr.bf16.mxu0 %v565
      %941 = vmatmul.mubr.bf16.gmra.mrb[0].mxu0 %v564
      %v942 = vpop.f32.mrb[0].mxu0
      %v943 = vadd.f32 %v330, %v942
      %v944 = vpop.f32.mrb[0].mxu0
      %v945 = vpop.f32.mrb[0].mxu0
      %v946 = vadd.f32 %v330, %v945
      %v947 = vpop.f32.mrb[0].mxu0
      %948 = vmatprep.mubr.bf16.mxu0 %v567
      %949 = vmatmul.mubr.bf16.gmra.mrb[0].mxu0 %v566
      %v950 = vpop.f32.mrb[0].mxu0
      %v951 = vadd.f32 %v330, %v950
      %v952 = vpop.f32.mrb[0].mxu0
      %v953 = vpop.f32.mrb[0].mxu0
      %v954 = vadd.f32 %v330, %v953
      %v955 = vpop.f32.mrb[0].mxu0
      %956 = vmatprep.mubr.bf16.mxu0 %v569
      %957 = vmatmul.mubr.bf16.gmra.mrb[0].mxu0 %v568
      %v958 = vpop.f32.mrb[0].mxu0
      %v959 = vadd.f32 %v330, %v958
      %v960 = vpop.f32.mrb[0].mxu0
      %v961 = vpop.f32.mrb[0].mxu0
      %v962 = vadd.f32 %v330, %v961
      %v963 = vpop.f32.mrb[0].mxu0
      %964 = vmatprep.mubr.bf16.mxu0 %v571
      %965 = vmatmul.mubr.bf16.gmra.mrb[0].mxu0 %v570
      %v966 = vpop.f32.mrb[0].mxu0
      %v967 = vadd.f32 %v330, %v966
      %v968 = vpop.f32.mrb[0].mxu0
      %v969 = vpop.f32.mrb[0].mxu0
      %v970 = vadd.f32 %v330, %v969
      %v971 = vpop.f32.mrb[0].mxu0
      %972 = vmatprep.mubr.bf16.mxu0 %v573
      %973 = vmatmul.mubr.bf16.gmra.mrb[0].mxu0 %v572
      %v974 = vpop.f32.mrb[0].mxu0
      %v975 = vadd.f32 %v330, %v974
      %v976 = vpop.f32.mrb[0].mxu0
      %v977 = vpop.f32.mrb[0].mxu0
      %v978 = vadd.f32 %v330, %v977
      %v979 = vpop.f32.mrb[0].mxu0
      %980 = vmatprep.mubr.bf16.mxu0 %v575
      %981 = vmatmul.mubr.bf16.gmra.mrb[0].mxu0 %v574
      %v982 = vpop.f32.mrb[0].mxu0
      %v983 = vadd.f32 %v330, %v982
      %v984 = vpop.f32.mrb[0].mxu0
      %v985 = vpop.f32.mrb[0].mxu0
      %v986 = vadd.f32 %v330, %v985
      %v987 = vpop.f32.mrb[0].mxu0
      %988 = vmatprep.mubr.bf16.mxu0 %v577
      %989 = vmatmul.mubr.bf16.gmra.mrb[0].mxu0 %v576
      %v990 = vpop.f32.mrb[0].mxu0
      %v991 = vadd.f32 %v330, %v990
      %v992 = vpop.f32.mrb[0].mxu0
      %v993 = vpop.f32.mrb[0].mxu0
      %v994 = vadd.f32 %v330, %v993
      %v995 = vpop.f32.mrb[0].mxu0
      %996 = vmatprep.mubr.bf16.mxu0 %v579
      %997 = vmatmul.mubr.bf16.gmra.mrb[0].mxu0 %v578
      %v998 = vpop.f32.mrb[0].mxu0
      %v999 = vadd.f32 %v330, %v998
      %v1000 = vpop.f32.mrb[0].mxu0
      %v1001 = vpop.f32.mrb[0].mxu0
      %v1002 = vadd.f32 %v330, %v1001
      %v1003 = vpop.f32.mrb[0].mxu0
      %1004 = vmatprep.mubr.bf16.mxu0 %v581
      %1005 = vmatmul.mubr.bf16.gmra.mrb[0].mxu0 %v580
      %v1006 = vpop.f32.mrb[0].mxu0
      %v1007 = vadd.f32 %v330, %v1006
      %v1008 = vpop.f32.mrb[0].mxu0
      %v1009 = vpop.f32.mrb[0].mxu0
      %v1010 = vadd.f32 %v330, %v1009
      %v1011 = vpop.f32.mrb[0].mxu0
      %1012 = vmatprep.mubr.bf16.mxu0 %v583
      %1013 = vmatmul.mubr.bf16.gmra.mrb[0].mxu0 %v582
      %v1014 = vpop.f32.mrb[0].mxu0
      %v1015 = vadd.f32 %v330, %v1014
      %v1016 = vpop.f32.mrb[0].mxu0
      %v1017 = vpop.f32.mrb[0].mxu0
      %v1018 = vadd.f32 %v330, %v1017
      %v1019 = vpop.f32.mrb[0].mxu0
      %1020 = vmatprep.mubr.bf16.mxu0 %v585
      %1021 = vmatmul.mubr.bf16.gmra.mrb[0].mxu0 %v584
      %v1022 = vpop.f32.mrb[0].mxu0
      %v1023 = vadd.f32 %v330, %v1022
      %v1024 = vpop.f32.mrb[0].mxu0
      %v1025 = vpop.f32.mrb[0].mxu0
      %v1026 = vadd.f32 %v330, %v1025
      %v1027 = vpop.f32.mrb[0].mxu0
      %1028 = vmatprep.mubr.bf16.mxu0 %v587
      %1029 = vmatmul.mubr.bf16.gmra.mrb[0].mxu0 %v586
      %v1030 = vpop.f32.mrb[0].mxu0
      %v1031 = vadd.f32 %v330, %v1030
      %v1032 = vpop.f32.mrb[0].mxu0
      %v1033 = vpop.f32.mrb[0].mxu0
      %v1034 = vadd.f32 %v330, %v1033
      %v1035 = vpop.f32.mrb[0].mxu0
      %1036 = vdwg.mxu0
      %v1037 = vmax.f32 %v783, 0.0
      %v1038 = vmax.f32 %v786, 0.0
      %v1039 = vmax.f32 %v791, 0.0
      %v1040 = vmax.f32 %v794, 0.0
      %v1041 = vmax.f32 %v799, 0.0
      %v1042 = vmax.f32 %v802, 0.0
      %v1043 = vmax.f32 %v807, 0.0
      %v1044 = vmax.f32 %v810, 0.0
      %v1045 = vmax.f32 %v815, 0.0
      %v1046 = vmax.f32 %v818, 0.0
      %v1047 = vmax.f32 %v823, 0.0
      %v1048 = vmax.f32 %v826, 0.0
      %v1049 = vmax.f32 %v831, 0.0
      %v1050 = vmax.f32 %v834, 0.0
      %v1051 = vmax.f32 %v839, 0.0
      %v1052 = vmax.f32 %v842, 0.0
      %v1053 = vmax.f32 %v847, 0.0
      %v1054 = vmax.f32 %v850, 0.0
      %v1055 = vmax.f32 %v855, 0.0
      %v1056 = vmax.f32 %v858, 0.0
      %v1057 = vmax.f32 %v863, 0.0
      %v1058 = vmax.f32 %v866, 0.0
      %v1059 = vmax.f32 %v871, 0.0
      %v1060 = vmax.f32 %v874, 0.0
      %v1061 = vmax.f32 %v879, 0.0
      %v1062 = vmax.f32 %v882, 0.0
      %v1063 = vmax.f32 %v887, 0.0
      %v1064 = vmax.f32 %v890, 0.0
      %v1065 = vmax.f32 %v895, 0.0
      %v1066 = vmax.f32 %v898, 0.0
      %v1067 = vmax.f32 %v903, 0.0
      %v1068 = vmax.f32 %v906, 0.0
      %v1069 = vmax.f32 %v911, 0.0
      %v1070 = vmax.f32 %v914, 0.0
      %v1071 = vmax.f32 %v919, 0.0
      %v1072 = vmax.f32 %v922, 0.0
      %v1073 = vmax.f32 %v927, 0.0
      %v1074 = vmax.f32 %v930, 0.0
      %v1075 = vmax.f32 %v935, 0.0
      %v1076 = vmax.f32 %v938, 0.0
      %v1077 = vmax.f32 %v943, 0.0
      %v1078 = vmax.f32 %v946, 0.0
      %v1079 = vmax.f32 %v951, 0.0
      %v1080 = vmax.f32 %v954, 0.0
      %v1081 = vmax.f32 %v959, 0.0
      %v1082 = vmax.f32 %v962, 0.0
      %v1083 = vmax.f32 %v967, 0.0
      %v1084 = vmax.f32 %v970, 0.0
      %v1085 = vmax.f32 %v975, 0.0
      %v1086 = vmax.f32 %v978, 0.0
      %v1087 = vmax.f32 %v983, 0.0
      %v1088 = vmax.f32 %v986, 0.0
      %v1089 = vmax.f32 %v991, 0.0
      %v1090 = vmax.f32 %v994, 0.0
      %v1091 = vmax.f32 %v999, 0.0
      %v1092 = vmax.f32 %v1002, 0.0
      %v1093 = vmax.f32 %v1007, 0.0
      %v1094 = vmax.f32 %v1010, 0.0
      %v1095 = vmax.f32 %v1015, 0.0
      %v1096 = vmax.f32 %v1018, 0.0
      %v1097 = vmax.f32 %v1023, 0.0
      %v1098 = vmax.f32 %v1026, 0.0
      %v1099 = vmax.f32 %v1031, 0.0
      %v1100 = vmax.f32 %v1034, 0.0
      %v1101 = vpack.c.bf16 %v1038, %v1037
      %v1102 = vpack.c.bf16 %v1040, %v1039
      %v1103 = vpack.c.bf16 %v1042, %v1041
      %v1104 = vpack.c.bf16 %v1044, %v1043
      %v1105 = vpack.c.bf16 %v1046, %v1045
      %v1106 = vpack.c.bf16 %v1048, %v1047
      %v1107 = vpack.c.bf16 %v1050, %v1049
      %v1108 = vpack.c.bf16 %v1052, %v1051
      %v1109 = vpack.c.bf16 %v1054, %v1053
      %v1110 = vpack.c.bf16 %v1056, %v1055
      %v1111 = vpack.c.bf16 %v1058, %v1057
      %v1112 = vpack.c.bf16 %v1060, %v1059
      %v1113 = vpack.c.bf16 %v1062, %v1061
      %v1114 = vpack.c.bf16 %v1064, %v1063
      %v1115 = vpack.c.bf16 %v1066, %v1065
      %v1116 = vpack.c.bf16 %v1068, %v1067
      %v1117 = vpack.c.bf16 %v1070, %v1069
      %v1118 = vpack.c.bf16 %v1072, %v1071
      %v1119 = vpack.c.bf16 %v1074, %v1073
      %v1120 = vpack.c.bf16 %v1076, %v1075
      %v1121 = vpack.c.bf16 %v1078, %v1077
      %v1122 = vpack.c.bf16 %v1080, %v1079
      %v1123 = vpack.c.bf16 %v1082, %v1081
      %v1124 = vpack.c.bf16 %v1084, %v1083
      %v1125 = vpack.c.bf16 %v1086, %v1085
      %v1126 = vpack.c.bf16 %v1088, %v1087
      %v1127 = vpack.c.bf16 %v1090, %v1089
      %v1128 = vpack.c.bf16 %v1092, %v1091
      %v1129 = vpack.c.bf16 %v1094, %v1093
      %v1130 = vpack.c.bf16 %v1096, %v1095
      %v1131 = vpack.c.bf16 %v1098, %v1097
      %v1132 = vpack.c.bf16 %v1100, %v1099
      %v1165 = vunpack.c.l.b16 %v1101
      %v1166 = vunpack.c.h.b16 %v1101
      %v1167 = vunpack.c.l.b16 %v1102
      %v1168 = vunpack.c.h.b16 %v1102
      %v1169 = vunpack.c.l.b16 %v1103
      %v1170 = vunpack.c.h.b16 %v1103
      %v1171 = vunpack.c.l.b16 %v1104
      %v1172 = vunpack.c.h.b16 %v1104
      %v1173 = vunpack.c.l.b16 %v1105
      %v1174 = vunpack.c.h.b16 %v1105
      %v1175 = vunpack.c.l.b16 %v1106
      %v1176 = vunpack.c.h.b16 %v1106
      %v1177 = vunpack.c.l.b16 %v1107
      %v1178 = vunpack.c.h.b16 %v1107
      %v1179 = vunpack.c.l.b16 %v1108
      %v1180 = vunpack.c.h.b16 %v1108
      %v1181 = vunpack.c.l.b16 %v1109
      %v1182 = vunpack.c.h.b16 %v1109
      %v1183 = vunpack.c.l.b16 %v1110
      %v1184 = vunpack.c.h.b16 %v1110
      %v1185 = vunpack.c.l.b16 %v1111
      %v1186 = vunpack.c.h.b16 %v1111
      %v1187 = vunpack.c.l.b16 %v1112
      %v1188 = vunpack.c.h.b16 %v1112
      %v1189 = vunpack.c.l.b16 %v1113
      %v1190 = vunpack.c.h.b16 %v1113
      %v1191 = vunpack.c.l.b16 %v1114
      %v1192 = vunpack.c.h.b16 %v1114
      %v1193 = vunpack.c.l.b16 %v1115
      %v1194 = vunpack.c.h.b16 %v1115
      %v1195 = vunpack.c.l.b16 %v1116
      %v1196 = vunpack.c.h.b16 %v1116
      %v1197 = vunpack.c.l.b16 %v1117
      %v1198 = vunpack.c.h.b16 %v1117
      %v1199 = vunpack.c.l.b16 %v1118
      %v1200 = vunpack.c.h.b16 %v1118
      %v1201 = vunpack.c.l.b16 %v1119
      %v1202 = vunpack.c.h.b16 %v1119
      %v1203 = vunpack.c.l.b16 %v1120
      %v1204 = vunpack.c.h.b16 %v1120
      %v1205 = vunpack.c.l.b16 %v1121
      %v1206 = vunpack.c.h.b16 %v1121
      %v1207 = vunpack.c.l.b16 %v1122
      %v1208 = vunpack.c.h.b16 %v1122
      %v1209 = vunpack.c.l.b16 %v1123
      %v1210 = vunpack.c.h.b16 %v1123
      %v1211 = vunpack.c.l.b16 %v1124
      %v1212 = vunpack.c.h.b16 %v1124
      %v1213 = vunpack.c.l.b16 %v1125
      %v1214 = vunpack.c.h.b16 %v1125
      %v1215 = vunpack.c.l.b16 %v1126
      %v1216 = vunpack.c.h.b16 %v1126
      %v1217 = vunpack.c.l.b16 %v1127
      %v1218 = vunpack.c.h.b16 %v1127
      %v1219 = vunpack.c.l.b16 %v1128
      %v1220 = vunpack.c.h.b16 %v1128
      %v1221 = vunpack.c.l.b16 %v1129
      %v1222 = vunpack.c.h.b16 %v1129
      %v1223 = vunpack.c.l.b16 %v1130
      %v1224 = vunpack.c.h.b16 %v1130
      %v1225 = vunpack.c.l.b16 %v1131
      %v1226 = vunpack.c.h.b16 %v1131
      %v1227 = vunpack.c.l.b16 %v1132
      %v1228 = vunpack.c.h.b16 %v1132
      %v1229 = vpack.c.b16 %v1165, %v1165
      %v1230 = vpack.c.b16 %v1166, %v1166
      %v1231 = vpack.c.b16 %v1167, %v1167
      %v1232 = vpack.c.b16 %v1168, %v1168
      %v1233 = vpack.c.b16 %v1169, %v1169
      %v1234 = vpack.c.b16 %v1170, %v1170
      %v1235 = vpack.c.b16 %v1171, %v1171
      %v1236 = vpack.c.b16 %v1172, %v1172
      %v1237 = vpack.c.b16 %v1173, %v1173
      %v1238 = vpack.c.b16 %v1174, %v1174
      %v1239 = vpack.c.b16 %v1175, %v1175
      %v1240 = vpack.c.b16 %v1176, %v1176
      %v1241 = vpack.c.b16 %v1177, %v1177
      %v1242 = vpack.c.b16 %v1178, %v1178
      %v1243 = vpack.c.b16 %v1179, %v1179
      %v1244 = vpack.c.b16 %v1180, %v1180
      %v1245 = vpack.c.b16 %v1181, %v1181
      %v1246 = vpack.c.b16 %v1182, %v1182
      %v1247 = vpack.c.b16 %v1183, %v1183
      %v1248 = vpack.c.b16 %v1184, %v1184
      %v1249 = vpack.c.b16 %v1185, %v1185
      %v1250 = vpack.c.b16 %v1186, %v1186
      %v1251 = vpack.c.b16 %v1187, %v1187
      %v1252 = vpack.c.b16 %v1188, %v1188
      %v1253 = vpack.c.b16 %v1189, %v1189
      %v1254 = vpack.c.b16 %v1190, %v1190
      %v1255 = vpack.c.b16 %v1191, %v1191
      %v1256 = vpack.c.b16 %v1192, %v1192
      %v1257 = vpack.c.b16 %v1193, %v1193
      %v1258 = vpack.c.b16 %v1194, %v1194
      %v1259 = vpack.c.b16 %v1195, %v1195
      %v1260 = vpack.c.b16 %v1196, %v1196
      %v1261 = vpack.c.b16 %v1197, %v1197
      %v1262 = vpack.c.b16 %v1198, %v1198
      %v1263 = vpack.c.b16 %v1199, %v1199
      %v1264 = vpack.c.b16 %v1200, %v1200
      %v1265 = vpack.c.b16 %v1201, %v1201
      %v1266 = vpack.c.b16 %v1202, %v1202
      %v1267 = vpack.c.b16 %v1203, %v1203
      %v1268 = vpack.c.b16 %v1204, %v1204
      %v1269 = vpack.c.b16 %v1205, %v1205
      %v1270 = vpack.c.b16 %v1206, %v1206
      %v1271 = vpack.c.b16 %v1207, %v1207
      %v1272 = vpack.c.b16 %v1208, %v1208
      %v1273 = vpack.c.b16 %v1209, %v1209
      %v1274 = vpack.c.b16 %v1210, %v1210
      %v1275 = vpack.c.b16 %v1211, %v1211
      %v1276 = vpack.c.b16 %v1212, %v1212
      %v1277 = vpack.c.b16 %v1213, %v1213
      %v1278 = vpack.c.b16 %v1214, %v1214
      %v1279 = vpack.c.b16 %v1215, %v1215
      %v1280 = vpack.c.b16 %v1216, %v1216
      %v1281 = vpack.c.b16 %v1217, %v1217
      %v1282 = vpack.c.b16 %v1218, %v1218
      %v1283 = vpack.c.b16 %v1219, %v1219
      %v1284 = vpack.c.b16 %v1220, %v1220
      %v1285 = vpack.c.b16 %v1221, %v1221
      %v1286 = vpack.c.b16 %v1222, %v1222
      %v1287 = vpack.c.b16 %v1223, %v1223
      %v1288 = vpack.c.b16 %v1224, %v1224
      %v1289 = vpack.c.b16 %v1225, %v1225
      %v1290 = vpack.c.b16 %v1226, %v1226
      %v1291 = vpack.c.b16 %v1227, %v1227
      %v1292 = vpack.c.b16 %v1228, %v1228
      %1357 = vst [vmem:[%s226] sm:$0xf] %v1229
      %1358 = vst [vmem:[%s226 + $0x4] sm:$0xf] %v1230
      %1359 = vst [vmem:[%s226 + $0x8] sm:$0xf] %v1231
      %1360 = vst [vmem:[%s226 + $0xc] sm:$0xf] %v1232
      %1361 = vst [vmem:[%s226 + $0x10] sm:$0xf] %v1233
      %1362 = vst [vmem:[%s226 + $0x14] sm:$0xf] %v1234
      %1363 = vst [vmem:[%s226 + $0x18] sm:$0xf] %v1235
      %1364 = vst [vmem:[%s226 + $0x1c] sm:$0xf] %v1236
      %1365 = vst [vmem:[%s226 + $0x20] sm:$0xf] %v1237
      %1366 = vst [vmem:[%s226 + $0x24] sm:$0xf] %v1238
      %1367 = vst [vmem:[%s226 + $0x28] sm:$0xf] %v1239
      %1368 = vst [vmem:[%s226 + $0x2c] sm:$0xf] %v1240
      %1369 = vst [vmem:[%s226 + $0x30] sm:$0xf] %v1241
      %1370 = vst [vmem:[%s226 + $0x34] sm:$0xf] %v1242
      %1371 = vst [vmem:[%s226 + $0x38] sm:$0xf] %v1243
      %1372 = vst [vmem:[%s226 + $0x3c] sm:$0xf] %v1244
      %1373 = vst [vmem:[%s226 + $0x40] sm:$0xf] %v1245
      %1374 = vst [vmem:[%s226 + $0x44] sm:$0xf] %v1246
      %1375 = vst [vmem:[%s226 + $0x48] sm:$0xf] %v1247
      %1376 = vst [vmem:[%s226 + $0x4c] sm:$0xf] %v1248
      %1377 = vst [vmem:[%s226 + $0x50] sm:$0xf] %v1249
      %1378 = vst [vmem:[%s226 + $0x54] sm:$0xf] %v1250
      %1379 = vst [vmem:[%s226 + $0x58] sm:$0xf] %v1251
      %1380 = vst [vmem:[%s226 + $0x5c] sm:$0xf] %v1252
      %1381 = vst [vmem:[%s226 + $0x60] sm:$0xf] %v1253
      %1382 = vst [vmem:[%s226 + $0x64] sm:$0xf] %v1254
      %1383 = vst [vmem:[%s226 + $0x68] sm:$0xf] %v1255
      %1384 = vst [vmem:[%s226 + $0x6c] sm:$0xf] %v1256
      %1385 = vst [vmem:[%s226 + $0x70] sm:$0xf] %v1257
      %1386 = vst [vmem:[%s226 + $0x74] sm:$0xf] %v1258
      %1387 = vst [vmem:[%s226 + $0x78] sm:$0xf] %v1259
      %1388 = vst [vmem:[%s226 + $0x7c] sm:$0xf] %v1260
      %1389 = vst [vmem:[%s226 + $0x80] sm:$0xf] %v1261
      %1390 = vst [vmem:[%s226 + $0x84] sm:$0xf] %v1262
      %1391 = vst [vmem:[%s226 + $0x88] sm:$0xf] %v1263
      %1392 = vst [vmem:[%s226 + $0x8c] sm:$0xf] %v1264
      %1393 = vst [vmem:[%s226 + $0x90] sm:$0xf] %v1265
      %1394 = vst [vmem:[%s226 + $0x94] sm:$0xf] %v1266
      %1395 = vst [vmem:[%s226 + $0x98] sm:$0xf] %v1267
      %1396 = vst [vmem:[%s226 + $0x9c] sm:$0xf] %v1268
      %1397 = vst [vmem:[%s226 + $0xa0] sm:$0xf] %v1269
      %1398 = vst [vmem:[%s226 + $0xa4] sm:$0xf] %v1270
      %1399 = vst [vmem:[%s226 + $0xa8] sm:$0xf] %v1271
      %1400 = vst [vmem:[%s226 + $0xac] sm:$0xf] %v1272
      %1401 = vst [vmem:[%s226 + $0xb0] sm:$0xf] %v1273
      %1402 = vst [vmem:[%s226 + $0xb4] sm:$0xf] %v1274
      %1403 = vst [vmem:[%s226 + $0xb8] sm:$0xf] %v1275
      %1404 = vst [vmem:[%s226 + $0xbc] sm:$0xf] %v1276
      %1405 = vst [vmem:[%s226 + $0xc0] sm:$0xf] %v1277
      %1406 = vst [vmem:[%s226 + $0xc4] sm:$0xf] %v1278
      %1407 = vst [vmem:[%s226 + $0xc8] sm:$0xf] %v1279
      %1408 = vst [vmem:[%s226 + $0xcc] sm:$0xf] %v1280
      %1409 = vst [vmem:[%s226 + $0xd0] sm:$0xf] %v1281
      %1410 = vst [vmem:[%s226 + $0xd4] sm:$0xf] %v1282
      %1411 = vst [vmem:[%s226 + $0xd8] sm:$0xf] %v1283
      %1412 = vst [vmem:[%s226 + $0xdc] sm:$0xf] %v1284
      %1413 = vst [vmem:[%s226 + $0xe0] sm:$0xf] %v1285
      %1414 = vst [vmem:[%s226 + $0xe4] sm:$0xf] %v1286
      %1415 = vst [vmem:[%s226 + $0xe8] sm:$0xf] %v1287
      %1416 = vst [vmem:[%s226 + $0xec] sm:$0xf] %v1288
      %1417 = vst [vmem:[%s226 + $0xf0] sm:$0xf] %v1289
      %1418 = vst [vmem:[%s226 + $0xf4] sm:$0xf] %v1290
      %1419 = vst [vmem:[%s226 + $0xf8] sm:$0xf] %v1291
      %1420 = vst [vmem:[%s226 + $0xfc] sm:$0xf] %v1292
      %s1421 = smul.u32 64, %s18
      %p1422 = scmp.lt.s32.totalorder %s1421, 127
      %s1423 = scalar_select %p1422, %s1421, 127
      %p1424 = scmp.lt.s32.totalorder %s19, 0
      %s1425 = scalar_select %p1424, %s19, 0
      %s1426 = sadd.s32 %s1425, %s1423
      %s1427 = smul.addr %s1426, 4
      %s1428 = scalar_lea.vmem %s3, %s1427
      // Predicated region
      $region33: #{deepmind_forward.4} parent=31 // pred_check
        %p1429 = pneg %p124
      $region34: #{deepmind_forward.4} parent=31 // pred_check_branch
        %1431 = sbr.rel (%p1429) target = $region36
      $region35: #{deepmind_forward.4} parent=31 // pred_region
        %s1432 = smul.u32 64, %s18
      $region36: #{deepmind_forward.4} parent=31 // pred_fallthru
        _
    $region32: #{deepmind_forward.4} parent=5 // pred_fallthru
      _
    %p1433 = scmp.le.s32.totalorder 2, %s9
    // Predicated region
    $region37: #{deepmind_forward.4} parent=5 // pred_check
      %p1434 = pneg %p1433
    $region38: #{deepmind_forward.4} parent=5 // pred_check_branch
      %1436 = sbr.rel (%p1434) target = $region40
    $region39: #{deepmind_forward.4} parent=5 // pred_region
      %s1437 = ssub.s32 %s9, 2
      // Predicated region
      $region41: #{deepmind_forward.4} parent=39 // pred_check
        %p1438 = pneg %p130
      $region42: #{deepmind_forward.4} parent=39 // pred_check_branch
        %1440 = sbr.rel (%p1438) target = $region44
      $region43: #{deepmind_forward.4} parent=39 // pred_region
        %s1441 = smul.u32 64, %s20
        %p1442 = scmp.lt.s32.totalorder %s1441, 127
        %s1443 = scalar_select %p1442, %s1441, 127
        %p1444 = scmp.lt.s32.totalorder %s21, 0
        %s1445 = scalar_select %p1444, %s21, 0
        %s1446 = sadd.s32 %s1445, %s1443
        %s1447 = smul.addr %s1446, 4
        %s1448 = scalar_lea.vmem %s3, %s1447
      $region44: #{deepmind_forward.4} parent=39 // pred_fallthru
        _
    $region40: #{deepmind_forward.4} parent=5 // pred_fallthru
      _
  $region6: #{deepmind_forward.4} parent=0 // loop_footer
    %s13 = sadd.s32 1, %s9
  $region7: #{deepmind_forward.4} parent=0 // loop_footer_branch
    %8 = sbr.rel target = $region3
  $region8: #{deepmind_forward.4} parent=0 // loop_exit
    _

// kernel: deepmind_forward.5
$region0: #{deepmind_forward.5}
  #allocation0 [shape = 'u32[]', space=smem, size = 0x4, offset = 0x4, fixed_abs, tag = 'smem constant byte address 0x4 - core index']
  #allocation1 [shape = 'u32[144,128]{1,0:T(1,128)}', space=vmem, size = 0x12000, scoped, tag = 'internal scratch']
  %s0 = inlined_call_operand.vmem [shape: bf16[176,512], index: 0, kind: input, shape index: {}]
  %s1 = inlined_call_operand.vmem [shape: bf16[512,128], index: 1, kind: input, shape index: {}]
  %s2 = inlined_call_operand.vmem [shape: f32[1,128], index: 2, kind: input, shape index: {}]
  %s3 = inlined_call_operand.vmem [shape: bf16[176,128], index: 3, kind: output, shape index: {}]
  %s4 = sld [smem:[#allocation0]]
  $region22: #{deepmind_forward.5} parent=0
    _
  %s6 = ssub.s32 1, %s4
  %s7 = scalar_select 0, %s6, %s4
  // Predicated region
  $region2: #{deepmind_forward.5} parent=0 // pred_check
    _
  $region3: #{deepmind_forward.5} parent=0 // pred_check_branch
    %9 = sbr.rel (0) target = $region5
  $region4: #{deepmind_forward.5} parent=0 // pred_region
    _
  $region5: #{deepmind_forward.5} parent=0 // pred_fallthru
    _
  // Predicated region
  $region6: #{deepmind_forward.5} parent=0 // pred_check
    _
  $region7: #{deepmind_forward.5} parent=0 // pred_check_branch
    %11 = sbr.rel (0) target = $region9
  $region8: #{deepmind_forward.5} parent=0 // pred_region
    _
  $region9: #{deepmind_forward.5} parent=0 // pred_fallthru
    _
  // Predicated region
  $region10: #{deepmind_forward.5} parent=0 // pred_check
    _
  $region11: #{deepmind_forward.5} parent=0 // pred_check_branch
    %13 = sbr.rel (0) target = $region13
  $region12: #{deepmind_forward.5} parent=0 // pred_region
    _
  $region13: #{deepmind_forward.5} parent=0 // pred_fallthru
    _
  %v15 = vld [vmem:[%s0] sm:$0xff]
  %v16 = vld [vmem:[%s0 + $0x8] sm:$0xff]
  %v17 = vld [vmem:[%s0 + $0x10] sm:$0xff]
  %v18 = vld [vmem:[%s0 + $0x18] sm:$0xff]
  %v19 = vld [vmem:[%s0 + $0x20] sm:$0xff]
  %v20 = vld [vmem:[%s0 + $0x28] sm:$0xff]
  %v21 = vld [vmem:[%s0 + $0x30] sm:$0xff]
  %v22 = vld [vmem:[%s0 + $0x38] sm:$0xff]
  %v23 = vld [vmem:[%s0 + $0x40] sm:$0xff]
  %v24 = vld [vmem:[%s0 + $0x48] sm:$0xff]
  %v25 = vld [vmem:[%s0 + $0x50] sm:$0xff]
  %v26 = vld [vmem:[%s0 + $0x58] sm:$0xff]
  %v27 = vld [vmem:[%s0 + $0x60] sm:$0xff]
  %v28 = vld [vmem:[%s0 + $0x68] sm:$0xff]
  %v29 = vld [vmem:[%s0 + $0x70] sm:$0xff]
  %v30 = vld [vmem:[%s0 + $0x78] sm:$0xff]
  %v31 = vld [vmem:[%s0 + $0x80] sm:$0xff]
  %v32 = vld [vmem:[%s0 + $0x88] sm:$0xff]
  %v33 = vld [vmem:[%s0 + $0x90] sm:$0xff]
  %v34 = vld [vmem:[%s0 + $0x98] sm:$0xff]
  %v35 = vld [vmem:[%s0 + $0xa0] sm:$0xff]
  %v36 = vld [vmem:[%s0 + $0xa8] sm:$0xff]
  %v37 = vld [vmem:[%s0 + $0xb0] sm:$0xff]
  %v38 = vld [vmem:[%s0 + $0xb8] sm:$0xff]
  %v39 = vld [vmem:[%s0 + $0xc0] sm:$0xff]
  %v40 = vld [vmem:[%s0 + $0xc8] sm:$0xff]
  %v41 = vld [vmem:[%s0 + $0xd0] sm:$0xff]
  %v42 = vld [vmem:[%s0 + $0xd8] sm:$0xff]
  %v43 = vld [vmem:[%s0 + $0xe0] sm:$0xff]
  %v44 = vld [vmem:[%s0 + $0xe8] sm:$0xff]
  %v45 = vld [vmem:[%s0 + $0xf0] sm:$0xff]
  %v46 = vld [vmem:[%s0 + $0xf8] sm:$0xff]
  %v47 = vld [vmem:[%s0 + $0x100] sm:$0xff]
  %v48 = vld [vmem:[%s0 + $0x108] sm:$0xff]
  %v49 = vld [vmem:[%s0 + $0x110] sm:$0xff]
  %v50 = vld [vmem:[%s0 + $0x118] sm:$0xff]
  %v51 = vld [vmem:[%s0 + $0x120] sm:$0xff]
  %v52 = vld [vmem:[%s0 + $0x128] sm:$0xff]
  %v53 = vld [vmem:[%s0 + $0x130] sm:$0xff]
  %v54 = vld [vmem:[%s0 + $0x138] sm:$0xff]
  %v55 = vld [vmem:[%s0 + $0x140] sm:$0xff]
  %v56 = vld [vmem:[%s0 + $0x148] sm:$0xff]
  %v57 = vld [vmem:[%s0 + $0x150] sm:$0xff]
  %v58 = vld [vmem:[%s0 + $0x158] sm:$0xff]
  %v59 = vld [vmem:[%s1] sm:$0xf]
  %v60 = vld [vmem:[%s1 + $0x4] sm:$0xf]
  %v61 = vld [vmem:[%s1 + $0x8] sm:$0xf]
  %v62 = vld [vmem:[%s1 + $0xc] sm:$0xf]
  %v63 = vld [vmem:[%s1 + $0x10] sm:$0xf]
  %v64 = vld [vmem:[%s1 + $0x14] sm:$0xf]
  %v65 = vld [vmem:[%s1 + $0x18] sm:$0xf]
  %v66 = vld [vmem:[%s1 + $0x1c] sm:$0xf]
  %v67 = vld [vmem:[%s1 + $0x20] sm:$0xf]
  %v68 = vld [vmem:[%s1 + $0x24] sm:$0xf]
  %v69 = vld [vmem:[%s1 + $0x28] sm:$0xf]
  %v70 = vld [vmem:[%s1 + $0x2c] sm:$0xf]
  %v71 = vld [vmem:[%s1 + $0x30] sm:$0xf]
  %v72 = vld [vmem:[%s1 + $0x34] sm:$0xf]
  %v73 = vld [vmem:[%s1 + $0x38] sm:$0xf]
  %v74 = vld [vmem:[%s1 + $0x3c] sm:$0xf]
  %v75 = vld [vmem:[%s1 + $0x40] sm:$0xf]
  %v76 = vld [vmem:[%s1 + $0x44] sm:$0xf]
  %v77 = vld [vmem:[%s1 + $0x48] sm:$0xf]
  %v78 = vld [vmem:[%s1 + $0x4c] sm:$0xf]
  %v79 = vld [vmem:[%s1 + $0x50] sm:$0xf]
  %v80 = vld [vmem:[%s1 + $0x54] sm:$0xf]
  %v81 = vld [vmem:[%s1 + $0x58] sm:$0xf]
  %v82 = vld [vmem:[%s1 + $0x5c] sm:$0xf]
  %v83 = vld [vmem:[%s1 + $0x60] sm:$0xf]
  %v84 = vld [vmem:[%s1 + $0x64] sm:$0xf]
  %v85 = vld [vmem:[%s1 + $0x68] sm:$0xf]
  %v86 = vld [vmem:[%s1 + $0x6c] sm:$0xf]
  %v87 = vld [vmem:[%s1 + $0x70] sm:$0xf]
  %v88 = vld [vmem:[%s1 + $0x74] sm:$0xf]
  %v89 = vld [vmem:[%s1 + $0x78] sm:$0xf]
  %v90 = vld [vmem:[%s1 + $0x7c] sm:$0xf]
  %v91 = vld [vmem:[%s1 + $0x80] sm:$0xf]
  %v92 = vld [vmem:[%s1 + $0x84] sm:$0xf]
  %v93 = vld [vmem:[%s1 + $0x88] sm:$0xf]
  %v94 = vld [vmem:[%s1 + $0x8c] sm:$0xf]
  %v95 = vld [vmem:[%s1 + $0x90] sm:$0xf]
  %v96 = vld [vmem:[%s1 + $0x94] sm:$0xf]
  %v97 = vld [vmem:[%s1 + $0x98] sm:$0xf]
  %v98 = vld [vmem:[%s1 + $0x9c] sm:$0xf]
  %v99 = vld [vmem:[%s1 + $0xa0] sm:$0xf]
  %v100 = vld [vmem:[%s1 + $0xa4] sm:$0xf]
  %v101 = vld [vmem:[%s1 + $0xa8] sm:$0xf]
  %v102 = vld [vmem:[%s1 + $0xac] sm:$0xf]
  %v103 = vld [vmem:[%s1 + $0xb0] sm:$0xf]
  %v104 = vld [vmem:[%s1 + $0xb4] sm:$0xf]
  %v105 = vld [vmem:[%s1 + $0xb8] sm:$0xf]
  %v106 = vld [vmem:[%s1 + $0xbc] sm:$0xf]
  %v107 = vld [vmem:[%s1 + $0xc0] sm:$0xf]
  %v108 = vld [vmem:[%s1 + $0xc4] sm:$0xf]
  %v109 = vld [vmem:[%s1 + $0xc8] sm:$0xf]
  %v110 = vld [vmem:[%s1 + $0xcc] sm:$0xf]
  %v111 = vld [vmem:[%s1 + $0xd0] sm:$0xf]
  %v112 = vld [vmem:[%s1 + $0xd4] sm:$0xf]
  %v113 = vld [vmem:[%s1 + $0xd8] sm:$0xf]
  %v114 = vld [vmem:[%s1 + $0xdc] sm:$0xf]
  %v115 = vld [vmem:[%s1 + $0xe0] sm:$0xf]
  %v116 = vld [vmem:[%s1 + $0xe4] sm:$0xf]
  %v117 = vld [vmem:[%s1 + $0xe8] sm:$0xf]
  %v118 = vld [vmem:[%s1 + $0xec] sm:$0xf]
  %v119 = vld [vmem:[%s1 + $0xf0] sm:$0xf]
  %v120 = vld [vmem:[%s1 + $0xf4] sm:$0xf]
  %v121 = vld [vmem:[%s1 + $0xf8] sm:$0xf]
  %v122 = vld [vmem:[%s1 + $0xfc] sm:$0xf]
  %v123 = vld [vmem:[%s2] sm:$0x1]
  %v125 = vlaneseq
  %v126 = vshrl.u32 %v125, 7
  %v127 = vsub.s32 0, %v126
  %v128 = vrot.slane %v123, %v127
  %v174 = vunpack.c.l.b16 %v15
  %v175 = vunpack.c.h.b16 %v15
  %v176 = vunpack.c.l.b16 %v16
  %v177 = vunpack.c.h.b16 %v16
  %v178 = vunpack.c.l.b16 %v17
  %v179 = vunpack.c.h.b16 %v17
  %v180 = vunpack.c.l.b16 %v18
  %v181 = vunpack.c.h.b16 %v18
  %v182 = vunpack.c.l.b16 %v19
  %v183 = vunpack.c.h.b16 %v19
  %v184 = vunpack.c.l.b16 %v20
  %v185 = vunpack.c.h.b16 %v20
  %v186 = vunpack.c.l.b16 %v21
  %v187 = vunpack.c.h.b16 %v21
  %v188 = vunpack.c.l.b16 %v22
  %v189 = vunpack.c.h.b16 %v22
  %v190 = vunpack.c.l.b16 %v23
  %v191 = vunpack.c.h.b16 %v23
  %v192 = vunpack.c.l.b16 %v24
  %v193 = vunpack.c.h.b16 %v24
  %v194 = vunpack.c.l.b16 %v25
  %v195 = vunpack.c.h.b16 %v25
  %v196 = vunpack.c.l.b16 %v26
  %v197 = vunpack.c.h.b16 %v26
  %v198 = vunpack.c.l.b16 %v27
  %v199 = vunpack.c.h.b16 %v27
  %v200 = vunpack.c.l.b16 %v28
  %v201 = vunpack.c.h.b16 %v28
  %v202 = vunpack.c.l.b16 %v29
  %v203 = vunpack.c.h.b16 %v29
  %v204 = vunpack.c.l.b16 %v30
  %v205 = vunpack.c.h.b16 %v30
  %v206 = vunpack.c.l.b16 %v31
  %v207 = vunpack.c.h.b16 %v31
  %v208 = vunpack.c.l.b16 %v32
  %v209 = vunpack.c.h.b16 %v32
  %v210 = vunpack.c.l.b16 %v33
  %v211 = vunpack.c.h.b16 %v33
  %v212 = vunpack.c.l.b16 %v34
  %v213 = vunpack.c.h.b16 %v34
  %v214 = vunpack.c.l.b16 %v35
  %v215 = vunpack.c.h.b16 %v35
  %v216 = vunpack.c.l.b16 %v36
  %v217 = vunpack.c.h.b16 %v36
  %v218 = vunpack.c.l.b16 %v37
  %v219 = vunpack.c.h.b16 %v37
  %v220 = vunpack.c.l.b16 %v38
  %v221 = vunpack.c.h.b16 %v38
  %v222 = vunpack.c.l.b16 %v39
  %v223 = vunpack.c.h.b16 %v39
  %v224 = vunpack.c.l.b16 %v40
  %v225 = vunpack.c.h.b16 %v40
  %v226 = vunpack.c.l.b16 %v41
  %v227 = vunpack.c.h.b16 %v41
  %v228 = vunpack.c.l.b16 %v42
  %v229 = vunpack.c.h.b16 %v42
  %v230 = vunpack.c.l.b16 %v43
  %v231 = vunpack.c.h.b16 %v43
  %v232 = vunpack.c.l.b16 %v44
  %v233 = vunpack.c.h.b16 %v44
  %v234 = vunpack.c.l.b16 %v45
  %v235 = vunpack.c.h.b16 %v45
  %v236 = vunpack.c.l.b16 %v46
  %v237 = vunpack.c.h.b16 %v46
  %v238 = vunpack.c.l.b16 %v47
  %v239 = vunpack.c.h.b16 %v47
  %v240 = vunpack.c.l.b16 %v48
  %v241 = vunpack.c.h.b16 %v48
  %v242 = vunpack.c.l.b16 %v49
  %v243 = vunpack.c.h.b16 %v49
  %v244 = vunpack.c.l.b16 %v50
  %v245 = vunpack.c.h.b16 %v50
  %v246 = vunpack.c.l.b16 %v51
  %v247 = vunpack.c.h.b16 %v51
  %v248 = vunpack.c.l.b16 %v52
  %v249 = vunpack.c.h.b16 %v52
  %v250 = vunpack.c.l.b16 %v53
  %v251 = vunpack.c.h.b16 %v53
  %v252 = vunpack.c.l.b16 %v54
  %v253 = vunpack.c.h.b16 %v54
  %v254 = vunpack.c.l.b16 %v55
  %v255 = vunpack.c.h.b16 %v55
  %v256 = vunpack.c.l.b16 %v56
  %v257 = vunpack.c.h.b16 %v56
  %v258 = vunpack.c.l.b16 %v57
  %v259 = vunpack.c.h.b16 %v57
  %v260 = vunpack.c.l.b16 %v58
  %v261 = vunpack.c.h.b16 %v58
  %v262 = vpack.c.b16 %v178, %v174
  %v263 = vpack.c.b16 %v179, %v175
  %v264 = vpack.c.b16 %v180, %v176
  %v265 = vpack.c.b16 %v181, %v177
  %v266 = vpack.c.b16 %v186, %v182
  %v267 = vpack.c.b16 %v187, %v183
  %v268 = vpack.c.b16 %v188, %v184
  %v269 = vpack.c.b16 %v189, %v185
  %v270 = vpack.c.b16 %v194, %v190
  %v271 = vpack.c.b16 %v195, %v191
  %v272 = vpack.c.b16 %v196, %v192
  %v273 = vpack.c.b16 %v197, %v193
  %v274 = vpack.c.b16 %v202, %v198
  %v275 = vpack.c.b16 %v203, %v199
  %v276 = vpack.c.b16 %v204, %v200
  %v277 = vpack.c.b16 %v205, %v201
  %v278 = vpack.c.b16 %v210, %v206
  %v279 = vpack.c.b16 %v211, %v207
  %v280 = vpack.c.b16 %v212, %v208
  %v281 = vpack.c.b16 %v213, %v209
  %v282 = vpack.c.b16 %v218, %v214
  %v283 = vpack.c.b16 %v219, %v215
  %v284 = vpack.c.b16 %v220, %v216
  %v285 = vpack.c.b16 %v221, %v217
  %v286 = vpack.c.b16 %v226, %v222
  %v287 = vpack.c.b16 %v227, %v223
  %v288 = vpack.c.b16 %v228, %v224
  %v289 = vpack.c.b16 %v229, %v225
  %v290 = vpack.c.b16 %v234, %v230
  %v291 = vpack.c.b16 %v235, %v231
  %v292 = vpack.c.b16 %v236, %v232
  %v293 = vpack.c.b16 %v237, %v233
  %v294 = vpack.c.b16 %v242, %v238
  %v295 = vpack.c.b16 %v243, %v239
  %v296 = vpack.c.b16 %v244, %v240
  %v297 = vpack.c.b16 %v245, %v241
  %v298 = vpack.c.b16 %v250, %v246
  %v299 = vpack.c.b16 %v251, %v247
  %v300 = vpack.c.b16 %v252, %v248
  %v301 = vpack.c.b16 %v253, %v249
  %v302 = vpack.c.b16 %v258, %v254
  %v303 = vpack.c.b16 %v259, %v255
  %v304 = vpack.c.b16 %v260, %v256
  %v305 = vpack.c.b16 %v261, %v257
  %v414 = vunpack.c.l.b16 %v59
  %v415 = vunpack.c.l.b16 %v60
  %v416 = vunpack.c.l.b16 %v61
  %v417 = vunpack.c.l.b16 %v62
  %v418 = vunpack.c.l.b16 %v63
  %v419 = vunpack.c.l.b16 %v64
  %v420 = vunpack.c.l.b16 %v65
  %v421 = vunpack.c.l.b16 %v66
  %v422 = vunpack.c.l.b16 %v67
  %v423 = vunpack.c.l.b16 %v68
  %v424 = vunpack.c.l.b16 %v69
  %v425 = vunpack.c.l.b16 %v70
  %v426 = vunpack.c.l.b16 %v71
  %v427 = vunpack.c.l.b16 %v72
  %v428 = vunpack.c.l.b16 %v73
  %v429 = vunpack.c.l.b16 %v74
  %v430 = vunpack.c.l.b16 %v75
  %v431 = vunpack.c.l.b16 %v76
  %v432 = vunpack.c.l.b16 %v77
  %v433 = vunpack.c.l.b16 %v78
  %v434 = vunpack.c.l.b16 %v79
  %v435 = vunpack.c.l.b16 %v80
  %v436 = vunpack.c.l.b16 %v81
  %v437 = vunpack.c.l.b16 %v82
  %v438 = vunpack.c.l.b16 %v83
  %v439 = vunpack.c.l.b16 %v84
  %v440 = vunpack.c.l.b16 %v85
  %v441 = vunpack.c.l.b16 %v86
  %v442 = vunpack.c.l.b16 %v87
  %v443 = vunpack.c.l.b16 %v88
  %v444 = vunpack.c.l.b16 %v89
  %v445 = vunpack.c.l.b16 %v90
  %v446 = vunpack.c.l.b16 %v91
  %v447 = vunpack.c.l.b16 %v92
  %v448 = vunpack.c.l.b16 %v93
  %v449 = vunpack.c.l.b16 %v94
  %v450 = vunpack.c.l.b16 %v95
  %v451 = vunpack.c.l.b16 %v96
  %v452 = vunpack.c.l.b16 %v97
  %v453 = vunpack.c.l.b16 %v98
  %v454 = vunpack.c.l.b16 %v99
  %v455 = vunpack.c.l.b16 %v100
  %v456 = vunpack.c.l.b16 %v101
  %v457 = vunpack.c.l.b16 %v102
  %v458 = vunpack.c.l.b16 %v103
  %v459 = vunpack.c.l.b16 %v104
  %v460 = vunpack.c.l.b16 %v105
  %v461 = vunpack.c.l.b16 %v106
  %v462 = vunpack.c.l.b16 %v107
  %v463 = vunpack.c.l.b16 %v108
  %v464 = vunpack.c.l.b16 %v109
  %v465 = vunpack.c.l.b16 %v110
  %v466 = vunpack.c.l.b16 %v111
  %v467 = vunpack.c.l.b16 %v112
  %v468 = vunpack.c.l.b16 %v113
  %v469 = vunpack.c.l.b16 %v114
  %v470 = vunpack.c.l.b16 %v115
  %v471 = vunpack.c.l.b16 %v116
  %v472 = vunpack.c.l.b16 %v117
  %v473 = vunpack.c.l.b16 %v118
  %v474 = vunpack.c.l.b16 %v119
  %v475 = vunpack.c.l.b16 %v120
  %v476 = vunpack.c.l.b16 %v121
  %v477 = vunpack.c.l.b16 %v122
  %v478 = vpack.c.b16 %v415, %v414
  %v479 = vpack.c.b16 %v417, %v416
  %v480 = vpack.c.b16 %v419, %v418
  %v481 = vpack.c.b16 %v421, %v420
  %v482 = vpack.c.b16 %v423, %v422
  %v483 = vpack.c.b16 %v425, %v424
  %v484 = vpack.c.b16 %v427, %v426
  %v485 = vpack.c.b16 %v429, %v428
  %v486 = vpack.c.b16 %v431, %v430
  %v487 = vpack.c.b16 %v433, %v432
  %v488 = vpack.c.b16 %v435, %v434
  %v489 = vpack.c.b16 %v437, %v436
  %v490 = vpack.c.b16 %v439, %v438
  %v491 = vpack.c.b16 %v441, %v440
  %v492 = vpack.c.b16 %v443, %v442
  %v493 = vpack.c.b16 %v445, %v444
  %v494 = vpack.c.b16 %v447, %v446
  %v495 = vpack.c.b16 %v449, %v448
  %v496 = vpack.c.b16 %v451, %v450
  %v497 = vpack.c.b16 %v453, %v452
  %v498 = vpack.c.b16 %v455, %v454
  %v499 = vpack.c.b16 %v457, %v456
  %v500 = vpack.c.b16 %v459, %v458
  %v501 = vpack.c.b16 %v461, %v460
  %v502 = vpack.c.b16 %v463, %v462
  %v503 = vpack.c.b16 %v465, %v464
  %v504 = vpack.c.b16 %v467, %v466
  %v505 = vpack.c.b16 %v469, %v468
  %v506 = vpack.c.b16 %v471, %v470
  %v507 = vpack.c.b16 %v473, %v472
  %v508 = vpack.c.b16 %v475, %v474
  %v509 = vpack.c.b16 %v477, %v476
  %542 = vmatprep.subr.bf16.mxu0 0
  %543 = vmatpush1.bf16.msra.mxu0 %v478
  %544 = vmatprep.subr.bf16.mxu0 0
  %545 = vmatpush1.bf16.msra.mxu0 %v479
  %546 = vmatprep.subr.bf16.mxu0 0
  %547 = vmatpush1.bf16.msra.mxu0 %v480
  %548 = vmatprep.subr.bf16.mxu0 0
  %549 = vmatpush1.bf16.msra.mxu0 %v481
  %550 = vmatprep.subr.bf16.mxu0 0
  %551 = vmatpush1.bf16.msra.mxu0 %v482
  %552 = vmatprep.subr.bf16.mxu0 0
  %553 = vmatpush1.bf16.msra.mxu0 %v483
  %554 = vmatprep.subr.bf16.mxu0 0
  %555 = vmatpush1.bf16.msra.mxu0 %v484
  %556 = vmatprep.subr.bf16.mxu0 0
  %557 = vmatpush1.bf16.msra.mxu0 %v485
  %558 = vmatprep.subr.bf16.mxu0 0
  %559 = vmatpush1.bf16.msra.mxu0 %v486
  %560 = vmatprep.subr.bf16.mxu0 0
  %561 = vmatpush1.bf16.msra.mxu0 %v487
  %562 = vmatprep.subr.bf16.mxu0 0
  %563 = vmatpush1.bf16.msra.mxu0 %v488
  %564 = vmatprep.subr.bf16.mxu0 0
  %565 = vmatpush1.bf16.msra.mxu0 %v489
  %566 = vmatprep.subr.bf16.mxu0 0
  %567 = vmatpush1.bf16.msra.mxu0 %v490
  %568 = vmatprep.subr.bf16.mxu0 0
  %569 = vmatpush1.bf16.msra.mxu0 %v491
  %570 = vmatprep.subr.bf16.mxu0 0
  %571 = vmatpush1.bf16.msra.mxu0 %v492
  %572 = vmatprep.subr.bf16.mxu0 0
  %573 = vmatpush1.bf16.msra.mxu0 %v493
  %574 = vmatprep.mubr.bf16.mxu0 %v263
  %575 = vmatmul.mubr.bf16.gmra.mrb[0].mxu0 %v262
  %v576 = vpop.f32.mrb[0].mxu0
  %v577 = vadd.f32 %v128, %v576
  %v578 = vpop.f32.mrb[0].mxu0
  %v579 = vpop.f32.mrb[0].mxu0
  %v580 = vadd.f32 %v128, %v579
  %v581 = vpop.f32.mrb[0].mxu0
  %582 = vmatprep.mubr.bf16.mxu0 %v267
  %583 = vmatmul.mubr.bf16.gmra.mrb[0].mxu0 %v266
  %v584 = vpop.f32.mrb[0].mxu0
  %v585 = vadd.f32 %v128, %v584
  %v586 = vpop.f32.mrb[0].mxu0
  %v587 = vpop.f32.mrb[0].mxu0
  %v588 = vadd.f32 %v128, %v587
  %v589 = vpop.f32.mrb[0].mxu0
  %590 = vmatprep.mubr.bf16.mxu0 %v271
  %591 = vmatmul.mubr.bf16.gmra.mrb[0].mxu0 %v270
  %v592 = vpop.f32.mrb[0].mxu0
  %v593 = vadd.f32 %v128, %v592
  %v594 = vpop.f32.mrb[0].mxu0
  %v595 = vpop.f32.mrb[0].mxu0
  %v596 = vadd.f32 %v128, %v595
  %v597 = vpop.f32.mrb[0].mxu0
  %598 = vmatprep.mubr.bf16.mxu0 %v275
  %599 = vmatmul.mubr.bf16.gmra.mrb[0].mxu0 %v274
  %v600 = vpop.f32.mrb[0].mxu0
  %v601 = vadd.f32 %v128, %v600
  %v602 = vpop.f32.mrb[0].mxu0
  %v603 = vpop.f32.mrb[0].mxu0
  %v604 = vadd.f32 %v128, %v603
  %v605 = vpop.f32.mrb[0].mxu0
  %606 = vmatprep.mubr.bf16.mxu0 %v279
  %607 = vmatmul.mubr.bf16.gmra.mrb[0].mxu0 %v278
  %v608 = vpop.f32.mrb[0].mxu0
  %v609 = vadd.f32 %v128, %v608
  %v610 = vpop.f32.mrb[0].mxu0
  %v611 = vpop.f32.mrb[0].mxu0
  %v612 = vadd.f32 %v128, %v611
  %v613 = vpop.f32.mrb[0].mxu0
  %614 = vmatprep.mubr.bf16.mxu0 %v283
  %615 = vmatmul.mubr.bf16.gmra.mrb[0].mxu0 %v282
  %v616 = vpop.f32.mrb[0].mxu0
  %v617 = vadd.f32 %v128, %v616
  %v618 = vpop.f32.mrb[0].mxu0
  %v619 = vpop.f32.mrb[0].mxu0
  %v620 = vadd.f32 %v128, %v619
  %v621 = vpop.f32.mrb[0].mxu0
  %622 = vmatprep.mubr.bf16.mxu0 %v287
  %623 = vmatmul.mubr.bf16.gmra.mrb[0].mxu0 %v286
  %v624 = vpop.f32.mrb[0].mxu0
  %v625 = vadd.f32 %v128, %v624
  %v626 = vpop.f32.mrb[0].mxu0
  %v627 = vpop.f32.mrb[0].mxu0
  %v628 = vadd.f32 %v128, %v627
  %v629 = vpop.f32.mrb[0].mxu0
  %630 = vmatprep.mubr.bf16.mxu0 %v291
  %631 = vmatmul.mubr.bf16.gmra.mrb[0].mxu0 %v290
  %v632 = vpop.f32.mrb[0].mxu0
  %v633 = vadd.f32 %v128, %v632
  %v634 = vpop.f32.mrb[0].mxu0
  %v635 = vpop.f32.mrb[0].mxu0
  %v636 = vadd.f32 %v128, %v635
  %v637 = vpop.f32.mrb[0].mxu0
  %638 = vmatprep.mubr.bf16.mxu0 %v295
  %639 = vmatmul.mubr.bf16.gmra.mrb[0].mxu0 %v294
  %v640 = vpop.f32.mrb[0].mxu0
  %v641 = vadd.f32 %v128, %v640
  %v642 = vpop.f32.mrb[0].mxu0
  %v643 = vpop.f32.mrb[0].mxu0
  %v644 = vadd.f32 %v128, %v643
  %v645 = vpop.f32.mrb[0].mxu0
  %646 = vmatprep.mubr.bf16.mxu0 %v299
  %647 = vmatmul.mubr.bf16.gmra.mrb[0].mxu0 %v298
  %v648 = vpop.f32.mrb[0].mxu0
  %v649 = vadd.f32 %v128, %v648
  %v650 = vpop.f32.mrb[0].mxu0
  %v651 = vpop.f32.mrb[0].mxu0
  %v652 = vadd.f32 %v128, %v651
  %v653 = vpop.f32.mrb[0].mxu0
  %654 = vmatprep.mubr.bf16.mxu0 %v303
  %655 = vmatmul.mubr.bf16.gmra.mrb[0].mxu0 %v302
  %v656 = vpop.f32.mrb[0].mxu0
  %v657 = vadd.f32 %v128, %v656
  %v658 = vpop.f32.mrb[0].mxu0
  %v659 = vpop.f32.mrb[0].mxu0
  %v660 = vadd.f32 %v128, %v659
  %v661 = vpop.f32.mrb[0].mxu0
  %662 = vdwg.mxu0
  %663 = vmatprep.subr.bf16.mxu0 0
  %664 = vmatpush1.bf16.msra.mxu0 %v494
  %665 = vmatprep.subr.bf16.mxu0 0
  %666 = vmatpush1.bf16.msra.mxu0 %v495
  %667 = vmatprep.subr.bf16.mxu0 0
  %668 = vmatpush1.bf16.msra.mxu0 %v496
  %669 = vmatprep.subr.bf16.mxu0 0
  %670 = vmatpush1.bf16.msra.mxu0 %v497
  %671 = vmatprep.subr.bf16.mxu0 0
  %672 = vmatpush1.bf16.msra.mxu0 %v498
  %673 = vmatprep.subr.bf16.mxu0 0
  %674 = vmatpush1.bf16.msra.mxu0 %v499
  %675 = vmatprep.subr.bf16.mxu0 0
  %676 = vmatpush1.bf16.msra.mxu0 %v500
  %677 = vmatprep.subr.bf16.mxu0 0
  %678 = vmatpush1.bf16.msra.mxu0 %v501
  %679 = vmatprep.subr.bf16.mxu0 0
  %680 = vmatpush1.bf16.msra.mxu0 %v502
  %681 = vmatprep.subr.bf16.mxu0 0
  %682 = vmatpush1.bf16.msra.mxu0 %v503
  %683 = vmatprep.subr.bf16.mxu0 0
  %684 = vmatpush1.bf16.msra.mxu0 %v504
  %685 = vmatprep.subr.bf16.mxu0 0
  %686 = vmatpush1.bf16.msra.mxu0 %v505
  %687 = vmatprep.subr.bf16.mxu0 0
  %688 = vmatpush1.bf16.msra.mxu0 %v506
  %689 = vmatprep.subr.bf16.mxu0 0
  %690 = vmatpush1.bf16.msra.mxu0 %v507
  %691 = vmatprep.subr.bf16.mxu0 0
  %692 = vmatpush1.bf16.msra.mxu0 %v508
  %693 = vmatprep.subr.bf16.mxu0 0
  %694 = vmatpush1.bf16.msra.mxu0 %v509
  %695 = vmatprep.mubr.bf16.mxu0 %v265
  %696 = vmatmul.mubr.bf16.gmra.mrb[0].mxu0 %v264
  %v697 = vpop.f32.mrb[0].mxu0
  %v698 = vadd.f32 %v577, %v697
  %v699 = vpop.f32.mrb[0].mxu0
  %v700 = vpop.f32.mrb[0].mxu0
  %v701 = vadd.f32 %v580, %v700
  %v702 = vpop.f32.mrb[0].mxu0
  %703 = vmatprep.mubr.bf16.mxu0 %v269
  %704 = vmatmul.mubr.bf16.gmra.mrb[0].mxu0 %v268
  %v705 = vpop.f32.mrb[0].mxu0
  %v706 = vadd.f32 %v585, %v705
  %v707 = vpop.f32.mrb[0].mxu0
  %v708 = vpop.f32.mrb[0].mxu0
  %v709 = vadd.f32 %v588, %v708
  %v710 = vpop.f32.mrb[0].mxu0
  %711 = vmatprep.mubr.bf16.mxu0 %v273
  %712 = vmatmul.mubr.bf16.gmra.mrb[0].mxu0 %v272
  %v713 = vpop.f32.mrb[0].mxu0
  %v714 = vadd.f32 %v593, %v713
  %v715 = vpop.f32.mrb[0].mxu0
  %v716 = vpop.f32.mrb[0].mxu0
  %v717 = vadd.f32 %v596, %v716
  %v718 = vpop.f32.mrb[0].mxu0
  %719 = vmatprep.mubr.bf16.mxu0 %v277
  %720 = vmatmul.mubr.bf16.gmra.mrb[0].mxu0 %v276
  %v721 = vpop.f32.mrb[0].mxu0
  %v722 = vadd.f32 %v601, %v721
  %v723 = vpop.f32.mrb[0].mxu0
  %v724 = vpop.f32.mrb[0].mxu0
  %v725 = vadd.f32 %v604, %v724
  %v726 = vpop.f32.mrb[0].mxu0
  %727 = vmatprep.mubr.bf16.mxu0 %v281
  %728 = vmatmul.mubr.bf16.gmra.mrb[0].mxu0 %v280
  %v729 = vpop.f32.mrb[0].mxu0
  %v730 = vadd.f32 %v609, %v729
  %v731 = vpop.f32.mrb[0].mxu0
  %v732 = vpop.f32.mrb[0].mxu0
  %v733 = vadd.f32 %v612, %v732
  %v734 = vpop.f32.mrb[0].mxu0
  %735 = vmatprep.mubr.bf16.mxu0 %v285
  %736 = vmatmul.mubr.bf16.gmra.mrb[0].mxu0 %v284
  %v737 = vpop.f32.mrb[0].mxu0
  %v738 = vadd.f32 %v617, %v737
  %v739 = vpop.f32.mrb[0].mxu0
  %v740 = vpop.f32.mrb[0].mxu0
  %v741 = vadd.f32 %v620, %v740
  %v742 = vpop.f32.mrb[0].mxu0
  %743 = vmatprep.mubr.bf16.mxu0 %v289
  %744 = vmatmul.mubr.bf16.gmra.mrb[0].mxu0 %v288
  %v745 = vpop.f32.mrb[0].mxu0
  %v746 = vadd.f32 %v625, %v745
  %v747 = vpop.f32.mrb[0].mxu0
  %v748 = vpop.f32.mrb[0].mxu0
  %v749 = vadd.f32 %v628, %v748
  %v750 = vpop.f32.mrb[0].mxu0
  %751 = vmatprep.mubr.bf16.mxu0 %v293
  %752 = vmatmul.mubr.bf16.gmra.mrb[0].mxu0 %v292
  %v753 = vpop.f32.mrb[0].mxu0
  %v754 = vadd.f32 %v633, %v753
  %v755 = vpop.f32.mrb[0].mxu0
  %v756 = vpop.f32.mrb[0].mxu0
  %v757 = vadd.f32 %v636, %v756
  %v758 = vpop.f32.mrb[0].mxu0
  %759 = vmatprep.mubr.bf16.mxu0 %v297
  %760 = vmatmul.mubr.bf16.gmra.mrb[0].mxu0 %v296
  %v761 = vpop.f32.mrb[0].mxu0
  %v762 = vadd.f32 %v641, %v761
  %v763 = vpop.f32.mrb[0].mxu0
  %v764 = vpop.f32.mrb[0].mxu0
  %v765 = vadd.f32 %v644, %v764
  %v766 = vpop.f32.mrb[0].mxu0
  %767 = vmatprep.mubr.bf16.mxu0 %v301
  %768 = vmatmul.mubr.bf16.gmra.mrb[0].mxu0 %v300
  %v769 = vpop.f32.mrb[0].mxu0
  %v770 = vadd.f32 %v649, %v769
  %v771 = vpop.f32.mrb[0].mxu0
  %v772 = vpop.f32.mrb[0].mxu0
  %v773 = vadd.f32 %v652, %v772
  %v774 = vpop.f32.mrb[0].mxu0
  %775 = vmatprep.mubr.bf16.mxu0 %v305
  %776 = vmatmul.mubr.bf16.gmra.mrb[0].mxu0 %v304
  %v777 = vpop.f32.mrb[0].mxu0
  %v778 = vadd.f32 %v657, %v777
  %v779 = vpop.f32.mrb[0].mxu0
  %v780 = vpop.f32.mrb[0].mxu0
  %v781 = vadd.f32 %v660, %v780
  %v782 = vpop.f32.mrb[0].mxu0
  %783 = vdwg.mxu0
  %v784 = vmax.f32 %v698, 0.0
  %v785 = vmax.f32 %v701, 0.0
  %v786 = vmax.f32 %v706, 0.0
  %v787 = vmax.f32 %v709, 0.0
  %v788 = vmax.f32 %v714, 0.0
  %v789 = vmax.f32 %v717, 0.0
  %v790 = vmax.f32 %v722, 0.0
  %v791 = vmax.f32 %v725, 0.0
  %v792 = vmax.f32 %v730, 0.0
  %v793 = vmax.f32 %v733, 0.0
  %v794 = vmax.f32 %v738, 0.0
  %v795 = vmax.f32 %v741, 0.0
  %v796 = vmax.f32 %v746, 0.0
  %v797 = vmax.f32 %v749, 0.0
  %v798 = vmax.f32 %v754, 0.0
  %v799 = vmax.f32 %v757, 0.0
  %v800 = vmax.f32 %v762, 0.0
  %v801 = vmax.f32 %v765, 0.0
  %v802 = vmax.f32 %v770, 0.0
  %v803 = vmax.f32 %v773, 0.0
  %v804 = vmax.f32 %v778, 0.0
  %v805 = vmax.f32 %v781, 0.0
  %v806 = vpack.c.bf16 %v785, %v784
  %v807 = vpack.c.bf16 %v787, %v786
  %v808 = vpack.c.bf16 %v789, %v788
  %v809 = vpack.c.bf16 %v791, %v790
  %v810 = vpack.c.bf16 %v793, %v792
  %v811 = vpack.c.bf16 %v795, %v794
  %v812 = vpack.c.bf16 %v797, %v796
  %v813 = vpack.c.bf16 %v799, %v798
  %v814 = vpack.c.bf16 %v801, %v800
  %v815 = vpack.c.bf16 %v803, %v802
  %v816 = vpack.c.bf16 %v805, %v804
  %v828 = vunpack.c.l.b16 %v806
  %v829 = vunpack.c.h.b16 %v806
  %v830 = vunpack.c.l.b16 %v807
  %v831 = vunpack.c.h.b16 %v807
  %v832 = vunpack.c.l.b16 %v808
  %v833 = vunpack.c.h.b16 %v808
  %v834 = vunpack.c.l.b16 %v809
  %v835 = vunpack.c.h.b16 %v809
  %v836 = vunpack.c.l.b16 %v810
  %v837 = vunpack.c.h.b16 %v810
  %v838 = vunpack.c.l.b16 %v811
  %v839 = vunpack.c.h.b16 %v811
  %v840 = vunpack.c.l.b16 %v812
  %v841 = vunpack.c.h.b16 %v812
  %v842 = vunpack.c.l.b16 %v813
  %v843 = vunpack.c.h.b16 %v813
  %v844 = vunpack.c.l.b16 %v814
  %v845 = vunpack.c.h.b16 %v814
  %v846 = vunpack.c.l.b16 %v815
  %v847 = vunpack.c.h.b16 %v815
  %v848 = vunpack.c.l.b16 %v816
  %v849 = vunpack.c.h.b16 %v816
  %v850 = vpack.c.b16 %v828, %v828
  %v851 = vpack.c.b16 %v829, %v829
  %v852 = vpack.c.b16 %v830, %v830
  %v853 = vpack.c.b16 %v831, %v831
  %v854 = vpack.c.b16 %v832, %v832
  %v855 = vpack.c.b16 %v833, %v833
  %v856 = vpack.c.b16 %v834, %v834
  %v857 = vpack.c.b16 %v835, %v835
  %v858 = vpack.c.b16 %v836, %v836
  %v859 = vpack.c.b16 %v837, %v837
  %v860 = vpack.c.b16 %v838, %v838
  %v861 = vpack.c.b16 %v839, %v839
  %v862 = vpack.c.b16 %v840, %v840
  %v863 = vpack.c.b16 %v841, %v841
  %v864 = vpack.c.b16 %v842, %v842
  %v865 = vpack.c.b16 %v843, %v843
  %v866 = vpack.c.b16 %v844, %v844
  %v867 = vpack.c.b16 %v845, %v845
  %v868 = vpack.c.b16 %v846, %v846
  %v869 = vpack.c.b16 %v847, %v847
  %v870 = vpack.c.b16 %v848, %v848
  %v871 = vpack.c.b16 %v849, %v849
  %894 = vst [vmem:[%s3] sm:$0xf] %v850
  %895 = vst [vmem:[%s3 + $0x4] sm:$0xf] %v851
  %896 = vst [vmem:[%s3 + $0x8] sm:$0xf] %v852
  %897 = vst [vmem:[%s3 + $0xc] sm:$0xf] %v853
  %898 = vst [vmem:[%s3 + $0x10] sm:$0xf] %v854
  %899 = vst [vmem:[%s3 + $0x14] sm:$0xf] %v855
  %900 = vst [vmem:[%s3 + $0x18] sm:$0xf] %v856
  %901 = vst [vmem:[%s3 + $0x1c] sm:$0xf] %v857
  %902 = vst [vmem:[%s3 + $0x20] sm:$0xf] %v858
  %903 = vst [vmem:[%s3 + $0x24] sm:$0xf] %v859
  %904 = vst [vmem:[%s3 + $0x28] sm:$0xf] %v860
  %905 = vst [vmem:[%s3 + $0x2c] sm:$0xf] %v861
  %906 = vst [vmem:[%s3 + $0x30] sm:$0xf] %v862
  %907 = vst [vmem:[%s3 + $0x34] sm:$0xf] %v863
  %908 = vst [vmem:[%s3 + $0x38] sm:$0xf] %v864
  %909 = vst [vmem:[%s3 + $0x3c] sm:$0xf] %v865
  %910 = vst [vmem:[%s3 + $0x40] sm:$0xf] %v866
  %911 = vst [vmem:[%s3 + $0x44] sm:$0xf] %v867
  %912 = vst [vmem:[%s3 + $0x48] sm:$0xf] %v868
  %913 = vst [vmem:[%s3 + $0x4c] sm:$0xf] %v869
  %914 = vst [vmem:[%s3 + $0x50] sm:$0xf] %v870
  %915 = vst [vmem:[%s3 + $0x54] sm:$0xf] %v871
  // Predicated region
  $region14: #{deepmind_forward.5} parent=0 // pred_check
    _
  $region15: #{deepmind_forward.5} parent=0 // pred_check_branch
    %917 = sbr.rel (0) target = $region17
  $region16: #{deepmind_forward.5} parent=0 // pred_region
    _
  $region17: #{deepmind_forward.5} parent=0 // pred_fallthru
    _
  // Predicated region
  $region18: #{deepmind_forward.5} parent=0 // pred_check
    _
  $region19: #{deepmind_forward.5} parent=0 // pred_check_branch
    %919 = sbr.rel (0) target = $region21
  $region20: #{deepmind_forward.5} parent=0 // pred_region
    _
  $region21: #{deepmind_forward.5} parent=0 // pred_fallthru
    _

// kernel: deepmind_forward.7
$region0: #{deepmind_forward.7}
  #allocation0 [shape = 'u32[]', space=smem, size = 0x4, offset = 0x4, fixed_abs, tag = 'smem constant byte address 0x4 - core index']
  #allocation1 [shape = 'u32[144,128]{1,0:T(1,128)}', space=vmem, size = 0x12000, scoped, tag = 'internal scratch']
  %s0 = inlined_call_operand.vmem [shape: bf16[16,1568], index: 0, kind: input, shape index: {}]
  %s1 = inlined_call_operand.vmem [shape: bf16[1568,256], index: 1, kind: input, shape index: {}]
  %s2 = inlined_call_operand.vmem [shape: f32[1,256], index: 2, kind: input, shape index: {}]
  %s3 = inlined_call_operand.vmem [shape: f32[16,256], index: 3, kind: output, shape index: {}]
  %s4 = sld [smem:[#allocation0]]
  $region120: #{deepmind_forward.7} parent=0
    _
  %s6 = ssub.s32 1, %s4
  %s7 = scalar_select 0, %s6, %s4
  $region1: #{deepmind_forward.7} parent=0
    #allocation2 [shape = 'u8[802816]{0}', space=vmem, size = 0xc4000, scoped, tag = 'input window, operand 1']
    #allocation3 [shape = 'u8[16384]{0}', space=vmem, size = 0x4000, scoped, tag = 'output window, operand 0']
    loop: start=0, step=1, limit=4
    $region2: #{deepmind_forward.7} parent=1 // loop_pre_header
      _
    $region3: #{deepmind_forward.7} parent=1 // loop_header
      %s9 = sphi 0, %s13
      %p10 = scmp.ge.s32.totalorder %s9, 4
      %s16 = sphi 0, %s28
      %s17 = sphi 0, %s24
      %s18 = sphi 0, %s16
      %s19 = sphi 0, %s17
      %s20 = sphi 0, %s18
      %s21 = sphi 0, %s19
      %s31 = sphi 0, %s33
      %s34 = sphi 0, %s31
      %s35 = sphi 0, %s34
      %s51 = sphi 0, %s35
      %s57 = sphi 0, %s59
      %s60 = sphi 0, %s57
      %s61 = sphi 0, %s60
      %s77 = sphi 0, %s61
      %s83 = sphi 0, %s85
      %s86 = sphi 0, %s83
      %s87 = sphi 0, %s86
      %s103 = sphi 0, %s87
      %s111 = sphi 0, %s113
      %s114 = sphi 0, %s111
      %s115 = sphi 0, %s114
      %s131 = sphi 0, %s115
    $region4: #{deepmind_forward.7} parent=1 // loop_header_branch
      %12 = sbr.rel (%p10) target = $region8
    $region5: #{deepmind_forward.7} parent=1 // loop_body
      %s14 = ssub.s32 %s9, 1
      %s15 = ssub.s32 %s9, 2
      %s22 = sadd.s32 1, %s17
      %p23 = scmp.ge.s32.totalorder %s22, 2
      %s24 = scalar_select %p23, 0, %s22
      %s25 = sadd.s32 1, %s16
      %s26 = scalar_select %p23, %s25, %s16
      %p27 = scmp.ge.s32.totalorder %s26, 1
      %s28 = scalar_select %p27, 0, %s26
      %s29 = ssub.s32 %s16, %s28
      %p30 = scmp.eq.s32.totalorder %s29, 0
      %s32 = sadd.s32 %s31, 1
      %s33 = scalar_select %p30, %s31, %s32
      %p36 = pneg %p30
      %p37 = scmp.eq.s32.totalorder %s9, 1
      %p38 = por %p36, %p37
      %p39 = scmp.ne.s32.totalorder %s31, %s34
      %p40 = scmp.eq.s32.totalorder %s9, 0
      %p41 = por %p39, %p40
      %p42 = scmp.ne.s32.totalorder %s31, %s34
      %p43 = scmp.eq.s32.totalorder %s14, 1
      %p44 = por %p42, %p43
      %p45 = scmp.ne.s32.totalorder %s34, %s35
      %p46 = scmp.eq.s32.totalorder %s14, 0
      %p47 = por %p45, %p46
      %p48 = scmp.ne.s32.totalorder %s34, %s35
      %p49 = scmp.eq.s32.totalorder %s15, 1
      %p50 = por %p48, %p49
      %p52 = scmp.ne.s32.totalorder %s35, %s51
      %p53 = scmp.eq.s32.totalorder %s15, 0
      %p54 = por %p52, %p53
      %s55 = ssub.s32 %s17, %s24
      %p56 = scmp.eq.s32.totalorder %s55, 0
      %s58 = sadd.s32 %s57, 1
      %s59 = scalar_select %p56, %s57, %s58
      %p62 = pneg %p56
      %p63 = scmp.eq.s32.totalorder %s9, 1
      %p64 = por %p62, %p63
      %p65 = scmp.ne.s32.totalorder %s57, %s60
      %p66 = scmp.eq.s32.totalorder %s9, 0
      %p67 = por %p65, %p66
      %p68 = scmp.ne.s32.totalorder %s57, %s60
      %p69 = scmp.eq.s32.totalorder %s14, 1
      %p70 = por %p68, %p69
      %p71 = scmp.ne.s32.totalorder %s60, %s61
      %p72 = scmp.eq.s32.totalorder %s14, 0
      %p73 = por %p71, %p72
      %p74 = scmp.ne.s32.totalorder %s60, %s61
      %p75 = scmp.eq.s32.totalorder %s15, 1
      %p76 = por %p74, %p75
      %p78 = scmp.ne.s32.totalorder %s61, %s77
      %p79 = scmp.eq.s32.totalorder %s15, 0
      %p80 = por %p78, %p79
      %s81 = ssub.s32 %s17, %s24
      %p82 = scmp.eq.s32.totalorder %s81, 0
      %s84 = sadd.s32 %s83, 1
      %s85 = scalar_select %p82, %s83, %s84
      %p88 = pneg %p82
      %p89 = scmp.eq.s32.totalorder %s9, 1
      %p90 = por %p88, %p89
      %p91 = scmp.ne.s32.totalorder %s83, %s86
      %p92 = scmp.eq.s32.totalorder %s9, 0
      %p93 = por %p91, %p92
      %p94 = scmp.ne.s32.totalorder %s83, %s86
      %p95 = scmp.eq.s32.totalorder %s14, 1
      %p96 = por %p94, %p95
      %p97 = scmp.ne.s32.totalorder %s86, %s87
      %p98 = scmp.eq.s32.totalorder %s14, 0
      %p99 = por %p97, %p98
      %p100 = scmp.ne.s32.totalorder %s86, %s87
      %p101 = scmp.eq.s32.totalorder %s15, 1
      %p102 = por %p100, %p101
      %p104 = scmp.ne.s32.totalorder %s87, %s103
      %p105 = scmp.eq.s32.totalorder %s15, 0
      %p106 = por %p104, %p105
      %s107 = ssub.s32 %s16, %s28
      %s108 = ssub.s32 %s17, %s24
      %s109 = sor.u32 %s107, %s108
      %p110 = scmp.eq.s32.totalorder %s109, 0
      %s112 = sadd.s32 %s111, 1
      %s113 = scalar_select %p110, %s111, %s112
      %p116 = pneg %p110
      %p117 = scmp.eq.s32.totalorder %s9, 1
      %p118 = por %p116, %p117
      %p119 = scmp.ne.s32.totalorder %s111, %s114
      %p120 = scmp.eq.s32.totalorder %s9, 0
      %p121 = por %p119, %p120
      %p122 = scmp.ne.s32.totalorder %s111, %s114
      %p123 = scmp.eq.s32.totalorder %s14, 1
      %p124 = por %p122, %p123
      %p125 = scmp.ne.s32.totalorder %s114, %s115
      %p126 = scmp.eq.s32.totalorder %s14, 0
      %p127 = por %p125, %p126
      %p128 = scmp.ne.s32.totalorder %s114, %s115
      %p129 = scmp.eq.s32.totalorder %s15, 1
      %p130 = por %p128, %p129
      %p132 = scmp.ne.s32.totalorder %s115, %s131
      %p133 = scmp.eq.s32.totalorder %s15, 0
      %p134 = por %p132, %p133
      %p135 = scmp.le.s32.totalorder 1, %s9
      %p136 = scmp.lt.s32.totalorder %s9, 3
      %p137 = pnand %p135, %p136
      %p138 = pneg %p137
      // Predicated region
      $region9: #{deepmind_forward.7} parent=5 // pred_check
        _
      $region10: #{deepmind_forward.7} parent=5 // pred_check_branch
        %140 = sbr.rel (%p137) target = $region12
      $region11: #{deepmind_forward.7} parent=5 // pred_region
        %s141 = ssub.s32 %s9, 1
        // Predicated region
        $region13: #{deepmind_forward.7} parent=11 // pred_check
          %p142 = pneg %p47
        $region14: #{deepmind_forward.7} parent=11 // pred_check_branch
          %144 = sbr.rel (%p142) target = $region16
        $region15: #{deepmind_forward.7} parent=11 // pred_region
          %s145 = smul.u32 2, %s18
          %p146 = scmp.lt.s32.totalorder %s145, 1
          %s147 = scalar_select %p146, %s145, 1
          %s148 = smul.addr %s147, 13
          %s149 = smul.addr %s148, 4
          %s150 = scalar_lea.vmem %s0, %s149
          %s151 = smul.u32 2, %s18
        $region16: #{deepmind_forward.7} parent=11 // pred_fallthru
          _
      $region12: #{deepmind_forward.7} parent=5 // pred_fallthru
        _
      %p152 = scmp.lt.s32.totalorder %s9, 2
      // Predicated region
      $region17: #{deepmind_forward.7} parent=5 // pred_check
        %p153 = pneg %p152
      $region18: #{deepmind_forward.7} parent=5 // pred_check_branch
        %155 = sbr.rel (%p153) target = $region20
      $region19: #{deepmind_forward.7} parent=5 // pred_region
        // Predicated region
        $region21: #{deepmind_forward.7} parent=19 // pred_check
          %p156 = pneg %p67
        $region22: #{deepmind_forward.7} parent=19 // pred_check_branch
          %158 = sbr.rel (%p156) target = $region24
        $region23: #{deepmind_forward.7} parent=19 // pred_region
          %s159 = sand.u32 %s57, 1
          %s160 = sand.u32 %s57, 1
          %s161 = smul.addr %s160, 784
          %s162 = scalar_lea.vmem [#allocation2], %s161
          %s163 = smul.addr %s17, 4
          %s164 = scalar_lea.vmem %s1, %s163
          // Predicated region
          $region25: #{deepmind_forward.7} parent=23 // pred_check
            _
          $region26: #{deepmind_forward.7} parent=23 // pred_check_branch
            %166 = sbr.rel (0) target = $region28
          $region27: #{deepmind_forward.7} parent=23 // pred_region
            // Predicated region
            $region29: #{deepmind_forward.7} parent=27 // pred_check
              _
            $region30: #{deepmind_forward.7} parent=27 // pred_check_branch
              %168 = sbr.rel target = $region32
            $region31: #{deepmind_forward.7} parent=27 // pred_region
              // Predicated region
              $region44: #{deepmind_forward.7} parent=31 // pred_check
                _
              $region45: #{deepmind_forward.7} parent=31 // pred_check_branch
                %573 = sbr.rel (0) target = $region47
              $region46: #{deepmind_forward.7} parent=31 // pred_region
                loop: start=0, step=1, limit=1
                $region48: #{deepmind_forward.7} parent=46 // loop_pre_header
                  _
                $region49: #{deepmind_forward.7} parent=46 // loop_header
                  %s575 = sphi 0, %s579
                  %p576 = scmp.ge.s32.totalorder %s575, 1
                  %s580 = sphi %s164, %s164
                  %s581 = sphi %s162, %s162
                $region50: #{deepmind_forward.7} parent=46 // loop_header_branch
                  %578 = sbr.rel (%p576) target = $region54
                $region51: #{deepmind_forward.7} parent=46 // loop_body
                  _
                $region52: #{deepmind_forward.7} parent=46 // loop_footer
                  %s579 = sadd.s32 1, %s575
                $region53: #{deepmind_forward.7} parent=46 // loop_footer_branch
                  %574 = sbr.rel target = $region49
                $region54: #{deepmind_forward.7} parent=46 // loop_exit
                  _
                loop: start=0, step=1, limit=1
                $region55: #{deepmind_forward.7} parent=46 // loop_pre_header
                  _
                $region56: #{deepmind_forward.7} parent=46 // loop_header
                  %s584 = sphi 0, %s588
                  %p585 = scmp.ge.s32.totalorder %s584, 1
                  %s589 = sphi %s164, %s164
                  %s590 = sphi %s162, %s162
                $region57: #{deepmind_forward.7} parent=46 // loop_header_branch
                  %587 = sbr.rel (%p585) target = $region61
                $region58: #{deepmind_forward.7} parent=46 // loop_body
                  %v591 = vld [vmem:[%s589] sm:$0xf]
                  %592 = vst [vmem:[%s590] sm:$0xf] %v591
                  %v593 = vld [vmem:[%s589 + $0x8] sm:$0xf]
                  %594 = vst [vmem:[%s590 + $0x4] sm:$0xf] %v593
                  %v595 = vld [vmem:[%s589 + $0x10] sm:$0xf]
                  %596 = vst [vmem:[%s590 + $0x8] sm:$0xf] %v595
                  %v597 = vld [vmem:[%s589 + $0x18] sm:$0xf]
                  %598 = vst [vmem:[%s590 + $0xc] sm:$0xf] %v597
                  %v599 = vld [vmem:[%s589 + $0x20] sm:$0xf]
                  %600 = vst [vmem:[%s590 + $0x10] sm:$0xf] %v599
                  %v601 = vld [vmem:[%s589 + $0x28] sm:$0xf]
                  %602 = vst [vmem:[%s590 + $0x14] sm:$0xf] %v601
                  %v603 = vld [vmem:[%s589 + $0x30] sm:$0xf]
                  %604 = vst [vmem:[%s590 + $0x18] sm:$0xf] %v603
                  %v605 = vld [vmem:[%s589 + $0x38] sm:$0xf]
                  %606 = vst [vmem:[%s590 + $0x1c] sm:$0xf] %v605
                  %v607 = vld [vmem:[%s589 + $0x40] sm:$0xf]
                  %608 = vst [vmem:[%s590 + $0x20] sm:$0xf] %v607
                  %v609 = vld [vmem:[%s589 + $0x48] sm:$0xf]
                  %610 = vst [vmem:[%s590 + $0x24] sm:$0xf] %v609
                  %v611 = vld [vmem:[%s589 + $0x50] sm:$0xf]
                  %612 = vst [vmem:[%s590 + $0x28] sm:$0xf] %v611
                  %v613 = vld [vmem:[%s589 + $0x58] sm:$0xf]
                  %614 = vst [vmem:[%s590 + $0x2c] sm:$0xf] %v613
                  %v615 = vld [vmem:[%s589 + $0x60] sm:$0xf]
                  %616 = vst [vmem:[%s590 + $0x30] sm:$0xf] %v615
                  %v617 = vld [vmem:[%s589 + $0x68] sm:$0xf]
                  %618 = vst [vmem:[%s590 + $0x34] sm:$0xf] %v617
                  %v619 = vld [vmem:[%s589 + $0x70] sm:$0xf]
                  %620 = vst [vmem:[%s590 + $0x38] sm:$0xf] %v619
                  %v621 = vld [vmem:[%s589 + $0x78] sm:$0xf]
                  %622 = vst [vmem:[%s590 + $0x3c] sm:$0xf] %v621
                  %v623 = vld [vmem:[%s589 + $0x80] sm:$0xf]
                  %624 = vst [vmem:[%s590 + $0x40] sm:$0xf] %v623
                  %v625 = vld [vmem:[%s589 + $0x88] sm:$0xf]
                  %626 = vst [vmem:[%s590 + $0x44] sm:$0xf] %v625
                  %v627 = vld [vmem:[%s589 + $0x90] sm:$0xf]
                  %628 = vst [vmem:[%s590 + $0x48] sm:$0xf] %v627
                  %v629 = vld [vmem:[%s589 + $0x98] sm:$0xf]
                  %630 = vst [vmem:[%s590 + $0x4c] sm:$0xf] %v629
                  %v631 = vld [vmem:[%s589 + $0xa0] sm:$0xf]
                  %632 = vst [vmem:[%s590 + $0x50] sm:$0xf] %v631
                  %v633 = vld [vmem:[%s589 + $0xa8] sm:$0xf]
                  %634 = vst [vmem:[%s590 + $0x54] sm:$0xf] %v633
                  %v635 = vld [vmem:[%s589 + $0xb0] sm:$0xf]
                  %636 = vst [vmem:[%s590 + $0x58] sm:$0xf] %v635
                  %v637 = vld [vmem:[%s589 + $0xb8] sm:$0xf]
                  %638 = vst [vmem:[%s590 + $0x5c] sm:$0xf] %v637
                  %v639 = vld [vmem:[%s589 + $0xc0] sm:$0xf]
                  %640 = vst [vmem:[%s590 + $0x60] sm:$0xf] %v639
                  %v641 = vld [vmem:[%s589 + $0xc8] sm:$0xf]
                  %642 = vst [vmem:[%s590 + $0x64] sm:$0xf] %v641
                  %v643 = vld [vmem:[%s589 + $0xd0] sm:$0xf]
                  %644 = vst [vmem:[%s590 + $0x68] sm:$0xf] %v643
                  %v645 = vld [vmem:[%s589 + $0xd8] sm:$0xf]
                  %646 = vst [vmem:[%s590 + $0x6c] sm:$0xf] %v645
                  %v647 = vld [vmem:[%s589 + $0xe0] sm:$0xf]
                  %648 = vst [vmem:[%s590 + $0x70] sm:$0xf] %v647
                  %v649 = vld [vmem:[%s589 + $0xe8] sm:$0xf]
                  %650 = vst [vmem:[%s590 + $0x74] sm:$0xf] %v649
                  %v651 = vld [vmem:[%s589 + $0xf0] sm:$0xf]
                  %652 = vst [vmem:[%s590 + $0x78] sm:$0xf] %v651
                  %v653 = vld [vmem:[%s589 + $0xf8] sm:$0xf]
                  %654 = vst [vmem:[%s590 + $0x7c] sm:$0xf] %v653
                  %v655 = vld [vmem:[%s589 + $0x100] sm:$0xf]
                  %656 = vst [vmem:[%s590 + $0x80] sm:$0xf] %v655
                  %v657 = vld [vmem:[%s589 + $0x108] sm:$0xf]
                  %658 = vst [vmem:[%s590 + $0x84] sm:$0xf] %v657
                  %v659 = vld [vmem:[%s589 + $0x110] sm:$0xf]
                  %660 = vst [vmem:[%s590 + $0x88] sm:$0xf] %v659
                  %v661 = vld [vmem:[%s589 + $0x118] sm:$0xf]
                  %662 = vst [vmem:[%s590 + $0x8c] sm:$0xf] %v661
                  %v663 = vld [vmem:[%s589 + $0x120] sm:$0xf]
                  %664 = vst [vmem:[%s590 + $0x90] sm:$0xf] %v663
                  %v665 = vld [vmem:[%s589 + $0x128] sm:$0xf]
                  %666 = vst [vmem:[%s590 + $0x94] sm:$0xf] %v665
                  %v667 = vld [vmem:[%s589 + $0x130] sm:$0xf]
                  %668 = vst [vmem:[%s590 + $0x98] sm:$0xf] %v667
                  %v669 = vld [vmem:[%s589 + $0x138] sm:$0xf]
                  %670 = vst [vmem:[%s590 + $0x9c] sm:$0xf] %v669
                  %v671 = vld [vmem:[%s589 + $0x140] sm:$0xf]
                  %672 = vst [vmem:[%s590 + $0xa0] sm:$0xf] %v671
                  %v673 = vld [vmem:[%s589 + $0x148] sm:$0xf]
                  %674 = vst [vmem:[%s590 + $0xa4] sm:$0xf] %v673
                  %v675 = vld [vmem:[%s589 + $0x150] sm:$0xf]
                  %676 = vst [vmem:[%s590 + $0xa8] sm:$0xf] %v675
                  %v677 = vld [vmem:[%s589 + $0x158] sm:$0xf]
                  %678 = vst [vmem:[%s590 + $0xac] sm:$0xf] %v677
                  %v679 = vld [vmem:[%s589 + $0x160] sm:$0xf]
                  %680 = vst [vmem:[%s590 + $0xb0] sm:$0xf] %v679
                  %v681 = vld [vmem:[%s589 + $0x168] sm:$0xf]
                  %682 = vst [vmem:[%s590 + $0xb4] sm:$0xf] %v681
                  %v683 = vld [vmem:[%s589 + $0x170] sm:$0xf]
                  %684 = vst [vmem:[%s590 + $0xb8] sm:$0xf] %v683
                  %v685 = vld [vmem:[%s589 + $0x178] sm:$0xf]
                  %686 = vst [vmem:[%s590 + $0xbc] sm:$0xf] %v685
                  %v687 = vld [vmem:[%s589 + $0x180] sm:$0xf]
                  %688 = vst [vmem:[%s590 + $0xc0] sm:$0xf] %v687
                  %v689 = vld [vmem:[%s589 + $0x188] sm:$0xf]
                  %690 = vst [vmem:[%s590 + $0xc4] sm:$0xf] %v689
                  %v691 = vld [vmem:[%s589 + $0x190] sm:$0xf]
                  %692 = vst [vmem:[%s590 + $0xc8] sm:$0xf] %v691
                  %v693 = vld [vmem:[%s589 + $0x198] sm:$0xf]
                  %694 = vst [vmem:[%s590 + $0xcc] sm:$0xf] %v693
                  %v695 = vld [vmem:[%s589 + $0x1a0] sm:$0xf]
                  %696 = vst [vmem:[%s590 + $0xd0] sm:$0xf] %v695
                  %v697 = vld [vmem:[%s589 + $0x1a8] sm:$0xf]
                  %698 = vst [vmem:[%s590 + $0xd4] sm:$0xf] %v697
                  %v699 = vld [vmem:[%s589 + $0x1b0] sm:$0xf]
                  %700 = vst [vmem:[%s590 + $0xd8] sm:$0xf] %v699
                  %v701 = vld [vmem:[%s589 + $0x1b8] sm:$0xf]
                  %702 = vst [vmem:[%s590 + $0xdc] sm:$0xf] %v701
                  %v703 = vld [vmem:[%s589 + $0x1c0] sm:$0xf]
                  %704 = vst [vmem:[%s590 + $0xe0] sm:$0xf] %v703
                  %v705 = vld [vmem:[%s589 + $0x1c8] sm:$0xf]
                  %706 = vst [vmem:[%s590 + $0xe4] sm:$0xf] %v705
                  %v707 = vld [vmem:[%s589 + $0x1d0] sm:$0xf]
                  %708 = vst [vmem:[%s590 + $0xe8] sm:$0xf] %v707
                  %v709 = vld [vmem:[%s589 + $0x1d8] sm:$0xf]
                  %710 = vst [vmem:[%s590 + $0xec] sm:$0xf] %v709
                  %v711 = vld [vmem:[%s589 + $0x1e0] sm:$0xf]
                  %712 = vst [vmem:[%s590 + $0xf0] sm:$0xf] %v711
                  %v713 = vld [vmem:[%s589 + $0x1e8] sm:$0xf]
                  %714 = vst [vmem:[%s590 + $0xf4] sm:$0xf] %v713
                  %v715 = vld [vmem:[%s589 + $0x1f0] sm:$0xf]
                  %716 = vst [vmem:[%s590 + $0xf8] sm:$0xf] %v715
                  %v717 = vld [vmem:[%s589 + $0x1f8] sm:$0xf]
                  %718 = vst [vmem:[%s590 + $0xfc] sm:$0xf] %v717
                  %v719 = vld [vmem:[%s589 + $0x200] sm:$0xf]
                  %720 = vst [vmem:[%s590 + $0x100] sm:$0xf] %v719
                  %v721 = vld [vmem:[%s589 + $0x208] sm:$0xf]
                  %722 = vst [vmem:[%s590 + $0x104] sm:$0xf] %v721
                  %v723 = vld [vmem:[%s589 + $0x210] sm:$0xf]
                  %724 = vst [vmem:[%s590 + $0x108] sm:$0xf] %v723
                  %v725 = vld [vmem:[%s589 + $0x218] sm:$0xf]
                  %726 = vst [vmem:[%s590 + $0x10c] sm:$0xf] %v725
                  %v727 = vld [vmem:[%s589 + $0x220] sm:$0xf]
                  %728 = vst [vmem:[%s590 + $0x110] sm:$0xf] %v727
                  %v729 = vld [vmem:[%s589 + $0x228] sm:$0xf]
                  %730 = vst [vmem:[%s590 + $0x114] sm:$0xf] %v729
                  %v731 = vld [vmem:[%s589 + $0x230] sm:$0xf]
                  %732 = vst [vmem:[%s590 + $0x118] sm:$0xf] %v731
                  %v733 = vld [vmem:[%s589 + $0x238] sm:$0xf]
                  %734 = vst [vmem:[%s590 + $0x11c] sm:$0xf] %v733
                  %v735 = vld [vmem:[%s589 + $0x240] sm:$0xf]
                  %736 = vst [vmem:[%s590 + $0x120] sm:$0xf] %v735
                  %v737 = vld [vmem:[%s589 + $0x248] sm:$0xf]
                  %738 = vst [vmem:[%s590 + $0x124] sm:$0xf] %v737
                  %v739 = vld [vmem:[%s589 + $0x250] sm:$0xf]
                  %740 = vst [vmem:[%s590 + $0x128] sm:$0xf] %v739
                  %v741 = vld [vmem:[%s589 + $0x258] sm:$0xf]
                  %742 = vst [vmem:[%s590 + $0x12c] sm:$0xf] %v741
                  %v743 = vld [vmem:[%s589 + $0x260] sm:$0xf]
                  %744 = vst [vmem:[%s590 + $0x130] sm:$0xf] %v743
                  %v745 = vld [vmem:[%s589 + $0x268] sm:$0xf]
                  %746 = vst [vmem:[%s590 + $0x134] sm:$0xf] %v745
                  %v747 = vld [vmem:[%s589 + $0x270] sm:$0xf]
                  %748 = vst [vmem:[%s590 + $0x138] sm:$0xf] %v747
                  %v749 = vld [vmem:[%s589 + $0x278] sm:$0xf]
                  %750 = vst [vmem:[%s590 + $0x13c] sm:$0xf] %v749
                  %v751 = vld [vmem:[%s589 + $0x280] sm:$0xf]
                  %752 = vst [vmem:[%s590 + $0x140] sm:$0xf] %v751
                  %v753 = vld [vmem:[%s589 + $0x288] sm:$0xf]
                  %754 = vst [vmem:[%s590 + $0x144] sm:$0xf] %v753
                  %v755 = vld [vmem:[%s589 + $0x290] sm:$0xf]
                  %756 = vst [vmem:[%s590 + $0x148] sm:$0xf] %v755
                  %v757 = vld [vmem:[%s589 + $0x298] sm:$0xf]
                  %758 = vst [vmem:[%s590 + $0x14c] sm:$0xf] %v757
                  %v759 = vld [vmem:[%s589 + $0x2a0] sm:$0xf]
                  %760 = vst [vmem:[%s590 + $0x150] sm:$0xf] %v759
                  %v761 = vld [vmem:[%s589 + $0x2a8] sm:$0xf]
                  %762 = vst [vmem:[%s590 + $0x154] sm:$0xf] %v761
                  %v763 = vld [vmem:[%s589 + $0x2b0] sm:$0xf]
                  %764 = vst [vmem:[%s590 + $0x158] sm:$0xf] %v763
                  %v765 = vld [vmem:[%s589 + $0x2b8] sm:$0xf]
                  %766 = vst [vmem:[%s590 + $0x15c] sm:$0xf] %v765
                  %v767 = vld [vmem:[%s589 + $0x2c0] sm:$0xf]
                  %768 = vst [vmem:[%s590 + $0x160] sm:$0xf] %v767
                  %v769 = vld [vmem:[%s589 + $0x2c8] sm:$0xf]
                  %770 = vst [vmem:[%s590 + $0x164] sm:$0xf] %v769
                  %v771 = vld [vmem:[%s589 + $0x2d0] sm:$0xf]
                  %772 = vst [vmem:[%s590 + $0x168] sm:$0xf] %v771
                  %v773 = vld [vmem:[%s589 + $0x2d8] sm:$0xf]
                  %774 = vst [vmem:[%s590 + $0x16c] sm:$0xf] %v773
                  %v775 = vld [vmem:[%s589 + $0x2e0] sm:$0xf]
                  %776 = vst [vmem:[%s590 + $0x170] sm:$0xf] %v775
                  %v777 = vld [vmem:[%s589 + $0x2e8] sm:$0xf]
                  %778 = vst [vmem:[%s590 + $0x174] sm:$0xf] %v777
                  %v779 = vld [vmem:[%s589 + $0x2f0] sm:$0xf]
                  %780 = vst [vmem:[%s590 + $0x178] sm:$0xf] %v779
                  %v781 = vld [vmem:[%s589 + $0x2f8] sm:$0xf]
                  %782 = vst [vmem:[%s590 + $0x17c] sm:$0xf] %v781
                  %v783 = vld [vmem:[%s589 + $0x300] sm:$0xf]
                  %784 = vst [vmem:[%s590 + $0x180] sm:$0xf] %v783
                  %v785 = vld [vmem:[%s589 + $0x308] sm:$0xf]
                  %786 = vst [vmem:[%s590 + $0x184] sm:$0xf] %v785
                  %v787 = vld [vmem:[%s589 + $0x310] sm:$0xf]
                  %788 = vst [vmem:[%s590 + $0x188] sm:$0xf] %v787
                  %v789 = vld [vmem:[%s589 + $0x318] sm:$0xf]
                  %790 = vst [vmem:[%s590 + $0x18c] sm:$0xf] %v789
                  %v791 = vld [vmem:[%s589 + $0x320] sm:$0xf]
                  %792 = vst [vmem:[%s590 + $0x190] sm:$0xf] %v791
                  %v793 = vld [vmem:[%s589 + $0x328] sm:$0xf]
                  %794 = vst [vmem:[%s590 + $0x194] sm:$0xf] %v793
                  %v795 = vld [vmem:[%s589 + $0x330] sm:$0xf]
                  %796 = vst [vmem:[%s590 + $0x198] sm:$0xf] %v795
                  %v797 = vld [vmem:[%s589 + $0x338] sm:$0xf]
                  %798 = vst [vmem:[%s590 + $0x19c] sm:$0xf] %v797
                  %v799 = vld [vmem:[%s589 + $0x340] sm:$0xf]
                  %800 = vst [vmem:[%s590 + $0x1a0] sm:$0xf] %v799
                  %v801 = vld [vmem:[%s589 + $0x348] sm:$0xf]
                  %802 = vst [vmem:[%s590 + $0x1a4] sm:$0xf] %v801
                  %v803 = vld [vmem:[%s589 + $0x350] sm:$0xf]
                  %804 = vst [vmem:[%s590 + $0x1a8] sm:$0xf] %v803
                  %v805 = vld [vmem:[%s589 + $0x358] sm:$0xf]
                  %806 = vst [vmem:[%s590 + $0x1ac] sm:$0xf] %v805
                  %v807 = vld [vmem:[%s589 + $0x360] sm:$0xf]
                  %808 = vst [vmem:[%s590 + $0x1b0] sm:$0xf] %v807
                  %v809 = vld [vmem:[%s589 + $0x368] sm:$0xf]
                  %810 = vst [vmem:[%s590 + $0x1b4] sm:$0xf] %v809
                  %v811 = vld [vmem:[%s589 + $0x370] sm:$0xf]
                  %812 = vst [vmem:[%s590 + $0x1b8] sm:$0xf] %v811
                  %v813 = vld [vmem:[%s589 + $0x378] sm:$0xf]
                  %814 = vst [vmem:[%s590 + $0x1bc] sm:$0xf] %v813
                  %v815 = vld [vmem:[%s589 + $0x380] sm:$0xf]
                  %816 = vst [vmem:[%s590 + $0x1c0] sm:$0xf] %v815
                  %v817 = vld [vmem:[%s589 + $0x388] sm:$0xf]
                  %818 = vst [vmem:[%s590 + $0x1c4] sm:$0xf] %v817
                  %v819 = vld [vmem:[%s589 + $0x390] sm:$0xf]
                  %820 = vst [vmem:[%s590 + $0x1c8] sm:$0xf] %v819
                  %v821 = vld [vmem:[%s589 + $0x398] sm:$0xf]
                  %822 = vst [vmem:[%s590 + $0x1cc] sm:$0xf] %v821
                  %v823 = vld [vmem:[%s589 + $0x3a0] sm:$0xf]
                  %824 = vst [vmem:[%s590 + $0x1d0] sm:$0xf] %v823
                  %v825 = vld [vmem:[%s589 + $0x3a8] sm:$0xf]
                  %826 = vst [vmem:[%s590 + $0x1d4] sm:$0xf] %v825
                  %v827 = vld [vmem:[%s589 + $0x3b0] sm:$0xf]
                  %828 = vst [vmem:[%s590 + $0x1d8] sm:$0xf] %v827
                  %v829 = vld [vmem:[%s589 + $0x3b8] sm:$0xf]
                  %830 = vst [vmem:[%s590 + $0x1dc] sm:$0xf] %v829
                  %v831 = vld [vmem:[%s589 + $0x3c0] sm:$0xf]
                  %832 = vst [vmem:[%s590 + $0x1e0] sm:$0xf] %v831
                  %v833 = vld [vmem:[%s589 + $0x3c8] sm:$0xf]
                  %834 = vst [vmem:[%s590 + $0x1e4] sm:$0xf] %v833
                  %v835 = vld [vmem:[%s589 + $0x3d0] sm:$0xf]
                  %836 = vst [vmem:[%s590 + $0x1e8] sm:$0xf] %v835
                  %v837 = vld [vmem:[%s589 + $0x3d8] sm:$0xf]
                  %838 = vst [vmem:[%s590 + $0x1ec] sm:$0xf] %v837
                  %v839 = vld [vmem:[%s589 + $0x3e0] sm:$0xf]
                  %840 = vst [vmem:[%s590 + $0x1f0] sm:$0xf] %v839
                  %v841 = vld [vmem:[%s589 + $0x3e8] sm:$0xf]
                  %842 = vst [vmem:[%s590 + $0x1f4] sm:$0xf] %v841
                  %v843 = vld [vmem:[%s589 + $0x3f0] sm:$0xf]
                  %844 = vst [vmem:[%s590 + $0x1f8] sm:$0xf] %v843
                  %v845 = vld [vmem:[%s589 + $0x3f8] sm:$0xf]
                  %846 = vst [vmem:[%s590 + $0x1fc] sm:$0xf] %v845
                  %v847 = vld [vmem:[%s589 + $0x400] sm:$0xf]
                  %848 = vst [vmem:[%s590 + $0x200] sm:$0xf] %v847
                  %v849 = vld [vmem:[%s589 + $0x408] sm:$0xf]
                  %850 = vst [vmem:[%s590 + $0x204] sm:$0xf] %v849
                  %v851 = vld [vmem:[%s589 + $0x410] sm:$0xf]
                  %852 = vst [vmem:[%s590 + $0x208] sm:$0xf] %v851
                  %v853 = vld [vmem:[%s589 + $0x418] sm:$0xf]
                  %854 = vst [vmem:[%s590 + $0x20c] sm:$0xf] %v853
                  %v855 = vld [vmem:[%s589 + $0x420] sm:$0xf]
                  %856 = vst [vmem:[%s590 + $0x210] sm:$0xf] %v855
                  %v857 = vld [vmem:[%s589 + $0x428] sm:$0xf]
                  %858 = vst [vmem:[%s590 + $0x214] sm:$0xf] %v857
                  %v859 = vld [vmem:[%s589 + $0x430] sm:$0xf]
                  %860 = vst [vmem:[%s590 + $0x218] sm:$0xf] %v859
                  %v861 = vld [vmem:[%s589 + $0x438] sm:$0xf]
                  %862 = vst [vmem:[%s590 + $0x21c] sm:$0xf] %v861
                  %v863 = vld [vmem:[%s589 + $0x440] sm:$0xf]
                  %864 = vst [vmem:[%s590 + $0x220] sm:$0xf] %v863
                  %v865 = vld [vmem:[%s589 + $0x448] sm:$0xf]
                  %866 = vst [vmem:[%s590 + $0x224] sm:$0xf] %v865
                  %v867 = vld [vmem:[%s589 + $0x450] sm:$0xf]
                  %868 = vst [vmem:[%s590 + $0x228] sm:$0xf] %v867
                  %v869 = vld [vmem:[%s589 + $0x458] sm:$0xf]
                  %870 = vst [vmem:[%s590 + $0x22c] sm:$0xf] %v869
                  %v871 = vld [vmem:[%s589 + $0x460] sm:$0xf]
                  %872 = vst [vmem:[%s590 + $0x230] sm:$0xf] %v871
                  %v873 = vld [vmem:[%s589 + $0x468] sm:$0xf]
                  %874 = vst [vmem:[%s590 + $0x234] sm:$0xf] %v873
                  %v875 = vld [vmem:[%s589 + $0x470] sm:$0xf]
                  %876 = vst [vmem:[%s590 + $0x238] sm:$0xf] %v875
                  %v877 = vld [vmem:[%s589 + $0x478] sm:$0xf]
                  %878 = vst [vmem:[%s590 + $0x23c] sm:$0xf] %v877
                  %v879 = vld [vmem:[%s589 + $0x480] sm:$0xf]
                  %880 = vst [vmem:[%s590 + $0x240] sm:$0xf] %v879
                  %v881 = vld [vmem:[%s589 + $0x488] sm:$0xf]
                  %882 = vst [vmem:[%s590 + $0x244] sm:$0xf] %v881
                  %v883 = vld [vmem:[%s589 + $0x490] sm:$0xf]
                  %884 = vst [vmem:[%s590 + $0x248] sm:$0xf] %v883
                  %v885 = vld [vmem:[%s589 + $0x498] sm:$0xf]
                  %886 = vst [vmem:[%s590 + $0x24c] sm:$0xf] %v885
                  %v887 = vld [vmem:[%s589 + $0x4a0] sm:$0xf]
                  %888 = vst [vmem:[%s590 + $0x250] sm:$0xf] %v887
                  %v889 = vld [vmem:[%s589 + $0x4a8] sm:$0xf]
                  %890 = vst [vmem:[%s590 + $0x254] sm:$0xf] %v889
                  %v891 = vld [vmem:[%s589 + $0x4b0] sm:$0xf]
                  %892 = vst [vmem:[%s590 + $0x258] sm:$0xf] %v891
                  %v893 = vld [vmem:[%s589 + $0x4b8] sm:$0xf]
                  %894 = vst [vmem:[%s590 + $0x25c] sm:$0xf] %v893
                  %v895 = vld [vmem:[%s589 + $0x4c0] sm:$0xf]
                  %896 = vst [vmem:[%s590 + $0x260] sm:$0xf] %v895
                  %v897 = vld [vmem:[%s589 + $0x4c8] sm:$0xf]
                  %898 = vst [vmem:[%s590 + $0x264] sm:$0xf] %v897
                  %v899 = vld [vmem:[%s589 + $0x4d0] sm:$0xf]
                  %900 = vst [vmem:[%s590 + $0x268] sm:$0xf] %v899
                  %v901 = vld [vmem:[%s589 + $0x4d8] sm:$0xf]
                  %902 = vst [vmem:[%s590 + $0x26c] sm:$0xf] %v901
                  %v903 = vld [vmem:[%s589 + $0x4e0] sm:$0xf]
                  %904 = vst [vmem:[%s590 + $0x270] sm:$0xf] %v903
                  %v905 = vld [vmem:[%s589 + $0x4e8] sm:$0xf]
                  %906 = vst [vmem:[%s590 + $0x274] sm:$0xf] %v905
                  %v907 = vld [vmem:[%s589 + $0x4f0] sm:$0xf]
                  %908 = vst [vmem:[%s590 + $0x278] sm:$0xf] %v907
                  %v909 = vld [vmem:[%s589 + $0x4f8] sm:$0xf]
                  %910 = vst [vmem:[%s590 + $0x27c] sm:$0xf] %v909
                  %v911 = vld [vmem:[%s589 + $0x500] sm:$0xf]
                  %912 = vst [vmem:[%s590 + $0x280] sm:$0xf] %v911
                  %v913 = vld [vmem:[%s589 + $0x508] sm:$0xf]
                  %914 = vst [vmem:[%s590 + $0x284] sm:$0xf] %v913
                  %v915 = vld [vmem:[%s589 + $0x510] sm:$0xf]
                  %916 = vst [vmem:[%s590 + $0x288] sm:$0xf] %v915
                  %v917 = vld [vmem:[%s589 + $0x518] sm:$0xf]
                  %918 = vst [vmem:[%s590 + $0x28c] sm:$0xf] %v917
                  %v919 = vld [vmem:[%s589 + $0x520] sm:$0xf]
                  %920 = vst [vmem:[%s590 + $0x290] sm:$0xf] %v919
                  %v921 = vld [vmem:[%s589 + $0x528] sm:$0xf]
                  %922 = vst [vmem:[%s590 + $0x294] sm:$0xf] %v921
                  %v923 = vld [vmem:[%s589 + $0x530] sm:$0xf]
                  %924 = vst [vmem:[%s590 + $0x298] sm:$0xf] %v923
                  %v925 = vld [vmem:[%s589 + $0x538] sm:$0xf]
                  %926 = vst [vmem:[%s590 + $0x29c] sm:$0xf] %v925
                  %v927 = vld [vmem:[%s589 + $0x540] sm:$0xf]
                  %928 = vst [vmem:[%s590 + $0x2a0] sm:$0xf] %v927
                  %v929 = vld [vmem:[%s589 + $0x548] sm:$0xf]
                  %930 = vst [vmem:[%s590 + $0x2a4] sm:$0xf] %v929
                  %v931 = vld [vmem:[%s589 + $0x550] sm:$0xf]
                  %932 = vst [vmem:[%s590 + $0x2a8] sm:$0xf] %v931
                  %v933 = vld [vmem:[%s589 + $0x558] sm:$0xf]
                  %934 = vst [vmem:[%s590 + $0x2ac] sm:$0xf] %v933
                  %v935 = vld [vmem:[%s589 + $0x560] sm:$0xf]
                  %936 = vst [vmem:[%s590 + $0x2b0] sm:$0xf] %v935
                  %v937 = vld [vmem:[%s589 + $0x568] sm:$0xf]
                  %938 = vst [vmem:[%s590 + $0x2b4] sm:$0xf] %v937
                  %v939 = vld [vmem:[%s589 + $0x570] sm:$0xf]
                  %940 = vst [vmem:[%s590 + $0x2b8] sm:$0xf] %v939
                  %v941 = vld [vmem:[%s589 + $0x578] sm:$0xf]
                  %942 = vst [vmem:[%s590 + $0x2bc] sm:$0xf] %v941
                  %v943 = vld [vmem:[%s589 + $0x580] sm:$0xf]
                  %944 = vst [vmem:[%s590 + $0x2c0] sm:$0xf] %v943
                  %v945 = vld [vmem:[%s589 + $0x588] sm:$0xf]
                  %946 = vst [vmem:[%s590 + $0x2c4] sm:$0xf] %v945
                  %v947 = vld [vmem:[%s589 + $0x590] sm:$0xf]
                  %948 = vst [vmem:[%s590 + $0x2c8] sm:$0xf] %v947
                  %v949 = vld [vmem:[%s589 + $0x598] sm:$0xf]
                  %950 = vst [vmem:[%s590 + $0x2cc] sm:$0xf] %v949
                  %v951 = vld [vmem:[%s589 + $0x5a0] sm:$0xf]
                  %952 = vst [vmem:[%s590 + $0x2d0] sm:$0xf] %v951
                  %v953 = vld [vmem:[%s589 + $0x5a8] sm:$0xf]
                  %954 = vst [vmem:[%s590 + $0x2d4] sm:$0xf] %v953
                  %v955 = vld [vmem:[%s589 + $0x5b0] sm:$0xf]
                  %956 = vst [vmem:[%s590 + $0x2d8] sm:$0xf] %v955
                  %v957 = vld [vmem:[%s589 + $0x5b8] sm:$0xf]
                  %958 = vst [vmem:[%s590 + $0x2dc] sm:$0xf] %v957
                  %v959 = vld [vmem:[%s589 + $0x5c0] sm:$0xf]
                  %960 = vst [vmem:[%s590 + $0x2e0] sm:$0xf] %v959
                  %v961 = vld [vmem:[%s589 + $0x5c8] sm:$0xf]
                  %962 = vst [vmem:[%s590 + $0x2e4] sm:$0xf] %v961
                  %v963 = vld [vmem:[%s589 + $0x5d0] sm:$0xf]
                  %964 = vst [vmem:[%s590 + $0x2e8] sm:$0xf] %v963
                  %v965 = vld [vmem:[%s589 + $0x5d8] sm:$0xf]
                  %966 = vst [vmem:[%s590 + $0x2ec] sm:$0xf] %v965
                  %v967 = vld [vmem:[%s589 + $0x5e0] sm:$0xf]
                  %968 = vst [vmem:[%s590 + $0x2f0] sm:$0xf] %v967
                  %v969 = vld [vmem:[%s589 + $0x5e8] sm:$0xf]
                  %970 = vst [vmem:[%s590 + $0x2f4] sm:$0xf] %v969
                  %v971 = vld [vmem:[%s589 + $0x5f0] sm:$0xf]
                  %972 = vst [vmem:[%s590 + $0x2f8] sm:$0xf] %v971
                  %v973 = vld [vmem:[%s589 + $0x5f8] sm:$0xf]
                  %974 = vst [vmem:[%s590 + $0x2fc] sm:$0xf] %v973
                  %v975 = vld [vmem:[%s589 + $0x600] sm:$0xf]
                  %976 = vst [vmem:[%s590 + $0x300] sm:$0xf] %v975
                  %v977 = vld [vmem:[%s589 + $0x608] sm:$0xf]
                  %978 = vst [vmem:[%s590 + $0x304] sm:$0xf] %v977
                  %v979 = vld [vmem:[%s589 + $0x610] sm:$0xf]
                  %980 = vst [vmem:[%s590 + $0x308] sm:$0xf] %v979
                  %v981 = vld [vmem:[%s589 + $0x618] sm:$0xf]
                  %982 = vst [vmem:[%s590 + $0x30c] sm:$0xf] %v981
                $region59: #{deepmind_forward.7} parent=46 // loop_footer
                  %s588 = sadd.s32 1, %s584
                $region60: #{deepmind_forward.7} parent=46 // loop_footer_branch
                  %583 = sbr.rel target = $region56
                $region61: #{deepmind_forward.7} parent=46 // loop_exit
                  _
              $region47: #{deepmind_forward.7} parent=31 // pred_fallthru
                _
            $region32: #{deepmind_forward.7} parent=27 // pred_fallthru
              _
            // Predicated region
            $region33: #{deepmind_forward.7} parent=27 // pred_check
              _
            $region34: #{deepmind_forward.7} parent=27 // pred_check_branch
              %170 = sbr.rel (0) target = $region36
            $region35: #{deepmind_forward.7} parent=27 // pred_region
              loop: start=0, step=1, limit=1
              $region37: #{deepmind_forward.7} parent=35 // loop_pre_header
                _
              $region38: #{deepmind_forward.7} parent=35 // loop_header
                %s173 = sphi 0, %s177
                %p174 = scmp.ge.s32.totalorder %s173, 1
                %s178 = sphi %s164, %s164
                %s179 = sphi %s162, %s162
              $region39: #{deepmind_forward.7} parent=35 // loop_header_branch
                %176 = sbr.rel (%p174) target = $region43
              $region40: #{deepmind_forward.7} parent=35 // loop_body
                %v180 = vld [vmem:[%s178] sm:$0xf]
                %181 = vst [vmem:[%s179] sm:$0xf] %v180
                %v182 = vld [vmem:[%s178 + $0x8] sm:$0xf]
                %183 = vst [vmem:[%s179 + $0x4] sm:$0xf] %v182
                %v184 = vld [vmem:[%s178 + $0x10] sm:$0xf]
                %185 = vst [vmem:[%s179 + $0x8] sm:$0xf] %v184
                %v186 = vld [vmem:[%s178 + $0x18] sm:$0xf]
                %187 = vst [vmem:[%s179 + $0xc] sm:$0xf] %v186
                %v188 = vld [vmem:[%s178 + $0x20] sm:$0xf]
                %189 = vst [vmem:[%s179 + $0x10] sm:$0xf] %v188
                %v190 = vld [vmem:[%s178 + $0x28] sm:$0xf]
                %191 = vst [vmem:[%s179 + $0x14] sm:$0xf] %v190
                %v192 = vld [vmem:[%s178 + $0x30] sm:$0xf]
                %193 = vst [vmem:[%s179 + $0x18] sm:$0xf] %v192
                %v194 = vld [vmem:[%s178 + $0x38] sm:$0xf]
                %195 = vst [vmem:[%s179 + $0x1c] sm:$0xf] %v194
                %v196 = vld [vmem:[%s178 + $0x40] sm:$0xf]
                %197 = vst [vmem:[%s179 + $0x20] sm:$0xf] %v196
                %v198 = vld [vmem:[%s178 + $0x48] sm:$0xf]
                %199 = vst [vmem:[%s179 + $0x24] sm:$0xf] %v198
                %v200 = vld [vmem:[%s178 + $0x50] sm:$0xf]
                %201 = vst [vmem:[%s179 + $0x28] sm:$0xf] %v200
                %v202 = vld [vmem:[%s178 + $0x58] sm:$0xf]
                %203 = vst [vmem:[%s179 + $0x2c] sm:$0xf] %v202
                %v204 = vld [vmem:[%s178 + $0x60] sm:$0xf]
                %205 = vst [vmem:[%s179 + $0x30] sm:$0xf] %v204
                %v206 = vld [vmem:[%s178 + $0x68] sm:$0xf]
                %207 = vst [vmem:[%s179 + $0x34] sm:$0xf] %v206
                %v208 = vld [vmem:[%s178 + $0x70] sm:$0xf]
                %209 = vst [vmem:[%s179 + $0x38] sm:$0xf] %v208
                %v210 = vld [vmem:[%s178 + $0x78] sm:$0xf]
                %211 = vst [vmem:[%s179 + $0x3c] sm:$0xf] %v210
                %v212 = vld [vmem:[%s178 + $0x80] sm:$0xf]
                %213 = vst [vmem:[%s179 + $0x40] sm:$0xf] %v212
                %v214 = vld [vmem:[%s178 + $0x88] sm:$0xf]
                %215 = vst [vmem:[%s179 + $0x44] sm:$0xf] %v214
                %v216 = vld [vmem:[%s178 + $0x90] sm:$0xf]
                %217 = vst [vmem:[%s179 + $0x48] sm:$0xf] %v216
                %v218 = vld [vmem:[%s178 + $0x98] sm:$0xf]
                %219 = vst [vmem:[%s179 + $0x4c] sm:$0xf] %v218
                %v220 = vld [vmem:[%s178 + $0xa0] sm:$0xf]
                %221 = vst [vmem:[%s179 + $0x50] sm:$0xf] %v220
                %v222 = vld [vmem:[%s178 + $0xa8] sm:$0xf]
                %223 = vst [vmem:[%s179 + $0x54] sm:$0xf] %v222
                %v224 = vld [vmem:[%s178 + $0xb0] sm:$0xf]
                %225 = vst [vmem:[%s179 + $0x58] sm:$0xf] %v224
                %v226 = vld [vmem:[%s178 + $0xb8] sm:$0xf]
                %227 = vst [vmem:[%s179 + $0x5c] sm:$0xf] %v226
                %v228 = vld [vmem:[%s178 + $0xc0] sm:$0xf]
                %229 = vst [vmem:[%s179 + $0x60] sm:$0xf] %v228
                %v230 = vld [vmem:[%s178 + $0xc8] sm:$0xf]
                %231 = vst [vmem:[%s179 + $0x64] sm:$0xf] %v230
                %v232 = vld [vmem:[%s178 + $0xd0] sm:$0xf]
                %233 = vst [vmem:[%s179 + $0x68] sm:$0xf] %v232
                %v234 = vld [vmem:[%s178 + $0xd8] sm:$0xf]
                %235 = vst [vmem:[%s179 + $0x6c] sm:$0xf] %v234
                %v236 = vld [vmem:[%s178 + $0xe0] sm:$0xf]
                %237 = vst [vmem:[%s179 + $0x70] sm:$0xf] %v236
                %v238 = vld [vmem:[%s178 + $0xe8] sm:$0xf]
                %239 = vst [vmem:[%s179 + $0x74] sm:$0xf] %v238
                %v240 = vld [vmem:[%s178 + $0xf0] sm:$0xf]
                %241 = vst [vmem:[%s179 + $0x78] sm:$0xf] %v240
                %v242 = vld [vmem:[%s178 + $0xf8] sm:$0xf]
                %243 = vst [vmem:[%s179 + $0x7c] sm:$0xf] %v242
                %v244 = vld [vmem:[%s178 + $0x100] sm:$0xf]
                %245 = vst [vmem:[%s179 + $0x80] sm:$0xf] %v244
                %v246 = vld [vmem:[%s178 + $0x108] sm:$0xf]
                %247 = vst [vmem:[%s179 + $0x84] sm:$0xf] %v246
                %v248 = vld [vmem:[%s178 + $0x110] sm:$0xf]
                %249 = vst [vmem:[%s179 + $0x88] sm:$0xf] %v248
                %v250 = vld [vmem:[%s178 + $0x118] sm:$0xf]
                %251 = vst [vmem:[%s179 + $0x8c] sm:$0xf] %v250
                %v252 = vld [vmem:[%s178 + $0x120] sm:$0xf]
                %253 = vst [vmem:[%s179 + $0x90] sm:$0xf] %v252
                %v254 = vld [vmem:[%s178 + $0x128] sm:$0xf]
                %255 = vst [vmem:[%s179 + $0x94] sm:$0xf] %v254
                %v256 = vld [vmem:[%s178 + $0x130] sm:$0xf]
                %257 = vst [vmem:[%s179 + $0x98] sm:$0xf] %v256
                %v258 = vld [vmem:[%s178 + $0x138] sm:$0xf]
                %259 = vst [vmem:[%s179 + $0x9c] sm:$0xf] %v258
                %v260 = vld [vmem:[%s178 + $0x140] sm:$0xf]
                %261 = vst [vmem:[%s179 + $0xa0] sm:$0xf] %v260
                %v262 = vld [vmem:[%s178 + $0x148] sm:$0xf]
                %263 = vst [vmem:[%s179 + $0xa4] sm:$0xf] %v262
                %v264 = vld [vmem:[%s178 + $0x150] sm:$0xf]
                %265 = vst [vmem:[%s179 + $0xa8] sm:$0xf] %v264
                %v266 = vld [vmem:[%s178 + $0x158] sm:$0xf]
                %267 = vst [vmem:[%s179 + $0xac] sm:$0xf] %v266
                %v268 = vld [vmem:[%s178 + $0x160] sm:$0xf]
                %269 = vst [vmem:[%s179 + $0xb0] sm:$0xf] %v268
                %v270 = vld [vmem:[%s178 + $0x168] sm:$0xf]
                %271 = vst [vmem:[%s179 + $0xb4] sm:$0xf] %v270
                %v272 = vld [vmem:[%s178 + $0x170] sm:$0xf]
                %273 = vst [vmem:[%s179 + $0xb8] sm:$0xf] %v272
                %v274 = vld [vmem:[%s178 + $0x178] sm:$0xf]
                %275 = vst [vmem:[%s179 + $0xbc] sm:$0xf] %v274
                %v276 = vld [vmem:[%s178 + $0x180] sm:$0xf]
                %277 = vst [vmem:[%s179 + $0xc0] sm:$0xf] %v276
                %v278 = vld [vmem:[%s178 + $0x188] sm:$0xf]
                %279 = vst [vmem:[%s179 + $0xc4] sm:$0xf] %v278
                %v280 = vld [vmem:[%s178 + $0x190] sm:$0xf]
                %281 = vst [vmem:[%s179 + $0xc8] sm:$0xf] %v280
                %v282 = vld [vmem:[%s178 + $0x198] sm:$0xf]
                %283 = vst [vmem:[%s179 + $0xcc] sm:$0xf] %v282
                %v284 = vld [vmem:[%s178 + $0x1a0] sm:$0xf]
                %285 = vst [vmem:[%s179 + $0xd0] sm:$0xf] %v284
                %v286 = vld [vmem:[%s178 + $0x1a8] sm:$0xf]
                %287 = vst [vmem:[%s179 + $0xd4] sm:$0xf] %v286
                %v288 = vld [vmem:[%s178 + $0x1b0] sm:$0xf]
                %289 = vst [vmem:[%s179 + $0xd8] sm:$0xf] %v288
                %v290 = vld [vmem:[%s178 + $0x1b8] sm:$0xf]
                %291 = vst [vmem:[%s179 + $0xdc] sm:$0xf] %v290
                %v292 = vld [vmem:[%s178 + $0x1c0] sm:$0xf]
                %293 = vst [vmem:[%s179 + $0xe0] sm:$0xf] %v292
                %v294 = vld [vmem:[%s178 + $0x1c8] sm:$0xf]
                %295 = vst [vmem:[%s179 + $0xe4] sm:$0xf] %v294
                %v296 = vld [vmem:[%s178 + $0x1d0] sm:$0xf]
                %297 = vst [vmem:[%s179 + $0xe8] sm:$0xf] %v296
                %v298 = vld [vmem:[%s178 + $0x1d8] sm:$0xf]
                %299 = vst [vmem:[%s179 + $0xec] sm:$0xf] %v298
                %v300 = vld [vmem:[%s178 + $0x1e0] sm:$0xf]
                %301 = vst [vmem:[%s179 + $0xf0] sm:$0xf] %v300
                %v302 = vld [vmem:[%s178 + $0x1e8] sm:$0xf]
                %303 = vst [vmem:[%s179 + $0xf4] sm:$0xf] %v302
                %v304 = vld [vmem:[%s178 + $0x1f0] sm:$0xf]
                %305 = vst [vmem:[%s179 + $0xf8] sm:$0xf] %v304
                %v306 = vld [vmem:[%s178 + $0x1f8] sm:$0xf]
                %307 = vst [vmem:[%s179 + $0xfc] sm:$0xf] %v306
                %v308 = vld [vmem:[%s178 + $0x200] sm:$0xf]
                %309 = vst [vmem:[%s179 + $0x100] sm:$0xf] %v308
                %v310 = vld [vmem:[%s178 + $0x208] sm:$0xf]
                %311 = vst [vmem:[%s179 + $0x104] sm:$0xf] %v310
                %v312 = vld [vmem:[%s178 + $0x210] sm:$0xf]
                %313 = vst [vmem:[%s179 + $0x108] sm:$0xf] %v312
                %v314 = vld [vmem:[%s178 + $0x218] sm:$0xf]
                %315 = vst [vmem:[%s179 + $0x10c] sm:$0xf] %v314
                %v316 = vld [vmem:[%s178 + $0x220] sm:$0xf]
                %317 = vst [vmem:[%s179 + $0x110] sm:$0xf] %v316
                %v318 = vld [vmem:[%s178 + $0x228] sm:$0xf]
                %319 = vst [vmem:[%s179 + $0x114] sm:$0xf] %v318
                %v320 = vld [vmem:[%s178 + $0x230] sm:$0xf]
                %321 = vst [vmem:[%s179 + $0x118] sm:$0xf] %v320
                %v322 = vld [vmem:[%s178 + $0x238] sm:$0xf]
                %323 = vst [vmem:[%s179 + $0x11c] sm:$0xf] %v322
                %v324 = vld [vmem:[%s178 + $0x240] sm:$0xf]
                %325 = vst [vmem:[%s179 + $0x120] sm:$0xf] %v324
                %v326 = vld [vmem:[%s178 + $0x248] sm:$0xf]
                %327 = vst [vmem:[%s179 + $0x124] sm:$0xf] %v326
                %v328 = vld [vmem:[%s178 + $0x250] sm:$0xf]
                %329 = vst [vmem:[%s179 + $0x128] sm:$0xf] %v328
                %v330 = vld [vmem:[%s178 + $0x258] sm:$0xf]
                %331 = vst [vmem:[%s179 + $0x12c] sm:$0xf] %v330
                %v332 = vld [vmem:[%s178 + $0x260] sm:$0xf]
                %333 = vst [vmem:[%s179 + $0x130] sm:$0xf] %v332
                %v334 = vld [vmem:[%s178 + $0x268] sm:$0xf]
                %335 = vst [vmem:[%s179 + $0x134] sm:$0xf] %v334
                %v336 = vld [vmem:[%s178 + $0x270] sm:$0xf]
                %337 = vst [vmem:[%s179 + $0x138] sm:$0xf] %v336
                %v338 = vld [vmem:[%s178 + $0x278] sm:$0xf]
                %339 = vst [vmem:[%s179 + $0x13c] sm:$0xf] %v338
                %v340 = vld [vmem:[%s178 + $0x280] sm:$0xf]
                %341 = vst [vmem:[%s179 + $0x140] sm:$0xf] %v340
                %v342 = vld [vmem:[%s178 + $0x288] sm:$0xf]
                %343 = vst [vmem:[%s179 + $0x144] sm:$0xf] %v342
                %v344 = vld [vmem:[%s178 + $0x290] sm:$0xf]
                %345 = vst [vmem:[%s179 + $0x148] sm:$0xf] %v344
                %v346 = vld [vmem:[%s178 + $0x298] sm:$0xf]
                %347 = vst [vmem:[%s179 + $0x14c] sm:$0xf] %v346
                %v348 = vld [vmem:[%s178 + $0x2a0] sm:$0xf]
                %349 = vst [vmem:[%s179 + $0x150] sm:$0xf] %v348
                %v350 = vld [vmem:[%s178 + $0x2a8] sm:$0xf]
                %351 = vst [vmem:[%s179 + $0x154] sm:$0xf] %v350
                %v352 = vld [vmem:[%s178 + $0x2b0] sm:$0xf]
                %353 = vst [vmem:[%s179 + $0x158] sm:$0xf] %v352
                %v354 = vld [vmem:[%s178 + $0x2b8] sm:$0xf]
                %355 = vst [vmem:[%s179 + $0x15c] sm:$0xf] %v354
                %v356 = vld [vmem:[%s178 + $0x2c0] sm:$0xf]
                %357 = vst [vmem:[%s179 + $0x160] sm:$0xf] %v356
                %v358 = vld [vmem:[%s178 + $0x2c8] sm:$0xf]
                %359 = vst [vmem:[%s179 + $0x164] sm:$0xf] %v358
                %v360 = vld [vmem:[%s178 + $0x2d0] sm:$0xf]
                %361 = vst [vmem:[%s179 + $0x168] sm:$0xf] %v360
                %v362 = vld [vmem:[%s178 + $0x2d8] sm:$0xf]
                %363 = vst [vmem:[%s179 + $0x16c] sm:$0xf] %v362
                %v364 = vld [vmem:[%s178 + $0x2e0] sm:$0xf]
                %365 = vst [vmem:[%s179 + $0x170] sm:$0xf] %v364
                %v366 = vld [vmem:[%s178 + $0x2e8] sm:$0xf]
                %367 = vst [vmem:[%s179 + $0x174] sm:$0xf] %v366
                %v368 = vld [vmem:[%s178 + $0x2f0] sm:$0xf]
                %369 = vst [vmem:[%s179 + $0x178] sm:$0xf] %v368
                %v370 = vld [vmem:[%s178 + $0x2f8] sm:$0xf]
                %371 = vst [vmem:[%s179 + $0x17c] sm:$0xf] %v370
                %v372 = vld [vmem:[%s178 + $0x300] sm:$0xf]
                %373 = vst [vmem:[%s179 + $0x180] sm:$0xf] %v372
                %v374 = vld [vmem:[%s178 + $0x308] sm:$0xf]
                %375 = vst [vmem:[%s179 + $0x184] sm:$0xf] %v374
                %v376 = vld [vmem:[%s178 + $0x310] sm:$0xf]
                %377 = vst [vmem:[%s179 + $0x188] sm:$0xf] %v376
                %v378 = vld [vmem:[%s178 + $0x318] sm:$0xf]
                %379 = vst [vmem:[%s179 + $0x18c] sm:$0xf] %v378
                %v380 = vld [vmem:[%s178 + $0x320] sm:$0xf]
                %381 = vst [vmem:[%s179 + $0x190] sm:$0xf] %v380
                %v382 = vld [vmem:[%s178 + $0x328] sm:$0xf]
                %383 = vst [vmem:[%s179 + $0x194] sm:$0xf] %v382
                %v384 = vld [vmem:[%s178 + $0x330] sm:$0xf]
                %385 = vst [vmem:[%s179 + $0x198] sm:$0xf] %v384
                %v386 = vld [vmem:[%s178 + $0x338] sm:$0xf]
                %387 = vst [vmem:[%s179 + $0x19c] sm:$0xf] %v386
                %v388 = vld [vmem:[%s178 + $0x340] sm:$0xf]
                %389 = vst [vmem:[%s179 + $0x1a0] sm:$0xf] %v388
                %v390 = vld [vmem:[%s178 + $0x348] sm:$0xf]
                %391 = vst [vmem:[%s179 + $0x1a4] sm:$0xf] %v390
                %v392 = vld [vmem:[%s178 + $0x350] sm:$0xf]
                %393 = vst [vmem:[%s179 + $0x1a8] sm:$0xf] %v392
                %v394 = vld [vmem:[%s178 + $0x358] sm:$0xf]
                %395 = vst [vmem:[%s179 + $0x1ac] sm:$0xf] %v394
                %v396 = vld [vmem:[%s178 + $0x360] sm:$0xf]
                %397 = vst [vmem:[%s179 + $0x1b0] sm:$0xf] %v396
                %v398 = vld [vmem:[%s178 + $0x368] sm:$0xf]
                %399 = vst [vmem:[%s179 + $0x1b4] sm:$0xf] %v398
                %v400 = vld [vmem:[%s178 + $0x370] sm:$0xf]
                %401 = vst [vmem:[%s179 + $0x1b8] sm:$0xf] %v400
                %v402 = vld [vmem:[%s178 + $0x378] sm:$0xf]
                %403 = vst [vmem:[%s179 + $0x1bc] sm:$0xf] %v402
                %v404 = vld [vmem:[%s178 + $0x380] sm:$0xf]
                %405 = vst [vmem:[%s179 + $0x1c0] sm:$0xf] %v404
                %v406 = vld [vmem:[%s178 + $0x388] sm:$0xf]
                %407 = vst [vmem:[%s179 + $0x1c4] sm:$0xf] %v406
                %v408 = vld [vmem:[%s178 + $0x390] sm:$0xf]
                %409 = vst [vmem:[%s179 + $0x1c8] sm:$0xf] %v408
                %v410 = vld [vmem:[%s178 + $0x398] sm:$0xf]
                %411 = vst [vmem:[%s179 + $0x1cc] sm:$0xf] %v410
                %v412 = vld [vmem:[%s178 + $0x3a0] sm:$0xf]
                %413 = vst [vmem:[%s179 + $0x1d0] sm:$0xf] %v412
                %v414 = vld [vmem:[%s178 + $0x3a8] sm:$0xf]
                %415 = vst [vmem:[%s179 + $0x1d4] sm:$0xf] %v414
                %v416 = vld [vmem:[%s178 + $0x3b0] sm:$0xf]
                %417 = vst [vmem:[%s179 + $0x1d8] sm:$0xf] %v416
                %v418 = vld [vmem:[%s178 + $0x3b8] sm:$0xf]
                %419 = vst [vmem:[%s179 + $0x1dc] sm:$0xf] %v418
                %v420 = vld [vmem:[%s178 + $0x3c0] sm:$0xf]
                %421 = vst [vmem:[%s179 + $0x1e0] sm:$0xf] %v420
                %v422 = vld [vmem:[%s178 + $0x3c8] sm:$0xf]
                %423 = vst [vmem:[%s179 + $0x1e4] sm:$0xf] %v422
                %v424 = vld [vmem:[%s178 + $0x3d0] sm:$0xf]
                %425 = vst [vmem:[%s179 + $0x1e8] sm:$0xf] %v424
                %v426 = vld [vmem:[%s178 + $0x3d8] sm:$0xf]
                %427 = vst [vmem:[%s179 + $0x1ec] sm:$0xf] %v426
                %v428 = vld [vmem:[%s178 + $0x3e0] sm:$0xf]
                %429 = vst [vmem:[%s179 + $0x1f0] sm:$0xf] %v428
                %v430 = vld [vmem:[%s178 + $0x3e8] sm:$0xf]
                %431 = vst [vmem:[%s179 + $0x1f4] sm:$0xf] %v430
                %v432 = vld [vmem:[%s178 + $0x3f0] sm:$0xf]
                %433 = vst [vmem:[%s179 + $0x1f8] sm:$0xf] %v432
                %v434 = vld [vmem:[%s178 + $0x3f8] sm:$0xf]
                %435 = vst [vmem:[%s179 + $0x1fc] sm:$0xf] %v434
                %v436 = vld [vmem:[%s178 + $0x400] sm:$0xf]
                %437 = vst [vmem:[%s179 + $0x200] sm:$0xf] %v436
                %v438 = vld [vmem:[%s178 + $0x408] sm:$0xf]
                %439 = vst [vmem:[%s179 + $0x204] sm:$0xf] %v438
                %v440 = vld [vmem:[%s178 + $0x410] sm:$0xf]
                %441 = vst [vmem:[%s179 + $0x208] sm:$0xf] %v440
                %v442 = vld [vmem:[%s178 + $0x418] sm:$0xf]
                %443 = vst [vmem:[%s179 + $0x20c] sm:$0xf] %v442
                %v444 = vld [vmem:[%s178 + $0x420] sm:$0xf]
                %445 = vst [vmem:[%s179 + $0x210] sm:$0xf] %v444
                %v446 = vld [vmem:[%s178 + $0x428] sm:$0xf]
                %447 = vst [vmem:[%s179 + $0x214] sm:$0xf] %v446
                %v448 = vld [vmem:[%s178 + $0x430] sm:$0xf]
                %449 = vst [vmem:[%s179 + $0x218] sm:$0xf] %v448
                %v450 = vld [vmem:[%s178 + $0x438] sm:$0xf]
                %451 = vst [vmem:[%s179 + $0x21c] sm:$0xf] %v450
                %v452 = vld [vmem:[%s178 + $0x440] sm:$0xf]
                %453 = vst [vmem:[%s179 + $0x220] sm:$0xf] %v452
                %v454 = vld [vmem:[%s178 + $0x448] sm:$0xf]
                %455 = vst [vmem:[%s179 + $0x224] sm:$0xf] %v454
                %v456 = vld [vmem:[%s178 + $0x450] sm:$0xf]
                %457 = vst [vmem:[%s179 + $0x228] sm:$0xf] %v456
                %v458 = vld [vmem:[%s178 + $0x458] sm:$0xf]
                %459 = vst [vmem:[%s179 + $0x22c] sm:$0xf] %v458
                %v460 = vld [vmem:[%s178 + $0x460] sm:$0xf]
                %461 = vst [vmem:[%s179 + $0x230] sm:$0xf] %v460
                %v462 = vld [vmem:[%s178 + $0x468] sm:$0xf]
                %463 = vst [vmem:[%s179 + $0x234] sm:$0xf] %v462
                %v464 = vld [vmem:[%s178 + $0x470] sm:$0xf]
                %465 = vst [vmem:[%s179 + $0x238] sm:$0xf] %v464
                %v466 = vld [vmem:[%s178 + $0x478] sm:$0xf]
                %467 = vst [vmem:[%s179 + $0x23c] sm:$0xf] %v466
                %v468 = vld [vmem:[%s178 + $0x480] sm:$0xf]
                %469 = vst [vmem:[%s179 + $0x240] sm:$0xf] %v468
                %v470 = vld [vmem:[%s178 + $0x488] sm:$0xf]
                %471 = vst [vmem:[%s179 + $0x244] sm:$0xf] %v470
                %v472 = vld [vmem:[%s178 + $0x490] sm:$0xf]
                %473 = vst [vmem:[%s179 + $0x248] sm:$0xf] %v472
                %v474 = vld [vmem:[%s178 + $0x498] sm:$0xf]
                %475 = vst [vmem:[%s179 + $0x24c] sm:$0xf] %v474
                %v476 = vld [vmem:[%s178 + $0x4a0] sm:$0xf]
                %477 = vst [vmem:[%s179 + $0x250] sm:$0xf] %v476
                %v478 = vld [vmem:[%s178 + $0x4a8] sm:$0xf]
                %479 = vst [vmem:[%s179 + $0x254] sm:$0xf] %v478
                %v480 = vld [vmem:[%s178 + $0x4b0] sm:$0xf]
                %481 = vst [vmem:[%s179 + $0x258] sm:$0xf] %v480
                %v482 = vld [vmem:[%s178 + $0x4b8] sm:$0xf]
                %483 = vst [vmem:[%s179 + $0x25c] sm:$0xf] %v482
                %v484 = vld [vmem:[%s178 + $0x4c0] sm:$0xf]
                %485 = vst [vmem:[%s179 + $0x260] sm:$0xf] %v484
                %v486 = vld [vmem:[%s178 + $0x4c8] sm:$0xf]
                %487 = vst [vmem:[%s179 + $0x264] sm:$0xf] %v486
                %v488 = vld [vmem:[%s178 + $0x4d0] sm:$0xf]
                %489 = vst [vmem:[%s179 + $0x268] sm:$0xf] %v488
                %v490 = vld [vmem:[%s178 + $0x4d8] sm:$0xf]
                %491 = vst [vmem:[%s179 + $0x26c] sm:$0xf] %v490
                %v492 = vld [vmem:[%s178 + $0x4e0] sm:$0xf]
                %493 = vst [vmem:[%s179 + $0x270] sm:$0xf] %v492
                %v494 = vld [vmem:[%s178 + $0x4e8] sm:$0xf]
                %495 = vst [vmem:[%s179 + $0x274] sm:$0xf] %v494
                %v496 = vld [vmem:[%s178 + $0x4f0] sm:$0xf]
                %497 = vst [vmem:[%s179 + $0x278] sm:$0xf] %v496
                %v498 = vld [vmem:[%s178 + $0x4f8] sm:$0xf]
                %499 = vst [vmem:[%s179 + $0x27c] sm:$0xf] %v498
                %v500 = vld [vmem:[%s178 + $0x500] sm:$0xf]
                %501 = vst [vmem:[%s179 + $0x280] sm:$0xf] %v500
                %v502 = vld [vmem:[%s178 + $0x508] sm:$0xf]
                %503 = vst [vmem:[%s179 + $0x284] sm:$0xf] %v502
                %v504 = vld [vmem:[%s178 + $0x510] sm:$0xf]
                %505 = vst [vmem:[%s179 + $0x288] sm:$0xf] %v504
                %v506 = vld [vmem:[%s178 + $0x518] sm:$0xf]
                %507 = vst [vmem:[%s179 + $0x28c] sm:$0xf] %v506
                %v508 = vld [vmem:[%s178 + $0x520] sm:$0xf]
                %509 = vst [vmem:[%s179 + $0x290] sm:$0xf] %v508
                %v510 = vld [vmem:[%s178 + $0x528] sm:$0xf]
                %511 = vst [vmem:[%s179 + $0x294] sm:$0xf] %v510
                %v512 = vld [vmem:[%s178 + $0x530] sm:$0xf]
                %513 = vst [vmem:[%s179 + $0x298] sm:$0xf] %v512
                %v514 = vld [vmem:[%s178 + $0x538] sm:$0xf]
                %515 = vst [vmem:[%s179 + $0x29c] sm:$0xf] %v514
                %v516 = vld [vmem:[%s178 + $0x540] sm:$0xf]
                %517 = vst [vmem:[%s179 + $0x2a0] sm:$0xf] %v516
                %v518 = vld [vmem:[%s178 + $0x548] sm:$0xf]
                %519 = vst [vmem:[%s179 + $0x2a4] sm:$0xf] %v518
                %v520 = vld [vmem:[%s178 + $0x550] sm:$0xf]
                %521 = vst [vmem:[%s179 + $0x2a8] sm:$0xf] %v520
                %v522 = vld [vmem:[%s178 + $0x558] sm:$0xf]
                %523 = vst [vmem:[%s179 + $0x2ac] sm:$0xf] %v522
                %v524 = vld [vmem:[%s178 + $0x560] sm:$0xf]
                %525 = vst [vmem:[%s179 + $0x2b0] sm:$0xf] %v524
                %v526 = vld [vmem:[%s178 + $0x568] sm:$0xf]
                %527 = vst [vmem:[%s179 + $0x2b4] sm:$0xf] %v526
                %v528 = vld [vmem:[%s178 + $0x570] sm:$0xf]
                %529 = vst [vmem:[%s179 + $0x2b8] sm:$0xf] %v528
                %v530 = vld [vmem:[%s178 + $0x578] sm:$0xf]
                %531 = vst [vmem:[%s179 + $0x2bc] sm:$0xf] %v530
                %v532 = vld [vmem:[%s178 + $0x580] sm:$0xf]
                %533 = vst [vmem:[%s179 + $0x2c0] sm:$0xf] %v532
                %v534 = vld [vmem:[%s178 + $0x588] sm:$0xf]
                %535 = vst [vmem:[%s179 + $0x2c4] sm:$0xf] %v534
                %v536 = vld [vmem:[%s178 + $0x590] sm:$0xf]
                %537 = vst [vmem:[%s179 + $0x2c8] sm:$0xf] %v536
                %v538 = vld [vmem:[%s178 + $0x598] sm:$0xf]
                %539 = vst [vmem:[%s179 + $0x2cc] sm:$0xf] %v538
                %v540 = vld [vmem:[%s178 + $0x5a0] sm:$0xf]
                %541 = vst [vmem:[%s179 + $0x2d0] sm:$0xf] %v540
                %v542 = vld [vmem:[%s178 + $0x5a8] sm:$0xf]
                %543 = vst [vmem:[%s179 + $0x2d4] sm:$0xf] %v542
                %v544 = vld [vmem:[%s178 + $0x5b0] sm:$0xf]
                %545 = vst [vmem:[%s179 + $0x2d8] sm:$0xf] %v544
                %v546 = vld [vmem:[%s178 + $0x5b8] sm:$0xf]
                %547 = vst [vmem:[%s179 + $0x2dc] sm:$0xf] %v546
                %v548 = vld [vmem:[%s178 + $0x5c0] sm:$0xf]
                %549 = vst [vmem:[%s179 + $0x2e0] sm:$0xf] %v548
                %v550 = vld [vmem:[%s178 + $0x5c8] sm:$0xf]
                %551 = vst [vmem:[%s179 + $0x2e4] sm:$0xf] %v550
                %v552 = vld [vmem:[%s178 + $0x5d0] sm:$0xf]
                %553 = vst [vmem:[%s179 + $0x2e8] sm:$0xf] %v552
                %v554 = vld [vmem:[%s178 + $0x5d8] sm:$0xf]
                %555 = vst [vmem:[%s179 + $0x2ec] sm:$0xf] %v554
                %v556 = vld [vmem:[%s178 + $0x5e0] sm:$0xf]
                %557 = vst [vmem:[%s179 + $0x2f0] sm:$0xf] %v556
                %v558 = vld [vmem:[%s178 + $0x5e8] sm:$0xf]
                %559 = vst [vmem:[%s179 + $0x2f4] sm:$0xf] %v558
                %v560 = vld [vmem:[%s178 + $0x5f0] sm:$0xf]
                %561 = vst [vmem:[%s179 + $0x2f8] sm:$0xf] %v560
                %v562 = vld [vmem:[%s178 + $0x5f8] sm:$0xf]
                %563 = vst [vmem:[%s179 + $0x2fc] sm:$0xf] %v562
                %v564 = vld [vmem:[%s178 + $0x600] sm:$0xf]
                %565 = vst [vmem:[%s179 + $0x300] sm:$0xf] %v564
                %v566 = vld [vmem:[%s178 + $0x608] sm:$0xf]
                %567 = vst [vmem:[%s179 + $0x304] sm:$0xf] %v566
                %v568 = vld [vmem:[%s178 + $0x610] sm:$0xf]
                %569 = vst [vmem:[%s179 + $0x308] sm:$0xf] %v568
                %v570 = vld [vmem:[%s178 + $0x618] sm:$0xf]
                %571 = vst [vmem:[%s179 + $0x30c] sm:$0xf] %v570
              $region41: #{deepmind_forward.7} parent=35 // loop_footer
                %s177 = sadd.s32 1, %s173
              $region42: #{deepmind_forward.7} parent=35 // loop_footer_branch
                %172 = sbr.rel target = $region38
              $region43: #{deepmind_forward.7} parent=35 // loop_exit
                _
            $region36: #{deepmind_forward.7} parent=27 // pred_fallthru
              _
          $region28: #{deepmind_forward.7} parent=23 // pred_fallthru
            _
          %983 = vnop
        $region24: #{deepmind_forward.7} parent=19 // pred_fallthru
          _
        // Predicated region
        $region62: #{deepmind_forward.7} parent=19 // pred_check
          %p984 = pneg %p93
        $region63: #{deepmind_forward.7} parent=19 // pred_check_branch
          %986 = sbr.rel (%p984) target = $region65
        $region64: #{deepmind_forward.7} parent=19 // pred_region
          %p987 = scmp.lt.s32.totalorder %s17, 1
          %s988 = scalar_select %p987, %s17, 1
          %s989 = scalar_lea.vmem %s2, %s988
        $region65: #{deepmind_forward.7} parent=19 // pred_fallthru
          _
      $region20: #{deepmind_forward.7} parent=5 // pred_fallthru
        _
      %p990 = scmp.le.s32.totalorder 1, %s9
      %p991 = scmp.lt.s32.totalorder %s9, 3
      %p992 = pnand %p990, %p991
      %p993 = pneg %p992
      // Predicated region
      $region66: #{deepmind_forward.7} parent=5 // pred_check
        _
      $region67: #{deepmind_forward.7} parent=5 // pred_check_branch
        %995 = sbr.rel (%p992) target = $region69
      $region68: #{deepmind_forward.7} parent=5 // pred_region
        %s996 = ssub.s32 %s9, 1
        %s997 = sand.u32 %s60, 1
        %s998 = sand.u32 %s60, 1
        %s999 = smul.addr %s998, 784
        %s1000 = scalar_lea.vmem [#allocation2], %s999
        // Predicated region
        $region70: #{deepmind_forward.7} parent=68 // pred_check
          %p1001 = pneg %p73
        $region71: #{deepmind_forward.7} parent=68 // pred_check_branch
          %1003 = sbr.rel (%p1001) target = $region73
        $region72: #{deepmind_forward.7} parent=68 // pred_region
          _
        $region73: #{deepmind_forward.7} parent=68 // pred_fallthru
          _
        %s1004 = smul.u32 2, %s18
        %p1005 = scmp.lt.s32.totalorder %s1004, 1
        %s1006 = scalar_select %p1005, %s1004, 1
        %s1007 = smul.addr %s1006, 13
        %s1008 = smul.addr %s1007, 4
        %s1009 = scalar_lea.vmem %s0, %s1008
        %p1010 = pneg %p47
        %p1011 = pneg %p44
        %s1012 = sand.u32 %s60, 1
        %s1013 = sand.u32 %s60, 1
        %s1014 = smul.addr %s1013, 784
        %s1015 = scalar_lea.vmem [#allocation2], %s1014
        %p1016 = pneg %p73
        %p1017 = pneg %p70
        %p1018 = scmp.lt.s32.totalorder %s19, 1
        %s1019 = scalar_select %p1018, %s19, 1
        %s1020 = scalar_lea.vmem %s2, %s1019
        %p1021 = pneg %p99
        %p1022 = pneg %p96
        %p1023 = pneg %p127
        %p1024 = pneg %p124
        %s1025 = sand.u32 %s114, 1
        %s1026 = sand.u32 %s114, 1
        %s1027 = smul.addr %s1026, 16
        %s1028 = scalar_lea.vmem [#allocation3], %s1027
        %s1029 = smul.u32 2, %s18
        %p1030 = scmp.lt.s32.totalorder %s1029, 1
        %s1031 = scalar_select %p1030, %s1029, 1
        %s1032 = smul.addr %s1031, 13
        %s1033 = smul.addr %s1032, 4
        %s1034 = scalar_lea.vmem %s0, %s1033
        %s1035 = smul.u32 2, %s18
        %p1036 = scmp.lt.s32.totalorder %s19, 1
        %s1037 = scalar_select %p1036, %s19, 1
        %s1038 = scalar_lea.vmem %s2, %s1037
        %s1039 = smul.u32 2, %s18
        %v1041 = vld [vmem:[%s1034] sm:$0xff]
        %v1042 = vld [vmem:[%s1034 + $0x8] sm:$0xff]
        %v1043 = vld [vmem:[%s1034 + $0x10] sm:$0xff]
        %v1044 = vld [vmem:[%s1034 + $0x18] sm:$0xff]
        %v1045 = vld [vmem:[%s1034 + $0x20] sm:$0xff]
        %v1046 = vld [vmem:[%s1034 + $0x28] sm:$0xff]
        %v1047 = vld [vmem:[%s1034 + $0x30] sm:$0xf]
        %v1048 = vld [vmem:[%s1034 + $0x34] sm:$0xff]
        %v1049 = vld [vmem:[%s1034 + $0x3c] sm:$0xff]
        %v1050 = vld [vmem:[%s1034 + $0x44] sm:$0xff]
        %v1051 = vld [vmem:[%s1034 + $0x4c] sm:$0xff]
        %v1052 = vld [vmem:[%s1034 + $0x54] sm:$0xff]
        %v1053 = vld [vmem:[%s1034 + $0x5c] sm:$0xff]
        %v1054 = vld [vmem:[%s1034 + $0x64] sm:$0xf]
        %v1055 = vld [vmem:[%s1000] sm:$0xf]
        %v1056 = vld [vmem:[%s1000 + $0x4] sm:$0xf]
        %v1057 = vld [vmem:[%s1000 + $0x8] sm:$0xf]
        %v1058 = vld [vmem:[%s1000 + $0xc] sm:$0xf]
        %v1059 = vld [vmem:[%s1000 + $0x10] sm:$0xf]
        %v1060 = vld [vmem:[%s1000 + $0x14] sm:$0xf]
        %v1061 = vld [vmem:[%s1000 + $0x18] sm:$0xf]
        %v1062 = vld [vmem:[%s1000 + $0x1c] sm:$0xf]
        %v1063 = vld [vmem:[%s1000 + $0x20] sm:$0xf]
        %v1064 = vld [vmem:[%s1000 + $0x24] sm:$0xf]
        %v1065 = vld [vmem:[%s1000 + $0x28] sm:$0xf]
        %v1066 = vld [vmem:[%s1000 + $0x2c] sm:$0xf]
        %v1067 = vld [vmem:[%s1000 + $0x30] sm:$0xf]
        %v1068 = vld [vmem:[%s1000 + $0x34] sm:$0xf]
        %v1069 = vld [vmem:[%s1000 + $0x38] sm:$0xf]
        %v1070 = vld [vmem:[%s1000 + $0x3c] sm:$0xf]
        %v1071 = vld [vmem:[%s1000 + $0x40] sm:$0xf]
        %v1072 = vld [vmem:[%s1000 + $0x44] sm:$0xf]
        %v1073 = vld [vmem:[%s1000 + $0x48] sm:$0xf]
        %v1074 = vld [vmem:[%s1000 + $0x4c] sm:$0xf]
        %v1075 = vld [vmem:[%s1000 + $0x50] sm:$0xf]
        %v1076 = vld [vmem:[%s1000 + $0x54] sm:$0xf]
        %v1077 = vld [vmem:[%s1000 + $0x58] sm:$0xf]
        %v1078 = vld [vmem:[%s1000 + $0x5c] sm:$0xf]
        %v1079 = vld [vmem:[%s1000 + $0x60] sm:$0xf]
        %v1080 = vld [vmem:[%s1000 + $0x64] sm:$0xf]
        %v1081 = vld [vmem:[%s1000 + $0x68] sm:$0xf]
        %v1082 = vld [vmem:[%s1000 + $0x6c] sm:$0xf]
        %v1083 = vld [vmem:[%s1000 + $0x70] sm:$0xf]
        %v1084 = vld [vmem:[%s1000 + $0x74] sm:$0xf]
        %v1085 = vld [vmem:[%s1000 + $0x78] sm:$0xf]
        %v1086 = vld [vmem:[%s1000 + $0x7c] sm:$0xf]
        %v1087 = vld [vmem:[%s1000 + $0x80] sm:$0xf]
        %v1088 = vld [vmem:[%s1000 + $0x84] sm:$0xf]
        %v1089 = vld [vmem:[%s1000 + $0x88] sm:$0xf]
        %v1090 = vld [vmem:[%s1000 + $0x8c] sm:$0xf]
        %v1091 = vld [vmem:[%s1000 + $0x90] sm:$0xf]
        %v1092 = vld [vmem:[%s1000 + $0x94] sm:$0xf]
        %v1093 = vld [vmem:[%s1000 + $0x98] sm:$0xf]
        %v1094 = vld [vmem:[%s1000 + $0x9c] sm:$0xf]
        %v1095 = vld [vmem:[%s1000 + $0xa0] sm:$0xf]
        %v1096 = vld [vmem:[%s1000 + $0xa4] sm:$0xf]
        %v1097 = vld [vmem:[%s1000 + $0xa8] sm:$0xf]
        %v1098 = vld [vmem:[%s1000 + $0xac] sm:$0xf]
        %v1099 = vld [vmem:[%s1000 + $0xb0] sm:$0xf]
        %v1100 = vld [vmem:[%s1000 + $0xb4] sm:$0xf]
        %v1101 = vld [vmem:[%s1000 + $0xb8] sm:$0xf]
        %v1102 = vld [vmem:[%s1000 + $0xbc] sm:$0xf]
        %v1103 = vld [vmem:[%s1000 + $0xc0] sm:$0xf]
        %v1104 = vld [vmem:[%s1000 + $0xc4] sm:$0xf]
        %v1105 = vld [vmem:[%s1000 + $0xc8] sm:$0xf]
        %v1106 = vld [vmem:[%s1000 + $0xcc] sm:$0xf]
        %v1107 = vld [vmem:[%s1000 + $0xd0] sm:$0xf]
        %v1108 = vld [vmem:[%s1000 + $0xd4] sm:$0xf]
        %v1109 = vld [vmem:[%s1000 + $0xd8] sm:$0xf]
        %v1110 = vld [vmem:[%s1000 + $0xdc] sm:$0xf]
        %v1111 = vld [vmem:[%s1000 + $0xe0] sm:$0xf]
        %v1112 = vld [vmem:[%s1000 + $0xe4] sm:$0xf]
        %v1113 = vld [vmem:[%s1000 + $0xe8] sm:$0xf]
        %v1114 = vld [vmem:[%s1000 + $0xec] sm:$0xf]
        %v1115 = vld [vmem:[%s1000 + $0xf0] sm:$0xf]
        %v1116 = vld [vmem:[%s1000 + $0xf4] sm:$0xf]
        %v1117 = vld [vmem:[%s1000 + $0xf8] sm:$0xf]
        %v1118 = vld [vmem:[%s1000 + $0xfc] sm:$0xf]
        %v1119 = vld [vmem:[%s1000 + $0x100] sm:$0xf]
        %v1120 = vld [vmem:[%s1000 + $0x104] sm:$0xf]
        %v1121 = vld [vmem:[%s1000 + $0x108] sm:$0xf]
        %v1122 = vld [vmem:[%s1000 + $0x10c] sm:$0xf]
        %v1123 = vld [vmem:[%s1000 + $0x110] sm:$0xf]
        %v1124 = vld [vmem:[%s1000 + $0x114] sm:$0xf]
        %v1125 = vld [vmem:[%s1000 + $0x118] sm:$0xf]
        %v1126 = vld [vmem:[%s1000 + $0x11c] sm:$0xf]
        %v1127 = vld [vmem:[%s1000 + $0x120] sm:$0xf]
        %v1128 = vld [vmem:[%s1000 + $0x124] sm:$0xf]
        %v1129 = vld [vmem:[%s1000 + $0x128] sm:$0xf]
        %v1130 = vld [vmem:[%s1000 + $0x12c] sm:$0xf]
        %v1131 = vld [vmem:[%s1000 + $0x130] sm:$0xf]
        %v1132 = vld [vmem:[%s1000 + $0x134] sm:$0xf]
        %v1133 = vld [vmem:[%s1000 + $0x138] sm:$0xf]
        %v1134 = vld [vmem:[%s1000 + $0x13c] sm:$0xf]
        %v1135 = vld [vmem:[%s1000 + $0x140] sm:$0xf]
        %v1136 = vld [vmem:[%s1000 + $0x144] sm:$0xf]
        %v1137 = vld [vmem:[%s1000 + $0x148] sm:$0xf]
        %v1138 = vld [vmem:[%s1000 + $0x14c] sm:$0xf]
        %v1139 = vld [vmem:[%s1000 + $0x150] sm:$0xf]
        %v1140 = vld [vmem:[%s1000 + $0x154] sm:$0xf]
        %v1141 = vld [vmem:[%s1000 + $0x158] sm:$0xf]
        %v1142 = vld [vmem:[%s1000 + $0x15c] sm:$0xf]
        %v1143 = vld [vmem:[%s1000 + $0x160] sm:$0xf]
        %v1144 = vld [vmem:[%s1000 + $0x164] sm:$0xf]
        %v1145 = vld [vmem:[%s1000 + $0x168] sm:$0xf]
        %v1146 = vld [vmem:[%s1000 + $0x16c] sm:$0xf]
        %v1147 = vld [vmem:[%s1000 + $0x170] sm:$0xf]
        %v1148 = vld [vmem:[%s1000 + $0x174] sm:$0xf]
        %v1149 = vld [vmem:[%s1000 + $0x178] sm:$0xf]
        %v1150 = vld [vmem:[%s1000 + $0x17c] sm:$0xf]
        %v1151 = vld [vmem:[%s1000 + $0x180] sm:$0xf]
        %v1152 = vld [vmem:[%s1000 + $0x184] sm:$0xf]
        %v1153 = vld [vmem:[%s1000 + $0x188] sm:$0xf]
        %v1154 = vld [vmem:[%s1000 + $0x18c] sm:$0xf]
        %v1155 = vld [vmem:[%s1000 + $0x190] sm:$0xf]
        %v1156 = vld [vmem:[%s1000 + $0x194] sm:$0xf]
        %v1157 = vld [vmem:[%s1000 + $0x198] sm:$0xf]
        %v1158 = vld [vmem:[%s1000 + $0x19c] sm:$0xf]
        %v1159 = vld [vmem:[%s1000 + $0x1a0] sm:$0xf]
        %v1160 = vld [vmem:[%s1000 + $0x1a4] sm:$0xf]
        %v1161 = vld [vmem:[%s1000 + $0x1a8] sm:$0xf]
        %v1162 = vld [vmem:[%s1000 + $0x1ac] sm:$0xf]
        %v1163 = vld [vmem:[%s1000 + $0x1b0] sm:$0xf]
        %v1164 = vld [vmem:[%s1000 + $0x1b4] sm:$0xf]
        %v1165 = vld [vmem:[%s1000 + $0x1b8] sm:$0xf]
        %v1166 = vld [vmem:[%s1000 + $0x1bc] sm:$0xf]
        %v1167 = vld [vmem:[%s1000 + $0x1c0] sm:$0xf]
        %v1168 = vld [vmem:[%s1000 + $0x1c4] sm:$0xf]
        %v1169 = vld [vmem:[%s1000 + $0x1c8] sm:$0xf]
        %v1170 = vld [vmem:[%s1000 + $0x1cc] sm:$0xf]
        %v1171 = vld [vmem:[%s1000 + $0x1d0] sm:$0xf]
        %v1172 = vld [vmem:[%s1000 + $0x1d4] sm:$0xf]
        %v1173 = vld [vmem:[%s1000 + $0x1d8] sm:$0xf]
        %v1174 = vld [vmem:[%s1000 + $0x1dc] sm:$0xf]
        %v1175 = vld [vmem:[%s1000 + $0x1e0] sm:$0xf]
        %v1176 = vld [vmem:[%s1000 + $0x1e4] sm:$0xf]
        %v1177 = vld [vmem:[%s1000 + $0x1e8] sm:$0xf]
        %v1178 = vld [vmem:[%s1000 + $0x1ec] sm:$0xf]
        %v1179 = vld [vmem:[%s1000 + $0x1f0] sm:$0xf]
        %v1180 = vld [vmem:[%s1000 + $0x1f4] sm:$0xf]
        %v1181 = vld [vmem:[%s1000 + $0x1f8] sm:$0xf]
        %v1182 = vld [vmem:[%s1000 + $0x1fc] sm:$0xf]
        %v1183 = vld [vmem:[%s1000 + $0x200] sm:$0xf]
        %v1184 = vld [vmem:[%s1000 + $0x204] sm:$0xf]
        %v1185 = vld [vmem:[%s1000 + $0x208] sm:$0xf]
        %v1186 = vld [vmem:[%s1000 + $0x20c] sm:$0xf]
        %v1187 = vld [vmem:[%s1000 + $0x210] sm:$0xf]
        %v1188 = vld [vmem:[%s1000 + $0x214] sm:$0xf]
        %v1189 = vld [vmem:[%s1000 + $0x218] sm:$0xf]
        %v1190 = vld [vmem:[%s1000 + $0x21c] sm:$0xf]
        %v1191 = vld [vmem:[%s1000 + $0x220] sm:$0xf]
        %v1192 = vld [vmem:[%s1000 + $0x224] sm:$0xf]
        %v1193 = vld [vmem:[%s1000 + $0x228] sm:$0xf]
        %v1194 = vld [vmem:[%s1000 + $0x22c] sm:$0xf]
        %v1195 = vld [vmem:[%s1000 + $0x230] sm:$0xf]
        %v1196 = vld [vmem:[%s1000 + $0x234] sm:$0xf]
        %v1197 = vld [vmem:[%s1000 + $0x238] sm:$0xf]
        %v1198 = vld [vmem:[%s1000 + $0x23c] sm:$0xf]
        %v1199 = vld [vmem:[%s1000 + $0x240] sm:$0xf]
        %v1200 = vld [vmem:[%s1000 + $0x244] sm:$0xf]
        %v1201 = vld [vmem:[%s1000 + $0x248] sm:$0xf]
        %v1202 = vld [vmem:[%s1000 + $0x24c] sm:$0xf]
        %v1203 = vld [vmem:[%s1000 + $0x250] sm:$0xf]
        %v1204 = vld [vmem:[%s1000 + $0x254] sm:$0xf]
        %v1205 = vld [vmem:[%s1000 + $0x258] sm:$0xf]
        %v1206 = vld [vmem:[%s1000 + $0x25c] sm:$0xf]
        %v1207 = vld [vmem:[%s1000 + $0x260] sm:$0xf]
        %v1208 = vld [vmem:[%s1000 + $0x264] sm:$0xf]
        %v1209 = vld [vmem:[%s1000 + $0x268] sm:$0xf]
        %v1210 = vld [vmem:[%s1000 + $0x26c] sm:$0xf]
        %v1211 = vld [vmem:[%s1000 + $0x270] sm:$0xf]
        %v1212 = vld [vmem:[%s1000 + $0x274] sm:$0xf]
        %v1213 = vld [vmem:[%s1000 + $0x278] sm:$0xf]
        %v1214 = vld [vmem:[%s1000 + $0x27c] sm:$0xf]
        %v1215 = vld [vmem:[%s1000 + $0x280] sm:$0xf]
        %v1216 = vld [vmem:[%s1000 + $0x284] sm:$0xf]
        %v1217 = vld [vmem:[%s1000 + $0x288] sm:$0xf]
        %v1218 = vld [vmem:[%s1000 + $0x28c] sm:$0xf]
        %v1219 = vld [vmem:[%s1000 + $0x290] sm:$0xf]
        %v1220 = vld [vmem:[%s1000 + $0x294] sm:$0xf]
        %v1221 = vld [vmem:[%s1000 + $0x298] sm:$0xf]
        %v1222 = vld [vmem:[%s1000 + $0x29c] sm:$0xf]
        %v1223 = vld [vmem:[%s1000 + $0x2a0] sm:$0xf]
        %v1224 = vld [vmem:[%s1000 + $0x2a4] sm:$0xf]
        %v1225 = vld [vmem:[%s1000 + $0x2a8] sm:$0xf]
        %v1226 = vld [vmem:[%s1000 + $0x2ac] sm:$0xf]
        %v1227 = vld [vmem:[%s1000 + $0x2b0] sm:$0xf]
        %v1228 = vld [vmem:[%s1000 + $0x2b4] sm:$0xf]
        %v1229 = vld [vmem:[%s1000 + $0x2b8] sm:$0xf]
        %v1230 = vld [vmem:[%s1000 + $0x2bc] sm:$0xf]
        %v1231 = vld [vmem:[%s1000 + $0x2c0] sm:$0xf]
        %v1232 = vld [vmem:[%s1000 + $0x2c4] sm:$0xf]
        %v1233 = vld [vmem:[%s1000 + $0x2c8] sm:$0xf]
        %v1234 = vld [vmem:[%s1000 + $0x2cc] sm:$0xf]
        %v1235 = vld [vmem:[%s1000 + $0x2d0] sm:$0xf]
        %v1236 = vld [vmem:[%s1000 + $0x2d4] sm:$0xf]
        %v1237 = vld [vmem:[%s1000 + $0x2d8] sm:$0xf]
        %v1238 = vld [vmem:[%s1000 + $0x2dc] sm:$0xf]
        %v1239 = vld [vmem:[%s1000 + $0x2e0] sm:$0xf]
        %v1240 = vld [vmem:[%s1000 + $0x2e4] sm:$0xf]
        %v1241 = vld [vmem:[%s1000 + $0x2e8] sm:$0xf]
        %v1242 = vld [vmem:[%s1000 + $0x2ec] sm:$0xf]
        %v1243 = vld [vmem:[%s1000 + $0x2f0] sm:$0xf]
        %v1244 = vld [vmem:[%s1000 + $0x2f4] sm:$0xf]
        %v1245 = vld [vmem:[%s1000 + $0x2f8] sm:$0xf]
        %v1246 = vld [vmem:[%s1000 + $0x2fc] sm:$0xf]
        %v1247 = vld [vmem:[%s1000 + $0x300] sm:$0xf]
        %v1248 = vld [vmem:[%s1000 + $0x304] sm:$0xf]
        %v1249 = vld [vmem:[%s1000 + $0x308] sm:$0xf]
        %v1250 = vld [vmem:[%s1000 + $0x30c] sm:$0xf]
        %v1251 = vld [vmem:[%s1038] sm:$0x1]
        %v1253 = vlaneseq
        %v1254 = vshrl.u32 %v1253, 7
        %v1255 = vsub.s32 0, %v1254
        %v1256 = vrot.slane %v1251, %v1255
        %v1272 = vunpack.c.l.b16 %v1041
        %v1273 = vunpack.c.h.b16 %v1041
        %v1274 = vunpack.c.l.b16 %v1042
        %v1275 = vunpack.c.h.b16 %v1042
        %v1276 = vunpack.c.l.b16 %v1043
        %v1277 = vunpack.c.h.b16 %v1043
        %v1278 = vunpack.c.l.b16 %v1044
        %v1279 = vunpack.c.h.b16 %v1044
        %v1280 = vunpack.c.l.b16 %v1045
        %v1281 = vunpack.c.h.b16 %v1045
        %v1282 = vunpack.c.l.b16 %v1046
        %v1283 = vunpack.c.h.b16 %v1046
        %v1284 = vunpack.c.l.b16 %v1047
        %v1285 = vunpack.c.l.b16 %v1048
        %v1286 = vunpack.c.h.b16 %v1048
        %v1287 = vunpack.c.l.b16 %v1049
        %v1288 = vunpack.c.h.b16 %v1049
        %v1289 = vunpack.c.l.b16 %v1050
        %v1290 = vunpack.c.h.b16 %v1050
        %v1291 = vunpack.c.l.b16 %v1051
        %v1292 = vunpack.c.h.b16 %v1051
        %v1293 = vunpack.c.l.b16 %v1052
        %v1294 = vunpack.c.h.b16 %v1052
        %v1295 = vunpack.c.l.b16 %v1053
        %v1296 = vunpack.c.h.b16 %v1053
        %v1297 = vunpack.c.l.b16 %v1054
        %v1298 = vpack.c.b16 %v1285, %v1272
        %v1299 = vpack.c.b16 %v1286, %v1273
        %v1300 = vpack.c.b16 %v1287, %v1274
        %v1301 = vpack.c.b16 %v1288, %v1275
        %v1302 = vpack.c.b16 %v1289, %v1276
        %v1303 = vpack.c.b16 %v1290, %v1277
        %v1304 = vpack.c.b16 %v1291, %v1278
        %v1305 = vpack.c.b16 %v1292, %v1279
        %v1306 = vpack.c.b16 %v1293, %v1280
        %v1307 = vpack.c.b16 %v1294, %v1281
        %v1308 = vpack.c.b16 %v1295, %v1282
        %v1309 = vpack.c.b16 %v1296, %v1283
        %v1310 = vpack.c.b16 %v1297, %v1284
        %v1519 = vunpack.c.l.b16 %v1055
        %v1520 = vunpack.c.l.b16 %v1056
        %v1521 = vunpack.c.l.b16 %v1057
        %v1522 = vunpack.c.l.b16 %v1058
        %v1523 = vunpack.c.l.b16 %v1059
        %v1524 = vunpack.c.l.b16 %v1060
        %v1525 = vunpack.c.l.b16 %v1061
        %v1526 = vunpack.c.l.b16 %v1062
        %v1527 = vunpack.c.l.b16 %v1063
        %v1528 = vunpack.c.l.b16 %v1064
        %v1529 = vunpack.c.l.b16 %v1065
        %v1530 = vunpack.c.l.b16 %v1066
        %v1531 = vunpack.c.l.b16 %v1067
        %v1532 = vunpack.c.l.b16 %v1068
        %v1533 = vunpack.c.l.b16 %v1069
        %v1534 = vunpack.c.l.b16 %v1070
        %v1535 = vunpack.c.l.b16 %v1071
        %v1536 = vunpack.c.l.b16 %v1072
        %v1537 = vunpack.c.l.b16 %v1073
        %v1538 = vunpack.c.l.b16 %v1074
        %v1539 = vunpack.c.l.b16 %v1075
        %v1540 = vunpack.c.l.b16 %v1076
        %v1541 = vunpack.c.l.b16 %v1077
        %v1542 = vunpack.c.l.b16 %v1078
        %v1543 = vunpack.c.l.b16 %v1079
        %v1544 = vunpack.c.l.b16 %v1080
        %v1545 = vunpack.c.l.b16 %v1081
        %v1546 = vunpack.c.l.b16 %v1082
        %v1547 = vunpack.c.l.b16 %v1083
        %v1548 = vunpack.c.l.b16 %v1084
        %v1549 = vunpack.c.l.b16 %v1085
        %v1550 = vunpack.c.l.b16 %v1086
        %v1551 = vunpack.c.l.b16 %v1087
        %v1552 = vunpack.c.l.b16 %v1088
        %v1553 = vunpack.c.l.b16 %v1089
        %v1554 = vunpack.c.l.b16 %v1090
        %v1555 = vunpack.c.l.b16 %v1091
        %v1556 = vunpack.c.l.b16 %v1092
        %v1557 = vunpack.c.l.b16 %v1093
        %v1558 = vunpack.c.l.b16 %v1094
        %v1559 = vunpack.c.l.b16 %v1095
        %v1560 = vunpack.c.l.b16 %v1096
        %v1561 = vunpack.c.l.b16 %v1097
        %v1562 = vunpack.c.l.b16 %v1098
        %v1563 = vunpack.c.l.b16 %v1099
        %v1564 = vunpack.c.l.b16 %v1100
        %v1565 = vunpack.c.l.b16 %v1101
        %v1566 = vunpack.c.l.b16 %v1102
        %v1567 = vunpack.c.l.b16 %v1103
        %v1568 = vunpack.c.l.b16 %v1104
        %v1569 = vunpack.c.l.b16 %v1105
        %v1570 = vunpack.c.l.b16 %v1106
        %v1571 = vunpack.c.l.b16 %v1107
        %v1572 = vunpack.c.l.b16 %v1108
        %v1573 = vunpack.c.l.b16 %v1109
        %v1574 = vunpack.c.l.b16 %v1110
        %v1575 = vunpack.c.l.b16 %v1111
        %v1576 = vunpack.c.l.b16 %v1112
        %v1577 = vunpack.c.l.b16 %v1113
        %v1578 = vunpack.c.l.b16 %v1114
        %v1579 = vunpack.c.l.b16 %v1115
        %v1580 = vunpack.c.l.b16 %v1116
        %v1581 = vunpack.c.l.b16 %v1117
        %v1582 = vunpack.c.l.b16 %v1118
        %v1583 = vunpack.c.l.b16 %v1119
        %v1584 = vunpack.c.l.b16 %v1120
        %v1585 = vunpack.c.l.b16 %v1121
        %v1586 = vunpack.c.l.b16 %v1122
        %v1587 = vunpack.c.l.b16 %v1123
        %v1588 = vunpack.c.l.b16 %v1124
        %v1589 = vunpack.c.l.b16 %v1125
        %v1590 = vunpack.c.l.b16 %v1126
        %v1591 = vunpack.c.l.b16 %v1127
        %v1592 = vunpack.c.l.b16 %v1128
        %v1593 = vunpack.c.l.b16 %v1129
        %v1594 = vunpack.c.l.b16 %v1130
        %v1595 = vunpack.c.l.b16 %v1131
        %v1596 = vunpack.c.l.b16 %v1132
        %v1597 = vunpack.c.l.b16 %v1133
        %v1598 = vunpack.c.l.b16 %v1134
        %v1599 = vunpack.c.l.b16 %v1135
        %v1600 = vunpack.c.l.b16 %v1136
        %v1601 = vunpack.c.l.b16 %v1137
        %v1602 = vunpack.c.l.b16 %v1138
        %v1603 = vunpack.c.l.b16 %v1139
        %v1604 = vunpack.c.l.b16 %v1140
        %v1605 = vunpack.c.l.b16 %v1141
        %v1606 = vunpack.c.l.b16 %v1142
        %v1607 = vunpack.c.l.b16 %v1143
        %v1608 = vunpack.c.l.b16 %v1144
        %v1609 = vunpack.c.l.b16 %v1145
        %v1610 = vunpack.c.l.b16 %v1146
        %v1611 = vunpack.c.l.b16 %v1147
        %v1612 = vunpack.c.l.b16 %v1148
        %v1613 = vunpack.c.l.b16 %v1149
        %v1614 = vunpack.c.l.b16 %v1150
        %v1615 = vunpack.c.l.b16 %v1151
        %v1616 = vunpack.c.l.b16 %v1152
        %v1617 = vunpack.c.l.b16 %v1153
        %v1618 = vunpack.c.l.b16 %v1154
        %v1619 = vunpack.c.l.b16 %v1155
        %v1620 = vunpack.c.l.b16 %v1156
        %v1621 = vunpack.c.l.b16 %v1157
        %v1622 = vunpack.c.l.b16 %v1158
        %v1623 = vunpack.c.l.b16 %v1159
        %v1624 = vunpack.c.l.b16 %v1160
        %v1625 = vunpack.c.l.b16 %v1161
        %v1626 = vunpack.c.l.b16 %v1162
        %v1627 = vunpack.c.l.b16 %v1163
        %v1628 = vunpack.c.l.b16 %v1164
        %v1629 = vunpack.c.l.b16 %v1165
        %v1630 = vunpack.c.l.b16 %v1166
        %v1631 = vunpack.c.l.b16 %v1167
        %v1632 = vunpack.c.l.b16 %v1168
        %v1633 = vunpack.c.l.b16 %v1169
        %v1634 = vunpack.c.l.b16 %v1170
        %v1635 = vunpack.c.l.b16 %v1171
        %v1636 = vunpack.c.l.b16 %v1172
        %v1637 = vunpack.c.l.b16 %v1173
        %v1638 = vunpack.c.l.b16 %v1174
        %v1639 = vunpack.c.l.b16 %v1175
        %v1640 = vunpack.c.l.b16 %v1176
        %v1641 = vunpack.c.l.b16 %v1177
        %v1642 = vunpack.c.l.b16 %v1178
        %v1643 = vunpack.c.l.b16 %v1179
        %v1644 = vunpack.c.l.b16 %v1180
        %v1645 = vunpack.c.l.b16 %v1181
        %v1646 = vunpack.c.l.b16 %v1182
        %v1647 = vunpack.c.l.b16 %v1183
        %v1648 = vunpack.c.l.b16 %v1184
        %v1649 = vunpack.c.l.b16 %v1185
        %v1650 = vunpack.c.l.b16 %v1186
        %v1651 = vunpack.c.l.b16 %v1187
        %v1652 = vunpack.c.l.b16 %v1188
        %v1653 = vunpack.c.l.b16 %v1189
        %v1654 = vunpack.c.l.b16 %v1190
        %v1655 = vunpack.c.l.b16 %v1191
        %v1656 = vunpack.c.l.b16 %v1192
        %v1657 = vunpack.c.l.b16 %v1193
        %v1658 = vunpack.c.l.b16 %v1194
        %v1659 = vunpack.c.l.b16 %v1195
        %v1660 = vunpack.c.l.b16 %v1196
        %v1661 = vunpack.c.l.b16 %v1197
        %v1662 = vunpack.c.l.b16 %v1198
        %v1663 = vunpack.c.l.b16 %v1199
        %v1664 = vunpack.c.l.b16 %v1200
        %v1665 = vunpack.c.l.b16 %v1201
        %v1666 = vunpack.c.l.b16 %v1202
        %v1667 = vunpack.c.l.b16 %v1203
        %v1668 = vunpack.c.l.b16 %v1204
        %v1669 = vunpack.c.l.b16 %v1205
        %v1670 = vunpack.c.l.b16 %v1206
        %v1671 = vunpack.c.l.b16 %v1207
        %v1672 = vunpack.c.l.b16 %v1208
        %v1673 = vunpack.c.l.b16 %v1209
        %v1674 = vunpack.c.l.b16 %v1210
        %v1675 = vunpack.c.l.b16 %v1211
        %v1676 = vunpack.c.l.b16 %v1212
        %v1677 = vunpack.c.l.b16 %v1213
        %v1678 = vunpack.c.l.b16 %v1214
        %v1679 = vunpack.c.l.b16 %v1215
        %v1680 = vunpack.c.l.b16 %v1216
        %v1681 = vunpack.c.l.b16 %v1217
        %v1682 = vunpack.c.l.b16 %v1218
        %v1683 = vunpack.c.l.b16 %v1219
        %v1684 = vunpack.c.l.b16 %v1220
        %v1685 = vunpack.c.l.b16 %v1221
        %v1686 = vunpack.c.l.b16 %v1222
        %v1687 = vunpack.c.l.b16 %v1223
        %v1688 = vunpack.c.l.b16 %v1224
        %v1689 = vunpack.c.l.b16 %v1225
        %v1690 = vunpack.c.l.b16 %v1226
        %v1691 = vunpack.c.l.b16 %v1227
        %v1692 = vunpack.c.l.b16 %v1228
        %v1693 = vunpack.c.l.b16 %v1229
        %v1694 = vunpack.c.l.b16 %v1230
        %v1695 = vunpack.c.l.b16 %v1231
        %v1696 = vunpack.c.l.b16 %v1232
        %v1697 = vunpack.c.l.b16 %v1233
        %v1698 = vunpack.c.l.b16 %v1234
        %v1699 = vunpack.c.l.b16 %v1235
        %v1700 = vunpack.c.l.b16 %v1236
        %v1701 = vunpack.c.l.b16 %v1237
        %v1702 = vunpack.c.l.b16 %v1238
        %v1703 = vunpack.c.l.b16 %v1239
        %v1704 = vunpack.c.l.b16 %v1240
        %v1705 = vunpack.c.l.b16 %v1241
        %v1706 = vunpack.c.l.b16 %v1242
        %v1707 = vunpack.c.l.b16 %v1243
        %v1708 = vunpack.c.l.b16 %v1244
        %v1709 = vunpack.c.l.b16 %v1245
        %v1710 = vunpack.c.l.b16 %v1246
        %v1711 = vunpack.c.l.b16 %v1247
        %v1712 = vunpack.c.l.b16 %v1248
        %v1713 = vunpack.c.l.b16 %v1249
        %v1714 = vunpack.c.l.b16 %v1250
        %v1715 = vpack.c.b16 %v1520, %v1519
        %v1716 = vpack.c.b16 %v1522, %v1521
        %v1717 = vpack.c.b16 %v1524, %v1523
        %v1718 = vpack.c.b16 %v1526, %v1525
        %v1719 = vpack.c.b16 %v1528, %v1527
        %v1720 = vpack.c.b16 %v1530, %v1529
        %v1721 = vpack.c.b16 %v1532, %v1531
        %v1722 = vpack.c.b16 %v1534, %v1533
        %v1723 = vpack.c.b16 %v1536, %v1535
        %v1724 = vpack.c.b16 %v1538, %v1537
        %v1725 = vpack.c.b16 %v1540, %v1539
        %v1726 = vpack.c.b16 %v1542, %v1541
        %v1727 = vpack.c.b16 %v1544, %v1543
        %v1728 = vpack.c.b16 %v1546, %v1545
        %v1729 = vpack.c.b16 %v1548, %v1547
        %v1730 = vpack.c.b16 %v1550, %v1549
        %v1731 = vpack.c.b16 %v1552, %v1551
        %v1732 = vpack.c.b16 %v1554, %v1553
        %v1733 = vpack.c.b16 %v1556, %v1555
        %v1734 = vpack.c.b16 %v1558, %v1557
        %v1735 = vpack.c.b16 %v1560, %v1559
        %v1736 = vpack.c.b16 %v1562, %v1561
        %v1737 = vpack.c.b16 %v1564, %v1563
        %v1738 = vpack.c.b16 %v1566, %v1565
        %v1739 = vpack.c.b16 %v1568, %v1567
        %v1740 = vpack.c.b16 %v1570, %v1569
        %v1741 = vpack.c.b16 %v1572, %v1571
        %v1742 = vpack.c.b16 %v1574, %v1573
        %v1743 = vpack.c.b16 %v1576, %v1575
        %v1744 = vpack.c.b16 %v1578, %v1577
        %v1745 = vpack.c.b16 %v1580, %v1579
        %v1746 = vpack.c.b16 %v1582, %v1581
        %v1747 = vpack.c.b16 %v1584, %v1583
        %v1748 = vpack.c.b16 %v1586, %v1585
        %v1749 = vpack.c.b16 %v1588, %v1587
        %v1750 = vpack.c.b16 %v1590, %v1589
        %v1751 = vpack.c.b16 %v1592, %v1591
        %v1752 = vpack.c.b16 %v1594, %v1593
        %v1753 = vpack.c.b16 %v1596, %v1595
        %v1754 = vpack.c.b16 %v1598, %v1597
        %v1755 = vpack.c.b16 %v1600, %v1599
        %v1756 = vpack.c.b16 %v1602, %v1601
        %v1757 = vpack.c.b16 %v1604, %v1603
        %v1758 = vpack.c.b16 %v1606, %v1605
        %v1759 = vpack.c.b16 %v1608, %v1607
        %v1760 = vpack.c.b16 %v1610, %v1609
        %v1761 = vpack.c.b16 %v1612, %v1611
        %v1762 = vpack.c.b16 %v1614, %v1613
        %v1763 = vpack.c.b16 %v1616, %v1615
        %v1764 = vpack.c.b16 %v1618, %v1617
        %v1765 = vpack.c.b16 %v1620, %v1619
        %v1766 = vpack.c.b16 %v1622, %v1621
        %v1767 = vpack.c.b16 %v1624, %v1623
        %v1768 = vpack.c.b16 %v1626, %v1625
        %v1769 = vpack.c.b16 %v1628, %v1627
        %v1770 = vpack.c.b16 %v1630, %v1629
        %v1771 = vpack.c.b16 %v1632, %v1631
        %v1772 = vpack.c.b16 %v1634, %v1633
        %v1773 = vpack.c.b16 %v1636, %v1635
        %v1774 = vpack.c.b16 %v1638, %v1637
        %v1775 = vpack.c.b16 %v1640, %v1639
        %v1776 = vpack.c.b16 %v1642, %v1641
        %v1777 = vpack.c.b16 %v1644, %v1643
        %v1778 = vpack.c.b16 %v1646, %v1645
        %v1779 = vpack.c.b16 %v1648, %v1647
        %v1780 = vpack.c.b16 %v1650, %v1649
        %v1781 = vpack.c.b16 %v1652, %v1651
        %v1782 = vpack.c.b16 %v1654, %v1653
        %v1783 = vpack.c.b16 %v1656, %v1655
        %v1784 = vpack.c.b16 %v1658, %v1657
        %v1785 = vpack.c.b16 %v1660, %v1659
        %v1786 = vpack.c.b16 %v1662, %v1661
        %v1787 = vpack.c.b16 %v1664, %v1663
        %v1788 = vpack.c.b16 %v1666, %v1665
        %v1789 = vpack.c.b16 %v1668, %v1667
        %v1790 = vpack.c.b16 %v1670, %v1669
        %v1791 = vpack.c.b16 %v1672, %v1671
        %v1792 = vpack.c.b16 %v1674, %v1673
        %v1793 = vpack.c.b16 %v1676, %v1675
        %v1794 = vpack.c.b16 %v1678, %v1677
        %v1795 = vpack.c.b16 %v1680, %v1679
        %v1796 = vpack.c.b16 %v1682, %v1681
        %v1797 = vpack.c.b16 %v1684, %v1683
        %v1798 = vpack.c.b16 %v1686, %v1685
        %v1799 = vpack.c.b16 %v1688, %v1687
        %v1800 = vpack.c.b16 %v1690, %v1689
        %v1801 = vpack.c.b16 %v1692, %v1691
        %v1802 = vpack.c.b16 %v1694, %v1693
        %v1803 = vpack.c.b16 %v1696, %v1695
        %v1804 = vpack.c.b16 %v1698, %v1697
        %v1805 = vpack.c.b16 %v1700, %v1699
        %v1806 = vpack.c.b16 %v1702, %v1701
        %v1807 = vpack.c.b16 %v1704, %v1703
        %v1808 = vpack.c.b16 %v1706, %v1705
        %v1809 = vpack.c.b16 %v1708, %v1707
        %v1810 = vpack.c.b16 %v1710, %v1709
        %v1811 = vpack.c.b16 %v1712, %v1711
        %v1812 = vpack.c.b16 %v1714, %v1713
        %vm1911 = vcmask 261120
        %v1913 = vsel %vm1911, %v1310, 0
        %1915 = vmatprep.subr.bf16.mxu0 0
        %1916 = vmatpush1.bf16.msra.mxu0 %v1715
        %1917 = vmatprep.subr.bf16.mxu0 0
        %1918 = vmatpush1.bf16.msra.mxu0 %v1716
        %1919 = vmatprep.subr.bf16.mxu0 0
        %1920 = vmatpush1.bf16.msra.mxu0 %v1717
        %1921 = vmatprep.subr.bf16.mxu0 0
        %1922 = vmatpush1.bf16.msra.mxu0 %v1718
        %1923 = vmatprep.subr.bf16.mxu0 0
        %1924 = vmatpush1.bf16.msra.mxu0 %v1719
        %1925 = vmatprep.subr.bf16.mxu0 0
        %1926 = vmatpush1.bf16.msra.mxu0 %v1720
        %1927 = vmatprep.subr.bf16.mxu0 0
        %1928 = vmatpush1.bf16.msra.mxu0 %v1721
        %1929 = vmatprep.subr.bf16.mxu0 0
        %1930 = vmatpush1.bf16.msra.mxu0 %v1722
        %1931 = vmatprep.subr.bf16.mxu0 0
        %1932 = vmatpush1.bf16.msra.mxu0 %v1723
        %1933 = vmatprep.subr.bf16.mxu0 0
        %1934 = vmatpush1.bf16.msra.mxu0 %v1724
        %1935 = vmatprep.subr.bf16.mxu0 0
        %1936 = vmatpush1.bf16.msra.mxu0 %v1725
        %1937 = vmatprep.subr.bf16.mxu0 0
        %1938 = vmatpush1.bf16.msra.mxu0 %v1726
        %1939 = vmatprep.subr.bf16.mxu0 0
        %1940 = vmatpush1.bf16.msra.mxu0 %v1727
        %1941 = vmatprep.subr.bf16.mxu0 0
        %1942 = vmatpush1.bf16.msra.mxu0 %v1728
        %1943 = vmatprep.subr.bf16.mxu0 0
        %1944 = vmatpush1.bf16.msra.mxu0 %v1729
        %1945 = vmatprep.subr.bf16.mxu0 0
        %1946 = vmatpush1.bf16.msra.mxu0 %v1730
        %1947 = vmatprep.mubr.bf16.mxu0 %v1299
        %1948 = vmatmul.mubr.bf16.gmra.mrb[0].mxu0 %v1298
        %v1949 = vpop.f32.mrb[0].mxu0
        %v1950 = vadd.f32 %v1256, %v1949
        %v1951 = vpop.f32.mrb[0].mxu0
        %v1952 = vpop.f32.mrb[0].mxu0
        %v1953 = vadd.f32 %v1256, %v1952
        %v1954 = vpop.f32.mrb[0].mxu0
        %1955 = vdwg.mxu0
        %1956 = vmatprep.subr.bf16.mxu0 0
        %1957 = vmatpush1.bf16.msra.mxu0 %v1731
        %1958 = vmatprep.subr.bf16.mxu0 0
        %1959 = vmatpush1.bf16.msra.mxu0 %v1732
        %1960 = vmatprep.subr.bf16.mxu0 0
        %1961 = vmatpush1.bf16.msra.mxu0 %v1733
        %1962 = vmatprep.subr.bf16.mxu0 0
        %1963 = vmatpush1.bf16.msra.mxu0 %v1734
        %1964 = vmatprep.subr.bf16.mxu0 0
        %1965 = vmatpush1.bf16.msra.mxu0 %v1735
        %1966 = vmatprep.subr.bf16.mxu0 0
        %1967 = vmatpush1.bf16.msra.mxu0 %v1736
        %1968 = vmatprep.subr.bf16.mxu0 0
        %1969 = vmatpush1.bf16.msra.mxu0 %v1737
        %1970 = vmatprep.subr.bf16.mxu0 0
        %1971 = vmatpush1.bf16.msra.mxu0 %v1738
        %1972 = vmatprep.subr.bf16.mxu0 0
        %1973 = vmatpush1.bf16.msra.mxu0 %v1739
        %1974 = vmatprep.subr.bf16.mxu0 0
        %1975 = vmatpush1.bf16.msra.mxu0 %v1740
        %1976 = vmatprep.subr.bf16.mxu0 0
        %1977 = vmatpush1.bf16.msra.mxu0 %v1741
        %1978 = vmatprep.subr.bf16.mxu0 0
        %1979 = vmatpush1.bf16.msra.mxu0 %v1742
        %1980 = vmatprep.subr.bf16.mxu0 0
        %1981 = vmatpush1.bf16.msra.mxu0 %v1743
        %1982 = vmatprep.subr.bf16.mxu0 0
        %1983 = vmatpush1.bf16.msra.mxu0 %v1744
        %1984 = vmatprep.subr.bf16.mxu0 0
        %1985 = vmatpush1.bf16.msra.mxu0 %v1745
        %1986 = vmatprep.subr.bf16.mxu0 0
        %1987 = vmatpush1.bf16.msra.mxu0 %v1746
        %1988 = vmatprep.mubr.bf16.mxu0 %v1301
        %1989 = vmatmul.mubr.bf16.gmra.mrb[0].mxu0 %v1300
        %v1990 = vpop.f32.mrb[0].mxu0
        %v1991 = vadd.f32 %v1950, %v1990
        %v1992 = vpop.f32.mrb[0].mxu0
        %v1993 = vpop.f32.mrb[0].mxu0
        %v1994 = vadd.f32 %v1953, %v1993
        %v1995 = vpop.f32.mrb[0].mxu0
        %1996 = vdwg.mxu0
        %1997 = vmatprep.subr.bf16.mxu0 0
        %1998 = vmatpush1.bf16.msra.mxu0 %v1747
        %1999 = vmatprep.subr.bf16.mxu0 0
        %2000 = vmatpush1.bf16.msra.mxu0 %v1748
        %2001 = vmatprep.subr.bf16.mxu0 0
        %2002 = vmatpush1.bf16.msra.mxu0 %v1749
        %2003 = vmatprep.subr.bf16.mxu0 0
        %2004 = vmatpush1.bf16.msra.mxu0 %v1750
        %2005 = vmatprep.subr.bf16.mxu0 0
        %2006 = vmatpush1.bf16.msra.mxu0 %v1751
        %2007 = vmatprep.subr.bf16.mxu0 0
        %2008 = vmatpush1.bf16.msra.mxu0 %v1752
        %2009 = vmatprep.subr.bf16.mxu0 0
        %2010 = vmatpush1.bf16.msra.mxu0 %v1753
        %2011 = vmatprep.subr.bf16.mxu0 0
        %2012 = vmatpush1.bf16.msra.mxu0 %v1754
        %2013 = vmatprep.subr.bf16.mxu0 0
        %2014 = vmatpush1.bf16.msra.mxu0 %v1755
        %2015 = vmatprep.subr.bf16.mxu0 0
        %2016 = vmatpush1.bf16.msra.mxu0 %v1756
        %2017 = vmatprep.subr.bf16.mxu0 0
        %2018 = vmatpush1.bf16.msra.mxu0 %v1757
        %2019 = vmatprep.subr.bf16.mxu0 0
        %2020 = vmatpush1.bf16.msra.mxu0 %v1758
        %2021 = vmatprep.subr.bf16.mxu0 0
        %2022 = vmatpush1.bf16.msra.mxu0 %v1759
        %2023 = vmatprep.subr.bf16.mxu0 0
        %2024 = vmatpush1.bf16.msra.mxu0 %v1760
        %2025 = vmatprep.subr.bf16.mxu0 0
        %2026 = vmatpush1.bf16.msra.mxu0 %v1761
        %2027 = vmatprep.subr.bf16.mxu0 0
        %2028 = vmatpush1.bf16.msra.mxu0 %v1762
        %2029 = vmatprep.mubr.bf16.mxu0 %v1303
        %2030 = vmatmul.mubr.bf16.gmra.mrb[0].mxu0 %v1302
        %v2031 = vpop.f32.mrb[0].mxu0
        %v2032 = vadd.f32 %v1991, %v2031
        %v2033 = vpop.f32.mrb[0].mxu0
        %v2034 = vpop.f32.mrb[0].mxu0
        %v2035 = vadd.f32 %v1994, %v2034
        %v2036 = vpop.f32.mrb[0].mxu0
        %2037 = vdwg.mxu0
        %2038 = vmatprep.subr.bf16.mxu0 0
        %2039 = vmatpush1.bf16.msra.mxu0 %v1763
        %2040 = vmatprep.subr.bf16.mxu0 0
        %2041 = vmatpush1.bf16.msra.mxu0 %v1764
        %2042 = vmatprep.subr.bf16.mxu0 0
        %2043 = vmatpush1.bf16.msra.mxu0 %v1765
        %2044 = vmatprep.subr.bf16.mxu0 0
        %2045 = vmatpush1.bf16.msra.mxu0 %v1766
        %2046 = vmatprep.subr.bf16.mxu0 0
        %2047 = vmatpush1.bf16.msra.mxu0 %v1767
        %2048 = vmatprep.subr.bf16.mxu0 0
        %2049 = vmatpush1.bf16.msra.mxu0 %v1768
        %2050 = vmatprep.subr.bf16.mxu0 0
        %2051 = vmatpush1.bf16.msra.mxu0 %v1769
        %2052 = vmatprep.subr.bf16.mxu0 0
        %2053 = vmatpush1.bf16.msra.mxu0 %v1770
        %2054 = vmatprep.subr.bf16.mxu0 0
        %2055 = vmatpush1.bf16.msra.mxu0 %v1771
        %2056 = vmatprep.subr.bf16.mxu0 0
        %2057 = vmatpush1.bf16.msra.mxu0 %v1772
        %2058 = vmatprep.subr.bf16.mxu0 0
        %2059 = vmatpush1.bf16.msra.mxu0 %v1773
        %2060 = vmatprep.subr.bf16.mxu0 0
        %2061 = vmatpush1.bf16.msra.mxu0 %v1774
        %2062 = vmatprep.subr.bf16.mxu0 0
        %2063 = vmatpush1.bf16.msra.mxu0 %v1775
        %2064 = vmatprep.subr.bf16.mxu0 0
        %2065 = vmatpush1.bf16.msra.mxu0 %v1776
        %2066 = vmatprep.subr.bf16.mxu0 0
        %2067 = vmatpush1.bf16.msra.mxu0 %v1777
        %2068 = vmatprep.subr.bf16.mxu0 0
        %2069 = vmatpush1.bf16.msra.mxu0 %v1778
        %2070 = vmatprep.mubr.bf16.mxu0 %v1305
        %2071 = vmatmul.mubr.bf16.gmra.mrb[0].mxu0 %v1304
        %v2072 = vpop.f32.mrb[0].mxu0
        %v2073 = vadd.f32 %v2032, %v2072
        %v2074 = vpop.f32.mrb[0].mxu0
        %v2075 = vpop.f32.mrb[0].mxu0
        %v2076 = vadd.f32 %v2035, %v2075
        %v2077 = vpop.f32.mrb[0].mxu0
        %2078 = vdwg.mxu0
        %2079 = vmatprep.subr.bf16.mxu0 0
        %2080 = vmatpush1.bf16.msra.mxu0 %v1779
        %2081 = vmatprep.subr.bf16.mxu0 0
        %2082 = vmatpush1.bf16.msra.mxu0 %v1780
        %2083 = vmatprep.subr.bf16.mxu0 0
        %2084 = vmatpush1.bf16.msra.mxu0 %v1781
        %2085 = vmatprep.subr.bf16.mxu0 0
        %2086 = vmatpush1.bf16.msra.mxu0 %v1782
        %2087 = vmatprep.subr.bf16.mxu0 0
        %2088 = vmatpush1.bf16.msra.mxu0 %v1783
        %2089 = vmatprep.subr.bf16.mxu0 0
        %2090 = vmatpush1.bf16.msra.mxu0 %v1784
        %2091 = vmatprep.subr.bf16.mxu0 0
        %2092 = vmatpush1.bf16.msra.mxu0 %v1785
        %2093 = vmatprep.subr.bf16.mxu0 0
        %2094 = vmatpush1.bf16.msra.mxu0 %v1786
        %2095 = vmatprep.subr.bf16.mxu0 0
        %2096 = vmatpush1.bf16.msra.mxu0 %v1787
        %2097 = vmatprep.subr.bf16.mxu0 0
        %2098 = vmatpush1.bf16.msra.mxu0 %v1788
        %2099 = vmatprep.subr.bf16.mxu0 0
        %2100 = vmatpush1.bf16.msra.mxu0 %v1789
        %2101 = vmatprep.subr.bf16.mxu0 0
        %2102 = vmatpush1.bf16.msra.mxu0 %v1790
        %2103 = vmatprep.subr.bf16.mxu0 0
        %2104 = vmatpush1.bf16.msra.mxu0 %v1791
        %2105 = vmatprep.subr.bf16.mxu0 0
        %2106 = vmatpush1.bf16.msra.mxu0 %v1792
        %2107 = vmatprep.subr.bf16.mxu0 0
        %2108 = vmatpush1.bf16.msra.mxu0 %v1793
        %2109 = vmatprep.subr.bf16.mxu0 0
        %2110 = vmatpush1.bf16.msra.mxu0 %v1794
        %2111 = vmatprep.mubr.bf16.mxu0 %v1307
        %2112 = vmatmul.mubr.bf16.gmra.mrb[0].mxu0 %v1306
        %v2113 = vpop.f32.mrb[0].mxu0
        %v2114 = vadd.f32 %v2073, %v2113
        %v2115 = vpop.f32.mrb[0].mxu0
        %v2116 = vpop.f32.mrb[0].mxu0
        %v2117 = vadd.f32 %v2076, %v2116
        %v2118 = vpop.f32.mrb[0].mxu0
        %2119 = vdwg.mxu0
        %2120 = vmatprep.subr.bf16.mxu0 0
        %2121 = vmatpush1.bf16.msra.mxu0 %v1795
        %2122 = vmatprep.subr.bf16.mxu0 0
        %2123 = vmatpush1.bf16.msra.mxu0 %v1796
        %2124 = vmatprep.subr.bf16.mxu0 0
        %2125 = vmatpush1.bf16.msra.mxu0 %v1797
        %2126 = vmatprep.subr.bf16.mxu0 0
        %2127 = vmatpush1.bf16.msra.mxu0 %v1798
        %2128 = vmatprep.subr.bf16.mxu0 0
        %2129 = vmatpush1.bf16.msra.mxu0 %v1799
        %2130 = vmatprep.subr.bf16.mxu0 0
        %2131 = vmatpush1.bf16.msra.mxu0 %v1800
        %2132 = vmatprep.subr.bf16.mxu0 0
        %2133 = vmatpush1.bf16.msra.mxu0 %v1801
        %2134 = vmatprep.subr.bf16.mxu0 0
        %2135 = vmatpush1.bf16.msra.mxu0 %v1802
        %2136 = vmatprep.subr.bf16.mxu0 0
        %2137 = vmatpush1.bf16.msra.mxu0 %v1803
        %2138 = vmatprep.subr.bf16.mxu0 0
        %2139 = vmatpush1.bf16.msra.mxu0 %v1804
        %2140 = vmatprep.subr.bf16.mxu0 0
        %2141 = vmatpush1.bf16.msra.mxu0 %v1805
        %2142 = vmatprep.subr.bf16.mxu0 0
        %2143 = vmatpush1.bf16.msra.mxu0 %v1806
        %2144 = vmatprep.subr.bf16.mxu0 0
        %2145 = vmatpush1.bf16.msra.mxu0 %v1807
        %2146 = vmatprep.subr.bf16.mxu0 0
        %2147 = vmatpush1.bf16.msra.mxu0 %v1808
        %2148 = vmatprep.subr.bf16.mxu0 0
        %2149 = vmatpush1.bf16.msra.mxu0 %v1809
        %2150 = vmatprep.subr.bf16.mxu0 0
        %2151 = vmatpush1.bf16.msra.mxu0 %v1810
        %2152 = vmatprep.mubr.bf16.mxu0 %v1309
        %2153 = vmatmul.mubr.bf16.gmra.mrb[0].mxu0 %v1308
        %v2154 = vpop.f32.mrb[0].mxu0
        %v2155 = vadd.f32 %v2114, %v2154
        %v2156 = vpop.f32.mrb[0].mxu0
        %v2157 = vpop.f32.mrb[0].mxu0
        %v2158 = vadd.f32 %v2117, %v2157
        %v2159 = vpop.f32.mrb[0].mxu0
        %2160 = vdwg.mxu0
        %2161 = vmatprep.subr.bf16.mxu0 0
        %2162 = vmatpush1.bf16.msra.mxu0 %v1811
        %2163 = vmatprep.subr.bf16.mxu0 0
        %2164 = vmatpush1.bf16.msra.mxu0 %v1812
        %2165 = vmatprep.subr.bf16.mxu0 0
        %2166 = vmatpush1.bf16.msra.mxu0 0
        %2167 = vmatprep.subr.bf16.mxu0 0
        %2168 = vmatpush1.bf16.msra.mxu0 0
        %2169 = vmatprep.subr.bf16.mxu0 0
        %2170 = vmatpush1.bf16.msra.mxu0 0
        %2171 = vmatprep.subr.bf16.mxu0 0
        %2172 = vmatpush1.bf16.msra.mxu0 0
        %2173 = vmatprep.subr.bf16.mxu0 0
        %2174 = vmatpush1.bf16.msra.mxu0 0
        %2175 = vmatprep.subr.bf16.mxu0 0
        %2176 = vmatpush1.bf16.msra.mxu0 0
        %2177 = vmatprep.subr.bf16.mxu0 0
        %2178 = vmatpush1.bf16.msra.mxu0 0
        %2179 = vmatprep.subr.bf16.mxu0 0
        %2180 = vmatpush1.bf16.msra.mxu0 0
        %2181 = vmatprep.subr.bf16.mxu0 0
        %2182 = vmatpush1.bf16.msra.mxu0 0
        %2183 = vmatprep.subr.bf16.mxu0 0
        %2184 = vmatpush1.bf16.msra.mxu0 0
        %2185 = vmatprep.subr.bf16.mxu0 0
        %2186 = vmatpush1.bf16.msra.mxu0 0
        %2187 = vmatprep.subr.bf16.mxu0 0
        %2188 = vmatpush1.bf16.msra.mxu0 0
        %2189 = vmatprep.subr.bf16.mxu0 0
        %2190 = vmatpush1.bf16.msra.mxu0 0
        %2191 = vmatprep.subr.bf16.mxu0 0
        %2192 = vmatpush1.bf16.msra.mxu0 0
        %2193 = vmatprep.mubr.bf16.mxu0 0
        %2194 = vmatmul.mubr.bf16.gmra.mrb[0].mxu0 %v1913
        %v2195 = vpop.f32.mrb[0].mxu0
        %v2196 = vadd.f32 %v2155, %v2195
        %v2197 = vpop.f32.mrb[0].mxu0
        %v2198 = vpop.f32.mrb[0].mxu0
        %v2199 = vadd.f32 %v2158, %v2198
        %v2200 = vpop.f32.mrb[0].mxu0
        %2201 = vdwg.mxu0
        %v2202 = vmax.f32 %v2196, 0.0
        %v2203 = vmax.f32 %v2199, 0.0
        %2204 = vst [vmem:[%s1028] sm:$0xff] %v2202
        %2205 = vst [vmem:[%s1028 + $0x8] sm:$0xff] %v2203
        %s2206 = sand.u32 %s114, 1
        %s2207 = sand.u32 %s114, 1
        %s2208 = smul.addr %s2207, 16
        %s2209 = scalar_lea.vmem [#allocation3], %s2208
        // Predicated region
        $region74: #{deepmind_forward.7} parent=68 // pred_check
          %p2210 = pneg %p124
        $region75: #{deepmind_forward.7} parent=68 // pred_check_branch
          %2212 = sbr.rel (%p2210) target = $region77
        $region76: #{deepmind_forward.7} parent=68 // pred_region
          %s2213 = smul.u32 2, %s18
          %s2214 = smul.addr %s2213, 2
          %s2215 = sadd.s32 %s19, %s2214
          %s2216 = smul.addr %s2215, 8
          %s2217 = scalar_lea.vmem %s3, %s2216
          // Predicated region
          $region78: #{deepmind_forward.7} parent=76 // pred_check
            _
          $region79: #{deepmind_forward.7} parent=76 // pred_check_branch
            %2219 = sbr.rel (0) target = $region81
          $region80: #{deepmind_forward.7} parent=76 // pred_region
            // Predicated region
            $region82: #{deepmind_forward.7} parent=80 // pred_check
              _
            $region83: #{deepmind_forward.7} parent=80 // pred_check_branch
              %2221 = sbr.rel (0) target = $region85
            $region84: #{deepmind_forward.7} parent=80 // pred_region
              // Predicated region
              $region97: #{deepmind_forward.7} parent=84 // pred_check
                _
              $region98: #{deepmind_forward.7} parent=84 // pred_check_branch
                %2238 = sbr.rel (0) target = $region100
              $region99: #{deepmind_forward.7} parent=84 // pred_region
                loop: start=0, step=1, limit=1
                $region101: #{deepmind_forward.7} parent=99 // loop_pre_header
                  _
                $region102: #{deepmind_forward.7} parent=99 // loop_header
                  %s2240 = sphi 0, %s2244
                  %p2241 = scmp.ge.s32.totalorder %s2240, 1
                  %s2245 = sphi %s2209, %s2209
                  %s2246 = sphi %s2217, %s2217
                $region103: #{deepmind_forward.7} parent=99 // loop_header_branch
                  %2243 = sbr.rel (%p2241) target = $region107
                $region104: #{deepmind_forward.7} parent=99 // loop_body
                  %v2247 = vld [vmem:[%s2245] sm:$0xff]
                  %2248 = vst [vmem:[%s2246] sm:$0xff] %v2247
                  %v2249 = vld [vmem:[%s2245 + $0x8] sm:$0xff]
                  %2250 = vst [vmem:[%s2246 + $0x10] sm:$0xff] %v2249
                $region105: #{deepmind_forward.7} parent=99 // loop_footer
                  %s2244 = sadd.s32 1, %s2240
                $region106: #{deepmind_forward.7} parent=99 // loop_footer_branch
                  %2239 = sbr.rel target = $region102
                $region107: #{deepmind_forward.7} parent=99 // loop_exit
                  _
              $region100: #{deepmind_forward.7} parent=84 // pred_fallthru
                _
              // Predicated region
              $region108: #{deepmind_forward.7} parent=84 // pred_check
                _
              $region109: #{deepmind_forward.7} parent=84 // pred_check_branch
                %2252 = sbr.rel target = $region111
              $region110: #{deepmind_forward.7} parent=84 // pred_region
                _
              $region111: #{deepmind_forward.7} parent=84 // pred_fallthru
                _
            $region85: #{deepmind_forward.7} parent=80 // pred_fallthru
              _
            // Predicated region
            $region86: #{deepmind_forward.7} parent=80 // pred_check
              _
            $region87: #{deepmind_forward.7} parent=80 // pred_check_branch
              %2223 = sbr.rel target = $region89
            $region88: #{deepmind_forward.7} parent=80 // pred_region
              loop: start=0, step=1, limit=1
              $region90: #{deepmind_forward.7} parent=88 // loop_pre_header
                _
              $region91: #{deepmind_forward.7} parent=88 // loop_header
                %s2226 = sphi 0, %s2230
                %p2227 = scmp.ge.s32.totalorder %s2226, 1
                %s2231 = sphi %s2209, %s2209
                %s2232 = sphi %s2217, %s2217
              $region92: #{deepmind_forward.7} parent=88 // loop_header_branch
                %2229 = sbr.rel (%p2227) target = $region96
              $region93: #{deepmind_forward.7} parent=88 // loop_body
                %v2233 = vld [vmem:[%s2231] sm:$0xff]
                %2234 = vst [vmem:[%s2232] sm:$0xff] %v2233
                %v2235 = vld [vmem:[%s2231 + $0x8] sm:$0xff]
                %2236 = vst [vmem:[%s2232 + $0x10] sm:$0xff] %v2235
              $region94: #{deepmind_forward.7} parent=88 // loop_footer
                %s2230 = sadd.s32 1, %s2226
              $region95: #{deepmind_forward.7} parent=88 // loop_footer_branch
                %2225 = sbr.rel target = $region91
              $region96: #{deepmind_forward.7} parent=88 // loop_exit
                _
            $region89: #{deepmind_forward.7} parent=80 // pred_fallthru
              _
          $region81: #{deepmind_forward.7} parent=76 // pred_fallthru
            _
          %2253 = vnop
        $region77: #{deepmind_forward.7} parent=68 // pred_fallthru
          _
      $region69: #{deepmind_forward.7} parent=5 // pred_fallthru
        _
      %p2254 = scmp.le.s32.totalorder 2, %s9
      // Predicated region
      $region112: #{deepmind_forward.7} parent=5 // pred_check
        %p2255 = pneg %p2254
      $region113: #{deepmind_forward.7} parent=5 // pred_check_branch
        %2257 = sbr.rel (%p2255) target = $region115
      $region114: #{deepmind_forward.7} parent=5 // pred_region
        %s2258 = ssub.s32 %s9, 2
        // Predicated region
        $region116: #{deepmind_forward.7} parent=114 // pred_check
          %p2259 = pneg %p130
        $region117: #{deepmind_forward.7} parent=114 // pred_check_branch
          %2261 = sbr.rel (%p2259) target = $region119
        $region118: #{deepmind_forward.7} parent=114 // pred_region
          %s2262 = sand.u32 %s115, 1
          %s2263 = sand.u32 %s115, 1
          %s2264 = smul.addr %s2263, 16
          %s2265 = scalar_lea.vmem [#allocation3], %s2264
        $region119: #{deepmind_forward.7} parent=114 // pred_fallthru
          _
      $region115: #{deepmind_forward.7} parent=5 // pred_fallthru
        _
    $region6: #{deepmind_forward.7} parent=1 // loop_footer
      %s13 = sadd.s32 1, %s9
    $region7: #{deepmind_forward.7} parent=1 // loop_footer_branch
      %8 = sbr.rel target = $region3
    $region8: #{deepmind_forward.7} parent=1 // loop_exit
      _

// kernel: deepmind_forward.6
$region0: #{deepmind_forward.6}
  #allocation0 [shape = 'u32[]', space=smem, size = 0x4, offset = 0x4, fixed_abs, tag = 'smem constant byte address 0x4 - core index']
  #allocation1 [shape = 'u32[144,128]{1,0:T(1,128)}', space=vmem, size = 0x12000, scoped, tag = 'internal scratch']
  %s0 = inlined_call_operand.vmem [shape: bf16[112,576], index: 0, kind: input, shape index: {}]
  %s1 = inlined_call_operand.vmem [shape: bf16[576,128], index: 1, kind: input, shape index: {}]
  %s2 = inlined_call_operand.vmem [shape: f32[1,128], index: 2, kind: input, shape index: {}]
  %s3 = inlined_call_operand.vmem [shape: bf16[112,128], index: 3, kind: output, shape index: {}]
  %s4 = sld [smem:[#allocation0]]
  $region22: #{deepmind_forward.6} parent=0
    _
  %s6 = ssub.s32 1, %s4
  %s7 = scalar_select 0, %s6, %s4
  // Predicated region
  $region2: #{deepmind_forward.6} parent=0 // pred_check
    _
  $region3: #{deepmind_forward.6} parent=0 // pred_check_branch
    %9 = sbr.rel (0) target = $region5
  $region4: #{deepmind_forward.6} parent=0 // pred_region
    _
  $region5: #{deepmind_forward.6} parent=0 // pred_fallthru
    _
  // Predicated region
  $region6: #{deepmind_forward.6} parent=0 // pred_check
    _
  $region7: #{deepmind_forward.6} parent=0 // pred_check_branch
    %11 = sbr.rel (0) target = $region9
  $region8: #{deepmind_forward.6} parent=0 // pred_region
    _
  $region9: #{deepmind_forward.6} parent=0 // pred_fallthru
    _
  // Predicated region
  $region10: #{deepmind_forward.6} parent=0 // pred_check
    _
  $region11: #{deepmind_forward.6} parent=0 // pred_check_branch
    %13 = sbr.rel (0) target = $region13
  $region12: #{deepmind_forward.6} parent=0 // pred_region
    _
  $region13: #{deepmind_forward.6} parent=0 // pred_fallthru
    _
  %v15 = vld [vmem:[%s0] sm:$0xff]
  %v16 = vld [vmem:[%s0 + $0x8] sm:$0xff]
  %v17 = vld [vmem:[%s0 + $0x10] sm:$0xf]
  %v18 = vld [vmem:[%s0 + $0x14] sm:$0xff]
  %v19 = vld [vmem:[%s0 + $0x1c] sm:$0xff]
  %v20 = vld [vmem:[%s0 + $0x24] sm:$0xf]
  %v21 = vld [vmem:[%s0 + $0x28] sm:$0xff]
  %v22 = vld [vmem:[%s0 + $0x30] sm:$0xff]
  %v23 = vld [vmem:[%s0 + $0x38] sm:$0xf]
  %v24 = vld [vmem:[%s0 + $0x3c] sm:$0xff]
  %v25 = vld [vmem:[%s0 + $0x44] sm:$0xff]
  %v26 = vld [vmem:[%s0 + $0x4c] sm:$0xf]
  %v27 = vld [vmem:[%s0 + $0x50] sm:$0xff]
  %v28 = vld [vmem:[%s0 + $0x58] sm:$0xff]
  %v29 = vld [vmem:[%s0 + $0x60] sm:$0xf]
  %v30 = vld [vmem:[%s0 + $0x64] sm:$0xff]
  %v31 = vld [vmem:[%s0 + $0x6c] sm:$0xff]
  %v32 = vld [vmem:[%s0 + $0x74] sm:$0xf]
  %v33 = vld [vmem:[%s0 + $0x78] sm:$0xff]
  %v34 = vld [vmem:[%s0 + $0x80] sm:$0xff]
  %v35 = vld [vmem:[%s0 + $0x88] sm:$0xf]
  %v36 = vld [vmem:[%s0 + $0x8c] sm:$0xff]
  %v37 = vld [vmem:[%s0 + $0x94] sm:$0xff]
  %v38 = vld [vmem:[%s0 + $0x9c] sm:$0xf]
  %v39 = vld [vmem:[%s0 + $0xa0] sm:$0xff]
  %v40 = vld [vmem:[%s0 + $0xa8] sm:$0xff]
  %v41 = vld [vmem:[%s0 + $0xb0] sm:$0xf]
  %v42 = vld [vmem:[%s0 + $0xb4] sm:$0xff]
  %v43 = vld [vmem:[%s0 + $0xbc] sm:$0xff]
  %v44 = vld [vmem:[%s0 + $0xc4] sm:$0xf]
  %v45 = vld [vmem:[%s0 + $0xc8] sm:$0xff]
  %v46 = vld [vmem:[%s0 + $0xd0] sm:$0xff]
  %v47 = vld [vmem:[%s0 + $0xd8] sm:$0xf]
  %v48 = vld [vmem:[%s0 + $0xdc] sm:$0xff]
  %v49 = vld [vmem:[%s0 + $0xe4] sm:$0xff]
  %v50 = vld [vmem:[%s0 + $0xec] sm:$0xf]
  %v51 = vld [vmem:[%s0 + $0xf0] sm:$0xff]
  %v52 = vld [vmem:[%s0 + $0xf8] sm:$0xff]
  %v53 = vld [vmem:[%s0 + $0x100] sm:$0xf]
  %v54 = vld [vmem:[%s0 + $0x104] sm:$0xff]
  %v55 = vld [vmem:[%s0 + $0x10c] sm:$0xff]
  %v56 = vld [vmem:[%s0 + $0x114] sm:$0xf]
  %v57 = vld [vmem:[%s1] sm:$0xf]
  %v58 = vld [vmem:[%s1 + $0x4] sm:$0xf]
  %v59 = vld [vmem:[%s1 + $0x8] sm:$0xf]
  %v60 = vld [vmem:[%s1 + $0xc] sm:$0xf]
  %v61 = vld [vmem:[%s1 + $0x10] sm:$0xf]
  %v62 = vld [vmem:[%s1 + $0x14] sm:$0xf]
  %v63 = vld [vmem:[%s1 + $0x18] sm:$0xf]
  %v64 = vld [vmem:[%s1 + $0x1c] sm:$0xf]
  %v65 = vld [vmem:[%s1 + $0x20] sm:$0xf]
  %v66 = vld [vmem:[%s1 + $0x24] sm:$0xf]
  %v67 = vld [vmem:[%s1 + $0x28] sm:$0xf]
  %v68 = vld [vmem:[%s1 + $0x2c] sm:$0xf]
  %v69 = vld [vmem:[%s1 + $0x30] sm:$0xf]
  %v70 = vld [vmem:[%s1 + $0x34] sm:$0xf]
  %v71 = vld [vmem:[%s1 + $0x38] sm:$0xf]
  %v72 = vld [vmem:[%s1 + $0x3c] sm:$0xf]
  %v73 = vld [vmem:[%s1 + $0x40] sm:$0xf]
  %v74 = vld [vmem:[%s1 + $0x44] sm:$0xf]
  %v75 = vld [vmem:[%s1 + $0x48] sm:$0xf]
  %v76 = vld [vmem:[%s1 + $0x4c] sm:$0xf]
  %v77 = vld [vmem:[%s1 + $0x50] sm:$0xf]
  %v78 = vld [vmem:[%s1 + $0x54] sm:$0xf]
  %v79 = vld [vmem:[%s1 + $0x58] sm:$0xf]
  %v80 = vld [vmem:[%s1 + $0x5c] sm:$0xf]
  %v81 = vld [vmem:[%s1 + $0x60] sm:$0xf]
  %v82 = vld [vmem:[%s1 + $0x64] sm:$0xf]
  %v83 = vld [vmem:[%s1 + $0x68] sm:$0xf]
  %v84 = vld [vmem:[%s1 + $0x6c] sm:$0xf]
  %v85 = vld [vmem:[%s1 + $0x70] sm:$0xf]
  %v86 = vld [vmem:[%s1 + $0x74] sm:$0xf]
  %v87 = vld [vmem:[%s1 + $0x78] sm:$0xf]
  %v88 = vld [vmem:[%s1 + $0x7c] sm:$0xf]
  %v89 = vld [vmem:[%s1 + $0x80] sm:$0xf]
  %v90 = vld [vmem:[%s1 + $0x84] sm:$0xf]
  %v91 = vld [vmem:[%s1 + $0x88] sm:$0xf]
  %v92 = vld [vmem:[%s1 + $0x8c] sm:$0xf]
  %v93 = vld [vmem:[%s1 + $0x90] sm:$0xf]
  %v94 = vld [vmem:[%s1 + $0x94] sm:$0xf]
  %v95 = vld [vmem:[%s1 + $0x98] sm:$0xf]
  %v96 = vld [vmem:[%s1 + $0x9c] sm:$0xf]
  %v97 = vld [vmem:[%s1 + $0xa0] sm:$0xf]
  %v98 = vld [vmem:[%s1 + $0xa4] sm:$0xf]
  %v99 = vld [vmem:[%s1 + $0xa8] sm:$0xf]
  %v100 = vld [vmem:[%s1 + $0xac] sm:$0xf]
  %v101 = vld [vmem:[%s1 + $0xb0] sm:$0xf]
  %v102 = vld [vmem:[%s1 + $0xb4] sm:$0xf]
  %v103 = vld [vmem:[%s1 + $0xb8] sm:$0xf]
  %v104 = vld [vmem:[%s1 + $0xbc] sm:$0xf]
  %v105 = vld [vmem:[%s1 + $0xc0] sm:$0xf]
  %v106 = vld [vmem:[%s1 + $0xc4] sm:$0xf]
  %v107 = vld [vmem:[%s1 + $0xc8] sm:$0xf]
  %v108 = vld [vmem:[%s1 + $0xcc] sm:$0xf]
  %v109 = vld [vmem:[%s1 + $0xd0] sm:$0xf]
  %v110 = vld [vmem:[%s1 + $0xd4] sm:$0xf]
  %v111 = vld [vmem:[%s1 + $0xd8] sm:$0xf]
  %v112 = vld [vmem:[%s1 + $0xdc] sm:$0xf]
  %v113 = vld [vmem:[%s1 + $0xe0] sm:$0xf]
  %v114 = vld [vmem:[%s1 + $0xe4] sm:$0xf]
  %v115 = vld [vmem:[%s1 + $0xe8] sm:$0xf]
  %v116 = vld [vmem:[%s1 + $0xec] sm:$0xf]
  %v117 = vld [vmem:[%s1 + $0xf0] sm:$0xf]
  %v118 = vld [vmem:[%s1 + $0xf4] sm:$0xf]
  %v119 = vld [vmem:[%s1 + $0xf8] sm:$0xf]
  %v120 = vld [vmem:[%s1 + $0xfc] sm:$0xf]
  %v121 = vld [vmem:[%s1 + $0x100] sm:$0xf]
  %v122 = vld [vmem:[%s1 + $0x104] sm:$0xf]
  %v123 = vld [vmem:[%s1 + $0x108] sm:$0xf]
  %v124 = vld [vmem:[%s1 + $0x10c] sm:$0xf]
  %v125 = vld [vmem:[%s1 + $0x110] sm:$0xf]
  %v126 = vld [vmem:[%s1 + $0x114] sm:$0xf]
  %v127 = vld [vmem:[%s1 + $0x118] sm:$0xf]
  %v128 = vld [vmem:[%s1 + $0x11c] sm:$0xf]
  %v129 = vld [vmem:[%s2] sm:$0x1]
  %v131 = vlaneseq
  %v132 = vshrl.u32 %v131, 7
  %v133 = vsub.s32 0, %v132
  %v134 = vrot.slane %v129, %v133
  %v178 = vunpack.c.l.b16 %v15
  %v179 = vunpack.c.h.b16 %v15
  %v180 = vunpack.c.l.b16 %v16
  %v181 = vunpack.c.h.b16 %v16
  %v182 = vunpack.c.l.b16 %v17
  %v183 = vunpack.c.l.b16 %v18
  %v184 = vunpack.c.h.b16 %v18
  %v185 = vunpack.c.l.b16 %v19
  %v186 = vunpack.c.h.b16 %v19
  %v187 = vunpack.c.l.b16 %v20
  %v188 = vunpack.c.l.b16 %v21
  %v189 = vunpack.c.h.b16 %v21
  %v190 = vunpack.c.l.b16 %v22
  %v191 = vunpack.c.h.b16 %v22
  %v192 = vunpack.c.l.b16 %v23
  %v193 = vunpack.c.l.b16 %v24
  %v194 = vunpack.c.h.b16 %v24
  %v195 = vunpack.c.l.b16 %v25
  %v196 = vunpack.c.h.b16 %v25
  %v197 = vunpack.c.l.b16 %v26
  %v198 = vunpack.c.l.b16 %v27
  %v199 = vunpack.c.h.b16 %v27
  %v200 = vunpack.c.l.b16 %v28
  %v201 = vunpack.c.h.b16 %v28
  %v202 = vunpack.c.l.b16 %v29
  %v203 = vunpack.c.l.b16 %v30
  %v204 = vunpack.c.h.b16 %v30
  %v205 = vunpack.c.l.b16 %v31
  %v206 = vunpack.c.h.b16 %v31
  %v207 = vunpack.c.l.b16 %v32
  %v208 = vunpack.c.l.b16 %v33
  %v209 = vunpack.c.h.b16 %v33
  %v210 = vunpack.c.l.b16 %v34
  %v211 = vunpack.c.h.b16 %v34
  %v212 = vunpack.c.l.b16 %v35
  %v213 = vunpack.c.l.b16 %v36
  %v214 = vunpack.c.h.b16 %v36
  %v215 = vunpack.c.l.b16 %v37
  %v216 = vunpack.c.h.b16 %v37
  %v217 = vunpack.c.l.b16 %v38
  %v218 = vunpack.c.l.b16 %v39
  %v219 = vunpack.c.h.b16 %v39
  %v220 = vunpack.c.l.b16 %v40
  %v221 = vunpack.c.h.b16 %v40
  %v222 = vunpack.c.l.b16 %v41
  %v223 = vunpack.c.l.b16 %v42
  %v224 = vunpack.c.h.b16 %v42
  %v225 = vunpack.c.l.b16 %v43
  %v226 = vunpack.c.h.b16 %v43
  %v227 = vunpack.c.l.b16 %v44
  %v228 = vunpack.c.l.b16 %v45
  %v229 = vunpack.c.h.b16 %v45
  %v230 = vunpack.c.l.b16 %v46
  %v231 = vunpack.c.h.b16 %v46
  %v232 = vunpack.c.l.b16 %v47
  %v233 = vunpack.c.l.b16 %v48
  %v234 = vunpack.c.h.b16 %v48
  %v235 = vunpack.c.l.b16 %v49
  %v236 = vunpack.c.h.b16 %v49
  %v237 = vunpack.c.l.b16 %v50
  %v238 = vunpack.c.l.b16 %v51
  %v239 = vunpack.c.h.b16 %v51
  %v240 = vunpack.c.l.b16 %v52
  %v241 = vunpack.c.h.b16 %v52
  %v242 = vunpack.c.l.b16 %v53
  %v243 = vunpack.c.l.b16 %v54
  %v244 = vunpack.c.h.b16 %v54
  %v245 = vunpack.c.l.b16 %v55
  %v246 = vunpack.c.h.b16 %v55
  %v247 = vunpack.c.l.b16 %v56
  %v248 = vpack.c.b16 %v183, %v178
  %v249 = vpack.c.b16 %v184, %v179
  %v250 = vpack.c.b16 %v185, %v180
  %v251 = vpack.c.b16 %v186, %v181
  %v252 = vpack.c.b16 %v187, %v182
  %v253 = vpack.c.b16 %v193, %v188
  %v254 = vpack.c.b16 %v194, %v189
  %v255 = vpack.c.b16 %v195, %v190
  %v256 = vpack.c.b16 %v196, %v191
  %v257 = vpack.c.b16 %v197, %v192
  %v258 = vpack.c.b16 %v203, %v198
  %v259 = vpack.c.b16 %v204, %v199
  %v260 = vpack.c.b16 %v205, %v200
  %v261 = vpack.c.b16 %v206, %v201
  %v262 = vpack.c.b16 %v207, %v202
  %v263 = vpack.c.b16 %v213, %v208
  %v264 = vpack.c.b16 %v214, %v209
  %v265 = vpack.c.b16 %v215, %v210
  %v266 = vpack.c.b16 %v216, %v211
  %v267 = vpack.c.b16 %v217, %v212
  %v268 = vpack.c.b16 %v223, %v218
  %v269 = vpack.c.b16 %v224, %v219
  %v270 = vpack.c.b16 %v225, %v220
  %v271 = vpack.c.b16 %v226, %v221
  %v272 = vpack.c.b16 %v227, %v222
  %v273 = vpack.c.b16 %v233, %v228
  %v274 = vpack.c.b16 %v234, %v229
  %v275 = vpack.c.b16 %v235, %v230
  %v276 = vpack.c.b16 %v236, %v231
  %v277 = vpack.c.b16 %v237, %v232
  %v278 = vpack.c.b16 %v243, %v238
  %v279 = vpack.c.b16 %v244, %v239
  %v280 = vpack.c.b16 %v245, %v240
  %v281 = vpack.c.b16 %v246, %v241
  %v282 = vpack.c.b16 %v247, %v242
  %v383 = vunpack.c.l.b16 %v57
  %v384 = vunpack.c.l.b16 %v58
  %v385 = vunpack.c.l.b16 %v59
  %v386 = vunpack.c.l.b16 %v60
  %v387 = vunpack.c.l.b16 %v61
  %v388 = vunpack.c.l.b16 %v62
  %v389 = vunpack.c.l.b16 %v63
  %v390 = vunpack.c.l.b16 %v64
  %v391 = vunpack.c.l.b16 %v65
  %v392 = vunpack.c.l.b16 %v66
  %v393 = vunpack.c.l.b16 %v67
  %v394 = vunpack.c.l.b16 %v68
  %v395 = vunpack.c.l.b16 %v69
  %v396 = vunpack.c.l.b16 %v70
  %v397 = vunpack.c.l.b16 %v71
  %v398 = vunpack.c.l.b16 %v72
  %v399 = vunpack.c.l.b16 %v73
  %v400 = vunpack.c.l.b16 %v74
  %v401 = vunpack.c.l.b16 %v75
  %v402 = vunpack.c.l.b16 %v76
  %v403 = vunpack.c.l.b16 %v77
  %v404 = vunpack.c.l.b16 %v78
  %v405 = vunpack.c.l.b16 %v79
  %v406 = vunpack.c.l.b16 %v80
  %v407 = vunpack.c.l.b16 %v81
  %v408 = vunpack.c.l.b16 %v82
  %v409 = vunpack.c.l.b16 %v83
  %v410 = vunpack.c.l.b16 %v84
  %v411 = vunpack.c.l.b16 %v85
  %v412 = vunpack.c.l.b16 %v86
  %v413 = vunpack.c.l.b16 %v87
  %v414 = vunpack.c.l.b16 %v88
  %v415 = vunpack.c.l.b16 %v89
  %v416 = vunpack.c.l.b16 %v90
  %v417 = vunpack.c.l.b16 %v91
  %v418 = vunpack.c.l.b16 %v92
  %v419 = vunpack.c.l.b16 %v93
  %v420 = vunpack.c.l.b16 %v94
  %v421 = vunpack.c.l.b16 %v95
  %v422 = vunpack.c.l.b16 %v96
  %v423 = vunpack.c.l.b16 %v97
  %v424 = vunpack.c.l.b16 %v98
  %v425 = vunpack.c.l.b16 %v99
  %v426 = vunpack.c.l.b16 %v100
  %v427 = vunpack.c.l.b16 %v101
  %v428 = vunpack.c.l.b16 %v102
  %v429 = vunpack.c.l.b16 %v103
  %v430 = vunpack.c.l.b16 %v104
  %v431 = vunpack.c.l.b16 %v105
  %v432 = vunpack.c.l.b16 %v106
  %v433 = vunpack.c.l.b16 %v107
  %v434 = vunpack.c.l.b16 %v108
  %v435 = vunpack.c.l.b16 %v109
  %v436 = vunpack.c.l.b16 %v110
  %v437 = vunpack.c.l.b16 %v111
  %v438 = vunpack.c.l.b16 %v112
  %v439 = vunpack.c.l.b16 %v113
  %v440 = vunpack.c.l.b16 %v114
  %v441 = vunpack.c.l.b16 %v115
  %v442 = vunpack.c.l.b16 %v116
  %v443 = vunpack.c.l.b16 %v117
  %v444 = vunpack.c.l.b16 %v118
  %v445 = vunpack.c.l.b16 %v119
  %v446 = vunpack.c.l.b16 %v120
  %v447 = vunpack.c.l.b16 %v121
  %v448 = vunpack.c.l.b16 %v122
  %v449 = vunpack.c.l.b16 %v123
  %v450 = vunpack.c.l.b16 %v124
  %v451 = vunpack.c.l.b16 %v125
  %v452 = vunpack.c.l.b16 %v126
  %v453 = vunpack.c.l.b16 %v127
  %v454 = vunpack.c.l.b16 %v128
  %v455 = vpack.c.b16 %v384, %v383
  %v456 = vpack.c.b16 %v386, %v385
  %v457 = vpack.c.b16 %v388, %v387
  %v458 = vpack.c.b16 %v390, %v389
  %v459 = vpack.c.b16 %v392, %v391
  %v460 = vpack.c.b16 %v394, %v393
  %v461 = vpack.c.b16 %v396, %v395
  %v462 = vpack.c.b16 %v398, %v397
  %v463 = vpack.c.b16 %v400, %v399
  %v464 = vpack.c.b16 %v402, %v401
  %v465 = vpack.c.b16 %v404, %v403
  %v466 = vpack.c.b16 %v406, %v405
  %v467 = vpack.c.b16 %v408, %v407
  %v468 = vpack.c.b16 %v410, %v409
  %v469 = vpack.c.b16 %v412, %v411
  %v470 = vpack.c.b16 %v414, %v413
  %v471 = vpack.c.b16 %v416, %v415
  %v472 = vpack.c.b16 %v418, %v417
  %v473 = vpack.c.b16 %v420, %v419
  %v474 = vpack.c.b16 %v422, %v421
  %v475 = vpack.c.b16 %v424, %v423
  %v476 = vpack.c.b16 %v426, %v425
  %v477 = vpack.c.b16 %v428, %v427
  %v478 = vpack.c.b16 %v430, %v429
  %v479 = vpack.c.b16 %v432, %v431
  %v480 = vpack.c.b16 %v434, %v433
  %v481 = vpack.c.b16 %v436, %v435
  %v482 = vpack.c.b16 %v438, %v437
  %v483 = vpack.c.b16 %v440, %v439
  %v484 = vpack.c.b16 %v442, %v441
  %v485 = vpack.c.b16 %v444, %v443
  %v486 = vpack.c.b16 %v446, %v445
  %v487 = vpack.c.b16 %v448, %v447
  %v488 = vpack.c.b16 %v450, %v449
  %v489 = vpack.c.b16 %v452, %v451
  %v490 = vpack.c.b16 %v454, %v453
  %vm527 = vcmask 523264
  %v529 = vsel %vm527, %v252, 0
  %v532 = vsel %vm527, %v257, 0
  %v535 = vsel %vm527, %v262, 0
  %v538 = vsel %vm527, %v267, 0
  %v541 = vsel %vm527, %v272, 0
  %v544 = vsel %vm527, %v277, 0
  %v547 = vsel %vm527, %v282, 0
  %549 = vmatprep.subr.bf16.mxu0 0
  %550 = vmatpush1.bf16.msra.mxu0 %v455
  %551 = vmatprep.subr.bf16.mxu0 0
  %552 = vmatpush1.bf16.msra.mxu0 %v456
  %553 = vmatprep.subr.bf16.mxu0 0
  %554 = vmatpush1.bf16.msra.mxu0 %v457
  %555 = vmatprep.subr.bf16.mxu0 0
  %556 = vmatpush1.bf16.msra.mxu0 %v458
  %557 = vmatprep.subr.bf16.mxu0 0
  %558 = vmatpush1.bf16.msra.mxu0 %v459
  %559 = vmatprep.subr.bf16.mxu0 0
  %560 = vmatpush1.bf16.msra.mxu0 %v460
  %561 = vmatprep.subr.bf16.mxu0 0
  %562 = vmatpush1.bf16.msra.mxu0 %v461
  %563 = vmatprep.subr.bf16.mxu0 0
  %564 = vmatpush1.bf16.msra.mxu0 %v462
  %565 = vmatprep.subr.bf16.mxu0 0
  %566 = vmatpush1.bf16.msra.mxu0 %v463
  %567 = vmatprep.subr.bf16.mxu0 0
  %568 = vmatpush1.bf16.msra.mxu0 %v464
  %569 = vmatprep.subr.bf16.mxu0 0
  %570 = vmatpush1.bf16.msra.mxu0 %v465
  %571 = vmatprep.subr.bf16.mxu0 0
  %572 = vmatpush1.bf16.msra.mxu0 %v466
  %573 = vmatprep.subr.bf16.mxu0 0
  %574 = vmatpush1.bf16.msra.mxu0 %v467
  %575 = vmatprep.subr.bf16.mxu0 0
  %576 = vmatpush1.bf16.msra.mxu0 %v468
  %577 = vmatprep.subr.bf16.mxu0 0
  %578 = vmatpush1.bf16.msra.mxu0 %v469
  %579 = vmatprep.subr.bf16.mxu0 0
  %580 = vmatpush1.bf16.msra.mxu0 %v470
  %581 = vmatprep.mubr.bf16.mxu0 %v249
  %582 = vmatmul.mubr.bf16.gmra.mrb[0].mxu0 %v248
  %v583 = vpop.f32.mrb[0].mxu0
  %v584 = vadd.f32 %v134, %v583
  %v585 = vpop.f32.mrb[0].mxu0
  %v586 = vpop.f32.mrb[0].mxu0
  %v587 = vadd.f32 %v134, %v586
  %v588 = vpop.f32.mrb[0].mxu0
  %589 = vmatprep.mubr.bf16.mxu0 %v254
  %590 = vmatmul.mubr.bf16.gmra.mrb[0].mxu0 %v253
  %v591 = vpop.f32.mrb[0].mxu0
  %v592 = vadd.f32 %v134, %v591
  %v593 = vpop.f32.mrb[0].mxu0
  %v594 = vpop.f32.mrb[0].mxu0
  %v595 = vadd.f32 %v134, %v594
  %v596 = vpop.f32.mrb[0].mxu0
  %597 = vmatprep.mubr.bf16.mxu0 %v259
  %598 = vmatmul.mubr.bf16.gmra.mrb[0].mxu0 %v258
  %v599 = vpop.f32.mrb[0].mxu0
  %v600 = vadd.f32 %v134, %v599
  %v601 = vpop.f32.mrb[0].mxu0
  %v602 = vpop.f32.mrb[0].mxu0
  %v603 = vadd.f32 %v134, %v602
  %v604 = vpop.f32.mrb[0].mxu0
  %605 = vmatprep.mubr.bf16.mxu0 %v264
  %606 = vmatmul.mubr.bf16.gmra.mrb[0].mxu0 %v263
  %v607 = vpop.f32.mrb[0].mxu0
  %v608 = vadd.f32 %v134, %v607
  %v609 = vpop.f32.mrb[0].mxu0
  %v610 = vpop.f32.mrb[0].mxu0
  %v611 = vadd.f32 %v134, %v610
  %v612 = vpop.f32.mrb[0].mxu0
  %613 = vmatprep.mubr.bf16.mxu0 %v269
  %614 = vmatmul.mubr.bf16.gmra.mrb[0].mxu0 %v268
  %v615 = vpop.f32.mrb[0].mxu0
  %v616 = vadd.f32 %v134, %v615
  %v617 = vpop.f32.mrb[0].mxu0
  %v618 = vpop.f32.mrb[0].mxu0
  %v619 = vadd.f32 %v134, %v618
  %v620 = vpop.f32.mrb[0].mxu0
  %621 = vmatprep.mubr.bf16.mxu0 %v274
  %622 = vmatmul.mubr.bf16.gmra.mrb[0].mxu0 %v273
  %v623 = vpop.f32.mrb[0].mxu0
  %v624 = vadd.f32 %v134, %v623
  %v625 = vpop.f32.mrb[0].mxu0
  %v626 = vpop.f32.mrb[0].mxu0
  %v627 = vadd.f32 %v134, %v626
  %v628 = vpop.f32.mrb[0].mxu0
  %629 = vmatprep.mubr.bf16.mxu0 %v279
  %630 = vmatmul.mubr.bf16.gmra.mrb[0].mxu0 %v278
  %v631 = vpop.f32.mrb[0].mxu0
  %v632 = vadd.f32 %v134, %v631
  %v633 = vpop.f32.mrb[0].mxu0
  %v634 = vpop.f32.mrb[0].mxu0
  %v635 = vadd.f32 %v134, %v634
  %v636 = vpop.f32.mrb[0].mxu0
  %637 = vdwg.mxu0
  %638 = vmatprep.subr.bf16.mxu0 0
  %639 = vmatpush1.bf16.msra.mxu0 %v471
  %640 = vmatprep.subr.bf16.mxu0 0
  %641 = vmatpush1.bf16.msra.mxu0 %v472
  %642 = vmatprep.subr.bf16.mxu0 0
  %643 = vmatpush1.bf16.msra.mxu0 %v473
  %644 = vmatprep.subr.bf16.mxu0 0
  %645 = vmatpush1.bf16.msra.mxu0 %v474
  %646 = vmatprep.subr.bf16.mxu0 0
  %647 = vmatpush1.bf16.msra.mxu0 %v475
  %648 = vmatprep.subr.bf16.mxu0 0
  %649 = vmatpush1.bf16.msra.mxu0 %v476
  %650 = vmatprep.subr.bf16.mxu0 0
  %651 = vmatpush1.bf16.msra.mxu0 %v477
  %652 = vmatprep.subr.bf16.mxu0 0
  %653 = vmatpush1.bf16.msra.mxu0 %v478
  %654 = vmatprep.subr.bf16.mxu0 0
  %655 = vmatpush1.bf16.msra.mxu0 %v479
  %656 = vmatprep.subr.bf16.mxu0 0
  %657 = vmatpush1.bf16.msra.mxu0 %v480
  %658 = vmatprep.subr.bf16.mxu0 0
  %659 = vmatpush1.bf16.msra.mxu0 %v481
  %660 = vmatprep.subr.bf16.mxu0 0
  %661 = vmatpush1.bf16.msra.mxu0 %v482
  %662 = vmatprep.subr.bf16.mxu0 0
  %663 = vmatpush1.bf16.msra.mxu0 %v483
  %664 = vmatprep.subr.bf16.mxu0 0
  %665 = vmatpush1.bf16.msra.mxu0 %v484
  %666 = vmatprep.subr.bf16.mxu0 0
  %667 = vmatpush1.bf16.msra.mxu0 %v485
  %668 = vmatprep.subr.bf16.mxu0 0
  %669 = vmatpush1.bf16.msra.mxu0 %v486
  %670 = vmatprep.mubr.bf16.mxu0 %v251
  %671 = vmatmul.mubr.bf16.gmra.mrb[0].mxu0 %v250
  %v672 = vpop.f32.mrb[0].mxu0
  %v673 = vadd.f32 %v584, %v672
  %v674 = vpop.f32.mrb[0].mxu0
  %v675 = vpop.f32.mrb[0].mxu0
  %v676 = vadd.f32 %v587, %v675
  %v677 = vpop.f32.mrb[0].mxu0
  %678 = vmatprep.mubr.bf16.mxu0 %v256
  %679 = vmatmul.mubr.bf16.gmra.mrb[0].mxu0 %v255
  %v680 = vpop.f32.mrb[0].mxu0
  %v681 = vadd.f32 %v592, %v680
  %v682 = vpop.f32.mrb[0].mxu0
  %v683 = vpop.f32.mrb[0].mxu0
  %v684 = vadd.f32 %v595, %v683
  %v685 = vpop.f32.mrb[0].mxu0
  %686 = vmatprep.mubr.bf16.mxu0 %v261
  %687 = vmatmul.mubr.bf16.gmra.mrb[0].mxu0 %v260
  %v688 = vpop.f32.mrb[0].mxu0
  %v689 = vadd.f32 %v600, %v688
  %v690 = vpop.f32.mrb[0].mxu0
  %v691 = vpop.f32.mrb[0].mxu0
  %v692 = vadd.f32 %v603, %v691
  %v693 = vpop.f32.mrb[0].mxu0
  %694 = vmatprep.mubr.bf16.mxu0 %v266
  %695 = vmatmul.mubr.bf16.gmra.mrb[0].mxu0 %v265
  %v696 = vpop.f32.mrb[0].mxu0
  %v697 = vadd.f32 %v608, %v696
  %v698 = vpop.f32.mrb[0].mxu0
  %v699 = vpop.f32.mrb[0].mxu0
  %v700 = vadd.f32 %v611, %v699
  %v701 = vpop.f32.mrb[0].mxu0
  %702 = vmatprep.mubr.bf16.mxu0 %v271
  %703 = vmatmul.mubr.bf16.gmra.mrb[0].mxu0 %v270
  %v704 = vpop.f32.mrb[0].mxu0
  %v705 = vadd.f32 %v616, %v704
  %v706 = vpop.f32.mrb[0].mxu0
  %v707 = vpop.f32.mrb[0].mxu0
  %v708 = vadd.f32 %v619, %v707
  %v709 = vpop.f32.mrb[0].mxu0
  %710 = vmatprep.mubr.bf16.mxu0 %v276
  %711 = vmatmul.mubr.bf16.gmra.mrb[0].mxu0 %v275
  %v712 = vpop.f32.mrb[0].mxu0
  %v713 = vadd.f32 %v624, %v712
  %v714 = vpop.f32.mrb[0].mxu0
  %v715 = vpop.f32.mrb[0].mxu0
  %v716 = vadd.f32 %v627, %v715
  %v717 = vpop.f32.mrb[0].mxu0
  %718 = vmatprep.mubr.bf16.mxu0 %v281
  %719 = vmatmul.mubr.bf16.gmra.mrb[0].mxu0 %v280
  %v720 = vpop.f32.mrb[0].mxu0
  %v721 = vadd.f32 %v632, %v720
  %v722 = vpop.f32.mrb[0].mxu0
  %v723 = vpop.f32.mrb[0].mxu0
  %v724 = vadd.f32 %v635, %v723
  %v725 = vpop.f32.mrb[0].mxu0
  %726 = vdwg.mxu0
  %727 = vmatprep.subr.bf16.mxu0 0
  %728 = vmatpush1.bf16.msra.mxu0 %v487
  %729 = vmatprep.subr.bf16.mxu0 0
  %730 = vmatpush1.bf16.msra.mxu0 %v488
  %731 = vmatprep.subr.bf16.mxu0 0
  %732 = vmatpush1.bf16.msra.mxu0 %v489
  %733 = vmatprep.subr.bf16.mxu0 0
  %734 = vmatpush1.bf16.msra.mxu0 %v490
  %735 = vmatprep.subr.bf16.mxu0 0
  %736 = vmatpush1.bf16.msra.mxu0 0
  %737 = vmatprep.subr.bf16.mxu0 0
  %738 = vmatpush1.bf16.msra.mxu0 0
  %739 = vmatprep.subr.bf16.mxu0 0
  %740 = vmatpush1.bf16.msra.mxu0 0
  %741 = vmatprep.subr.bf16.mxu0 0
  %742 = vmatpush1.bf16.msra.mxu0 0
  %743 = vmatprep.subr.bf16.mxu0 0
  %744 = vmatpush1.bf16.msra.mxu0 0
  %745 = vmatprep.subr.bf16.mxu0 0
  %746 = vmatpush1.bf16.msra.mxu0 0
  %747 = vmatprep.subr.bf16.mxu0 0
  %748 = vmatpush1.bf16.msra.mxu0 0
  %749 = vmatprep.subr.bf16.mxu0 0
  %750 = vmatpush1.bf16.msra.mxu0 0
  %751 = vmatprep.subr.bf16.mxu0 0
  %752 = vmatpush1.bf16.msra.mxu0 0
  %753 = vmatprep.subr.bf16.mxu0 0
  %754 = vmatpush1.bf16.msra.mxu0 0
  %755 = vmatprep.subr.bf16.mxu0 0
  %756 = vmatpush1.bf16.msra.mxu0 0
  %757 = vmatprep.subr.bf16.mxu0 0
  %758 = vmatpush1.bf16.msra.mxu0 0
  %759 = vmatprep.mubr.bf16.mxu0 0
  %760 = vmatmul.mubr.bf16.gmra.mrb[0].mxu0 %v529
  %v761 = vpop.f32.mrb[0].mxu0
  %v762 = vadd.f32 %v673, %v761
  %v763 = vpop.f32.mrb[0].mxu0
  %v764 = vpop.f32.mrb[0].mxu0
  %v765 = vadd.f32 %v676, %v764
  %v766 = vpop.f32.mrb[0].mxu0
  %767 = vmatprep.mubr.bf16.mxu0 0
  %768 = vmatmul.mubr.bf16.gmra.mrb[0].mxu0 %v532
  %v769 = vpop.f32.mrb[0].mxu0
  %v770 = vadd.f32 %v681, %v769
  %v771 = vpop.f32.mrb[0].mxu0
  %v772 = vpop.f32.mrb[0].mxu0
  %v773 = vadd.f32 %v684, %v772
  %v774 = vpop.f32.mrb[0].mxu0
  %775 = vmatprep.mubr.bf16.mxu0 0
  %776 = vmatmul.mubr.bf16.gmra.mrb[0].mxu0 %v535
  %v777 = vpop.f32.mrb[0].mxu0
  %v778 = vadd.f32 %v689, %v777
  %v779 = vpop.f32.mrb[0].mxu0
  %v780 = vpop.f32.mrb[0].mxu0
  %v781 = vadd.f32 %v692, %v780
  %v782 = vpop.f32.mrb[0].mxu0
  %783 = vmatprep.mubr.bf16.mxu0 0
  %784 = vmatmul.mubr.bf16.gmra.mrb[0].mxu0 %v538
  %v785 = vpop.f32.mrb[0].mxu0
  %v786 = vadd.f32 %v697, %v785
  %v787 = vpop.f32.mrb[0].mxu0
  %v788 = vpop.f32.mrb[0].mxu0
  %v789 = vadd.f32 %v700, %v788
  %v790 = vpop.f32.mrb[0].mxu0
  %791 = vmatprep.mubr.bf16.mxu0 0
  %792 = vmatmul.mubr.bf16.gmra.mrb[0].mxu0 %v541
  %v793 = vpop.f32.mrb[0].mxu0
  %v794 = vadd.f32 %v705, %v793
  %v795 = vpop.f32.mrb[0].mxu0
  %v796 = vpop.f32.mrb[0].mxu0
  %v797 = vadd.f32 %v708, %v796
  %v798 = vpop.f32.mrb[0].mxu0
  %799 = vmatprep.mubr.bf16.mxu0 0
  %800 = vmatmul.mubr.bf16.gmra.mrb[0].mxu0 %v544
  %v801 = vpop.f32.mrb[0].mxu0
  %v802 = vadd.f32 %v713, %v801
  %v803 = vpop.f32.mrb[0].mxu0
  %v804 = vpop.f32.mrb[0].mxu0
  %v805 = vadd.f32 %v716, %v804
  %v806 = vpop.f32.mrb[0].mxu0
  %807 = vmatprep.mubr.bf16.mxu0 0
  %808 = vmatmul.mubr.bf16.gmra.mrb[0].mxu0 %v547
  %v809 = vpop.f32.mrb[0].mxu0
  %v810 = vadd.f32 %v721, %v809
  %v811 = vpop.f32.mrb[0].mxu0
  %v812 = vpop.f32.mrb[0].mxu0
  %v813 = vadd.f32 %v724, %v812
  %v814 = vpop.f32.mrb[0].mxu0
  %815 = vdwg.mxu0
  %v816 = vmax.f32 %v762, 0.0
  %v817 = vmax.f32 %v765, 0.0
  %v818 = vmax.f32 %v770, 0.0
  %v819 = vmax.f32 %v773, 0.0
  %v820 = vmax.f32 %v778, 0.0
  %v821 = vmax.f32 %v781, 0.0
  %v822 = vmax.f32 %v786, 0.0
  %v823 = vmax.f32 %v789, 0.0
  %v824 = vmax.f32 %v794, 0.0
  %v825 = vmax.f32 %v797, 0.0
  %v826 = vmax.f32 %v802, 0.0
  %v827 = vmax.f32 %v805, 0.0
  %v828 = vmax.f32 %v810, 0.0
  %v829 = vmax.f32 %v813, 0.0
  %v830 = vpack.c.bf16 %v817, %v816
  %v831 = vpack.c.bf16 %v819, %v818
  %v832 = vpack.c.bf16 %v821, %v820
  %v833 = vpack.c.bf16 %v823, %v822
  %v834 = vpack.c.bf16 %v825, %v824
  %v835 = vpack.c.bf16 %v827, %v826
  %v836 = vpack.c.bf16 %v829, %v828
  %v844 = vunpack.c.l.b16 %v830
  %v845 = vunpack.c.h.b16 %v830
  %v846 = vunpack.c.l.b16 %v831
  %v847 = vunpack.c.h.b16 %v831
  %v848 = vunpack.c.l.b16 %v832
  %v849 = vunpack.c.h.b16 %v832
  %v850 = vunpack.c.l.b16 %v833
  %v851 = vunpack.c.h.b16 %v833
  %v852 = vunpack.c.l.b16 %v834
  %v853 = vunpack.c.h.b16 %v834
  %v854 = vunpack.c.l.b16 %v835
  %v855 = vunpack.c.h.b16 %v835
  %v856 = vunpack.c.l.b16 %v836
  %v857 = vunpack.c.h.b16 %v836
  %v858 = vpack.c.b16 %v844, %v844
  %v859 = vpack.c.b16 %v845, %v845
  %v860 = vpack.c.b16 %v846, %v846
  %v861 = vpack.c.b16 %v847, %v847
  %v862 = vpack.c.b16 %v848, %v848
  %v863 = vpack.c.b16 %v849, %v849
  %v864 = vpack.c.b16 %v850, %v850
  %v865 = vpack.c.b16 %v851, %v851
  %v866 = vpack.c.b16 %v852, %v852
  %v867 = vpack.c.b16 %v853, %v853
  %v868 = vpack.c.b16 %v854, %v854
  %v869 = vpack.c.b16 %v855, %v855
  %v870 = vpack.c.b16 %v856, %v856
  %v871 = vpack.c.b16 %v857, %v857
  %886 = vst [vmem:[%s3] sm:$0xf] %v858
  %887 = vst [vmem:[%s3 + $0x4] sm:$0xf] %v859
  %888 = vst [vmem:[%s3 + $0x8] sm:$0xf] %v860
  %889 = vst [vmem:[%s3 + $0xc] sm:$0xf] %v861
  %890 = vst [vmem:[%s3 + $0x10] sm:$0xf] %v862
  %891 = vst [vmem:[%s3 + $0x14] sm:$0xf] %v863
  %892 = vst [vmem:[%s3 + $0x18] sm:$0xf] %v864
  %893 = vst [vmem:[%s3 + $0x1c] sm:$0xf] %v865
  %894 = vst [vmem:[%s3 + $0x20] sm:$0xf] %v866
  %895 = vst [vmem:[%s3 + $0x24] sm:$0xf] %v867
  %896 = vst [vmem:[%s3 + $0x28] sm:$0xf] %v868
  %897 = vst [vmem:[%s3 + $0x2c] sm:$0xf] %v869
  %898 = vst [vmem:[%s3 + $0x30] sm:$0xf] %v870
  %899 = vst [vmem:[%s3 + $0x34] sm:$0xf] %v871
  // Predicated region
  $region14: #{deepmind_forward.6} parent=0 // pred_check
    _
  $region15: #{deepmind_forward.6} parent=0 // pred_check_branch
    %901 = sbr.rel (0) target = $region17
  $region16: #{deepmind_forward.6} parent=0 // pred_region
    _
  $region17: #{deepmind_forward.6} parent=0 // pred_fallthru
    _
  // Predicated region
  $region18: #{deepmind_forward.6} parent=0 // pred_check
    _
  $region19: #{deepmind_forward.6} parent=0 // pred_check_branch
    %903 = sbr.rel (0) target = $region21
  $region20: #{deepmind_forward.6} parent=0 // pred_region
    _
  $region21: #{deepmind_forward.6} parent=0 // pred_fallthru
    _

</llo_original>
